<compile_context>
chip_gen: v7x
topology: tpu7x:2x2x1
jax: 0.10.0
libtpu: 0.0.40
codegen_flags: <defaults>
</compile_context>

<pallas_src>
import functools

import jax
import jax.numpy as jnp
from jax.experimental import pallas as pl
from jax.experimental.pallas import tpu as pltpu


def _vmem_spec():
    return pl.BlockSpec(memory_space=pltpu.MemorySpace.VMEM)


def _choose_tile_m(M, max_tile=2048):
    """Largest multiple-of-128 tile <= max_tile that divides M (else full M)."""
    if M <= max_tile or M % 128 != 0:
        return M
    t = (max_tile // 128) * 128
    while t >= 128:
        if M % t == 0:
            return t
        t -= 128
    return M


# ----------------------------- Pallas kernels -----------------------------

def _conv_bn_kernel(p_ref, w_ref, scale_ref, shift_ref, o_ref, *, relu):
    # p: (K, tm) bf16   w: (Cout, K) bf16   scale/shift: (Cout, 1) f32
    acc = jnp.dot(w_ref[...], p_ref[...], preferred_element_type=jnp.float32)
    y = acc * scale_ref[...] + shift_ref[...]
    if relu:
        y = jnp.maximum(y, 0.0)
    o_ref[...] = y.astype(o_ref.dtype)


def _tail_identity_kernel(p_ref, w_ref, scale_ref, shift_ref, res_ref, o_ref):
    # ResBlock tail (identity shortcut): conv2 + BN + residual add + ReLU.
    acc = jnp.dot(w_ref[...], p_ref[...], preferred_element_type=jnp.float32)
    y = acc * scale_ref[...] + shift_ref[...] + res_ref[...]
    o_ref[...] = jnp.maximum(y, 0.0).astype(o_ref.dtype)


def _tail_down_kernel(p_ref, w_ref, scale_ref, shift_ref,
                      xd_ref, wd_ref, sd_ref, bd_ref, o_ref):
    # ResBlock tail with fused 1x1x1 strided downsample conv + BN shortcut.
    acc = jnp.dot(w_ref[...], p_ref[...], preferred_element_type=jnp.float32)
    y = acc * scale_ref[...] + shift_ref[...]
    r = jnp.dot(wd_ref[...], xd_ref[...], preferred_element_type=jnp.float32)
    r = r * sd_ref[...] + bd_ref[...]
    o_ref[...] = jnp.maximum(y + r, 0.0).astype(o_ref.dtype)


def _avgpool_fc_kernel(x_ref, w_ref, b_ref, o_ref):
    # x: (C, N, S) -> global average pool over S, then Linear: (O, N)
    pooled = jnp.mean(x_ref[...], axis=2)                                 # (C, N)
    y = jnp.dot(w_ref[...], pooled, preferred_element_type=jnp.float32) + b_ref[...]
    o_ref[...] = y.astype(o_ref.dtype)


# ----------------------------- Pallas wrappers -----------------------------

def _pallas_conv_bn(p, w, scale, shift, relu, out_dtype=jnp.float32):
    K, M = p.shape
    cout = w.shape[0]
    tm = _choose_tile_m(M)
    return pl.pallas_call(
        functools.partial(_conv_bn_kernel, relu=relu),
        out_shape=jax.ShapeDtypeStruct((cout, M), out_dtype),
        grid=(M // tm,),
        in_specs=[
            pl.BlockSpec((K, tm), lambda i: (0, i)),
            pl.BlockSpec((cout, K), lambda i: (0, 0)),
            pl.BlockSpec((cout, 1), lambda i: (0, 0)),
            pl.BlockSpec((cout, 1), lambda i: (0, 0)),
        ],
        out_specs=pl.BlockSpec((cout, tm), lambda i: (0, i)),
        compiler_params=pltpu.CompilerParams(dimension_semantics=("parallel",)),
    )(p, w, scale, shift)


def _pallas_tail_identity(p, w, scale, shift, res):
    K, M = p.shape
    cout = w.shape[0]
    tm = _choose_tile_m(M)
    return pl.pallas_call(
        _tail_identity_kernel,
        out_shape=jax.ShapeDtypeStruct((cout, M), jnp.float32),
        grid=(M // tm,),
        in_specs=[
            pl.BlockSpec((K, tm), lambda i: (0, i)),
            pl.BlockSpec((cout, K), lambda i: (0, 0)),
            pl.BlockSpec((cout, 1), lambda i: (0, 0)),
            pl.BlockSpec((cout, 1), lambda i: (0, 0)),
            pl.BlockSpec((cout, tm), lambda i: (0, i)),
        ],
        out_specs=pl.BlockSpec((cout, tm), lambda i: (0, i)),
        compiler_params=pltpu.CompilerParams(dimension_semantics=("parallel",)),
    )(p, w, scale, shift, res)


def _pallas_tail_down(p, w, scale, shift, xd, wd, sd, bd):
    K, M = p.shape
    cout = w.shape[0]
    cin = wd.shape[1]
    tm = _choose_tile_m(M)
    return pl.pallas_call(
        _tail_down_kernel,
        out_shape=jax.ShapeDtypeStruct((cout, M), jnp.float32),
        grid=(M // tm,),
        in_specs=[
            pl.BlockSpec((K, tm), lambda i: (0, i)),
            pl.BlockSpec((cout, K), lambda i: (0, 0)),
            pl.BlockSpec((cout, 1), lambda i: (0, 0)),
            pl.BlockSpec((cout, 1), lambda i: (0, 0)),
            pl.BlockSpec((cin, tm), lambda i: (0, i)),
            pl.BlockSpec((cout, cin), lambda i: (0, 0)),
            pl.BlockSpec((cout, 1), lambda i: (0, 0)),
            pl.BlockSpec((cout, 1), lambda i: (0, 0)),
        ],
        out_specs=pl.BlockSpec((cout, tm), lambda i: (0, i)),
        compiler_params=pltpu.CompilerParams(dimension_semantics=("parallel",)),
    )(p, w, scale, shift, xd, wd, sd, bd)


def _pallas_avgpool_fc(x, w_fc, b_fc):
    # x: (C, N, S)  w_fc: (O, C)  b_fc: (O, 1)  -> (O, N)
    _, N, _ = x.shape
    O = w_fc.shape[0]
    return pl.pallas_call(
        _avgpool_fc_kernel,
        out_shape=jax.ShapeDtypeStruct((O, N), jnp.float32),
        in_specs=[_vmem_spec()] * 3,
        out_specs=_vmem_spec(),
    )(x, w_fc, b_fc)


# ----------------------------- JAX glue -----------------------------

def _extract_patches_3d(x, ksize, stride, pad):
    """im2col for 3-D conv, channels-first, lane-dense output.

    x: (C, N, D, H, W) -> p: (k^3*C, N*Do*Ho*Wo)   (K rows, M voxels on lanes)
    K index ordering = tap-major, channel-minor (matches weight packing below).
    """
    C, N, D, H, W = x.shape
    xp = jnp.pad(x, ((0, 0), (0, 0), (pad, pad), (pad, pad), (pad, pad)))
    Do = (D + 2 * pad - ksize) // stride + 1
    Ho = (H + 2 * pad - ksize) // stride + 1
    Wo = (W + 2 * pad - ksize) // stride + 1
    taps = []
    for kd in range(ksize):
        for kh in range(ksize):
            for kw in range(ksize):
                sl = xp[:, :,
                        kd:kd + (Do - 1) * stride + 1:stride,
                        kh:kh + (Ho - 1) * stride + 1:stride,
                        kw:kw + (Wo - 1) * stride + 1:stride]
                taps.append(sl)
    p = jnp.stack(taps, axis=0)  # (k^3, C, N, Do, Ho, Wo)
    return p.reshape(ksize ** 3 * C, N * Do * Ho * Wo), (N, Do, Ho, Wo)


def _conv_bn(x, conv_params, ksize, stride, relu, out_dtype=jnp.float32):
    w, scale, shift = conv_params
    cout = w.shape[0]
    p, (N, Do, Ho, Wo) = _extract_patches_3d(
        x.astype(jnp.bfloat16), ksize, stride, pad=ksize // 2)
    y = _pallas_conv_bn(p, w, scale, shift, relu=relu, out_dtype=out_dtype)
    return y.reshape(cout, N, Do, Ho, Wo)


def _maxpool3d_2(x):
    # 2x2x2 / stride-2 max pool as a pure XLA reshape+reduce.
    C, N, D, H, W = x.shape
    return jnp.max(
        x.reshape(C, N, D // 2, 2, H // 2, 2, W // 2, 2), axis=(3, 5, 7))


def _res_block(x, blk, stride):
    cin = x.shape[0]
    w1, s1, b1 = blk["c1"]
    w2, s2, b2 = blk["c2"]
    cout = w1.shape[0]

    # conv1 (3x3x3, stride) + BN + ReLU -- bf16 output, only feeds conv2's im2col
    p1, (N, Do, Ho, Wo) = _extract_patches_3d(x.astype(jnp.bfloat16), 3, stride, 1)
    h = _pallas_conv_bn(p1, w1, s1, b1, relu=True, out_dtype=jnp.bfloat16)
    h5 = h.reshape(cout, N, Do, Ho, Wo)

    # conv2 (3x3x3, stride 1) patches
    p2, _ = _extract_patches_3d(h5, 3, 1, 1)
    M = N * Do * Ho * Wo

    if "down" in blk:
        # fused: conv2+BN, 1x1x1 strided downsample conv+BN shortcut, add, ReLU
        wd, sd, bd = blk["down"]
        xd = x[:, :, ::stride, ::stride, ::stride].reshape(cin, M)
        out = _pallas_tail_down(p2, w2, s2, b2, xd.astype(jnp.bfloat16), wd, sd, bd)
    else:
        # identity shortcut (stride == 1 and cin == cout by construction)
        res = x.reshape(cout, M).astype(jnp.float32)
        out = _pallas_tail_identity(p2, w2, s2, b2, res)
    return out.reshape(cout, N, Do, Ho, Wo)


def heterogeneous_resnet_forward(image_ncdhw, params):
    # PyTorch NCDHW input -> channels-first (C, N, D, H, W) so the voxel axis
    # (last) stays lane-dense through the whole network.
    x = jnp.transpose(image_ncdhw, (1, 0, 2, 3, 4)).astype(jnp.float32)
    x = _conv_bn(x, params["conv1"], ksize=3, stride=1, relu=True)   # ConvBnReLU
    x = _maxpool3d_2(x)                                              # MaxPool3d(2, 2)
    x = _res_block(x, params["block1"], stride=1)
    x = _res_block(x, params["block2"], stride=2)
    x = _res_block(x, params["block3"], stride=2)
    x = _res_block(x, params["block4"], stride=2)
    C, N, D, H, W = x.shape
    w_fc, b_fc = params["fc"]
    out = _pallas_avgpool_fc(x.reshape(C, N, D * H * W), w_fc, b_fc)  # (O, N)
    return out.T                                                      # (N, O)


# ----------------------------- parameters -----------------------------

def _make_conv_bn(key, cin, cout, ksize):
    kw_, kg, kb, km, kv = jax.random.split(key, 5)
    w = 0.1 * jax.random.normal(kw_, (ksize, ksize, ksize, cin, cout), jnp.float32)
    gamma = 1.0 + 0.1 * jax.random.normal(kg, (cout,), jnp.float32)
    beta = 0.1 * jax.random.normal(kb, (cout,), jnp.float32)
    mean = 0.1 * jax.random.normal(km, (cout,), jnp.float32)
    var = 1.0 + 0.1 * jnp.abs(jax.random.normal(kv, (cout,), jnp.float32))
    eps = 1e-5
    scale = gamma * jax.lax.rsqrt(var + eps)
    shift = beta - mean * scale
    # weight packed (Cout, K) with K = tap-major / cin-minor (matches im2col);
    # stored in bf16 for the MXU, BN affine stays f32.
    w2d = w.reshape(ksize ** 3 * cin, cout).T.astype(jnp.bfloat16)
    return (w2d, scale.reshape(cout, 1), shift.reshape(cout, 1))


def _make_resblock(key, cin, cout, stride):
    k1, k2, k3 = jax.random.split(key, 3)
    blk = {"c1": _make_conv_bn(k1, cin, cout, 3),
           "c2": _make_conv_bn(k2, cout, cout, 3)}
    if stride != 1 or cin != cout:
        blk["down"] = _make_conv_bn(k3, cin, cout, 1)
    return blk


def init_params(key, in_channels=1, n_outputs=3, n_basefilters=4):
    ks = jax.random.split(key, 7)
    nb = n_basefilters
    params = {
        "conv1": _make_conv_bn(ks[0], in_channels, nb, 3),
        "block1": _make_resblock(ks[1], nb, nb, stride=1),
        "block2": _make_resblock(ks[2], nb, 2 * nb, stride=2),
        "block3": _make_resblock(ks[3], 2 * nb, 4 * nb, stride=2),
        "block4": _make_resblock(ks[4], 4 * nb, 8 * nb, stride=2),
    }
    w_fc = 0.1 * jax.random.normal(ks[5], (n_outputs, 8 * nb), jnp.float32)
    b_fc = 0.1 * jax.random.normal(ks[6], (n_outputs, 1), jnp.float32)
    params["fc"] = (w_fc, b_fc)
    return params


# ----------------------------- main -----------------------------

if __name__ == "__main__":
    key = jax.random.PRNGKey(0)
    kp, kx = jax.random.split(key)
    params = init_params(kp)

    # PyTorch-style NCDHW input: batch=2, in_channels=1, spatial 16^3
    image = jax.random.normal(kx, (2, 1, 16, 16, 16), jnp.float32)

    fwd = jax.jit(heterogeneous_resnet_forward)
    out = fwd(image, params)
    out = jax.block_until_ready(out)

    assert out.shape == (2, 3), out.shape
    assert jnp.all(jnp.isfinite(out))
    print("KERNEL_OK")
</pallas_src>

<mosaic_0001>
module attributes {stable_mosaic.version = 11 : i64} {
  func.func @_conv_bn_kernel(%arg0: i32, %arg1: memref<27x2048xbf16, #tpu.memory_space<vmem>>, %arg2: memref<4x27xbf16, #tpu.memory_space<vmem>>, %arg3: memref<4x1xf32, #tpu.memory_space<vmem>>, %arg4: memref<4x1xf32, #tpu.memory_space<vmem>>, %arg5: memref<4x2048xf32, #tpu.memory_space<vmem>>) attributes {dimension_semantics = [#tpu.dimension_semantics<parallel>], iteration_bounds = array<i64: 4>, scalar_prefetch = 0 : i64, scratch_operands = 0 : i64, tpu.core_type = #tpu.core_type<tc>, window_params = [{transform_indices = @transform_0, window_bounds = array<i64: 27, 2048>}, {pipeline_mode = #tpu.pipeline_mode<synchronous>, transform_indices = @transform_1, window_bounds = array<i64: 4, 27>}, {pipeline_mode = #tpu.pipeline_mode<synchronous>, transform_indices = @transform_2, window_bounds = array<i64: 4, 1>}, {pipeline_mode = #tpu.pipeline_mode<synchronous>, transform_indices = @transform_3, window_bounds = array<i64: 4, 1>}, {transform_indices = @transform_4, window_bounds = array<i64: 4, 2048>}]} {
    %c0 = arith.constant 0 : index
    %c0_0 = arith.constant 0 : index
    %0 = vector.load %arg2[%c0, %c0_0] : memref<4x27xbf16, #tpu.memory_space<vmem>>, vector<4x27xbf16>
    %c0_1 = arith.constant 0 : index
    %c0_2 = arith.constant 0 : index
    %1 = vector.load %arg1[%c0_1, %c0_2] : memref<27x2048xbf16, #tpu.memory_space<vmem>>, vector<27x2048xbf16>
    %cst = arith.constant dense<0.000000e+00> : vector<4x2048xf32>
    %2 = tpu.matmul %0, %1, %cst {dimension_numbers = #tpu.dot_dimension_numbers<[1], [0], [0], [1], [0, 0, 1, 1], [], []>} : vector<4x27xbf16>, vector<27x2048xbf16>, vector<4x2048xf32> -> vector<4x2048xf32>
    %c0_3 = arith.constant 0 : index
    %c0_4 = arith.constant 0 : index
    %3 = vector.load %arg3[%c0_3, %c0_4] : memref<4x1xf32, #tpu.memory_space<vmem>>, vector<4x1xf32>
    %4 = vector.broadcast %3 : vector<4x1xf32> to vector<4x2048xf32>
    %5 = arith.mulf %2, %4 : vector<4x2048xf32>
    %c0_5 = arith.constant 0 : index
    %c0_6 = arith.constant 0 : index
    %6 = vector.load %arg4[%c0_5, %c0_6] : memref<4x1xf32, #tpu.memory_space<vmem>>, vector<4x1xf32>
    %7 = vector.broadcast %6 : vector<4x1xf32> to vector<4x2048xf32>
    %8 = arith.addf %5, %7 : vector<4x2048xf32>
    %cst_7 = arith.constant 0.000000e+00 : f32
    %9 = vector.broadcast %cst_7 : f32 to vector<4x2048xf32>
    %10 = arith.maximumf %8, %9 : vector<4x2048xf32>
    %c0_8 = arith.constant 0 : index
    %c0_9 = arith.constant 0 : index
    %11 = vector.load %arg5[%c0_8, %c0_9] : memref<4x2048xf32, #tpu.memory_space<vmem>>, vector<4x2048xf32>
    tpu.vector_store %arg5[%c0_8, %c0_9], %10 {strides = array<i32>} : memref<4x2048xf32, #tpu.memory_space<vmem>>, vector<4x2048xf32>,
    return
  }
  func.func @transform_0(%arg0: i32) -> (i32, i32) {
    %c0_i32 = arith.constant 0 : i32
    %c0_i32_0 = arith.constant 0 : i32
    return %c0_i32, %arg0 : i32, i32
  }
  func.func @transform_1(%arg0: i32) -> (i32, i32) {
    %c0_i32 = arith.constant 0 : i32
    %c0_i32_0 = arith.constant 0 : i32
    %c0_i32_1 = arith.constant 0 : i32
    return %c0_i32, %c0_i32_0 : i32, i32
  }
  func.func @transform_2(%arg0: i32) -> (i32, i32) {
    %c0_i32 = arith.constant 0 : i32
    %c0_i32_0 = arith.constant 0 : i32
    %c0_i32_1 = arith.constant 0 : i32
    return %c0_i32, %c0_i32_0 : i32, i32
  }
  func.func @transform_3(%arg0: i32) -> (i32, i32) {
    %c0_i32 = arith.constant 0 : i32
    %c0_i32_0 = arith.constant 0 : i32
    %c0_i32_1 = arith.constant 0 : i32
    return %c0_i32, %c0_i32_0 : i32, i32
  }
  func.func @transform_4(%arg0: i32) -> (i32, i32) {
    %c0_i32 = arith.constant 0 : i32
    %c0_i32_0 = arith.constant 0 : i32
    return %c0_i32, %arg0 : i32, i32
  }
}

module attributes {stable_mosaic.version = 11 : i64} {
  func.func @_conv_bn_kernel(%arg0: i32, %arg1: memref<108x1024xbf16, #tpu.memory_space<vmem>>, %arg2: memref<4x108xbf16, #tpu.memory_space<vmem>>, %arg3: memref<4x1xf32, #tpu.memory_space<vmem>>, %arg4: memref<4x1xf32, #tpu.memory_space<vmem>>, %arg5: memref<4x1024xbf16, #tpu.memory_space<vmem>>) attributes {dimension_semantics = [#tpu.dimension_semantics<parallel>], iteration_bounds = array<i64: 1>, scalar_prefetch = 0 : i64, scratch_operands = 0 : i64, tpu.core_type = #tpu.core_type<tc>, window_params = [{transform_indices = @transform_0, window_bounds = array<i64: 108, 1024>}, {pipeline_mode = #tpu.pipeline_mode<synchronous>, transform_indices = @transform_1, window_bounds = array<i64: 4, 108>}, {pipeline_mode = #tpu.pipeline_mode<synchronous>, transform_indices = @transform_2, window_bounds = array<i64: 4, 1>}, {pipeline_mode = #tpu.pipeline_mode<synchronous>, transform_indices = @transform_3, window_bounds = array<i64: 4, 1>}, {transform_indices = @transform_4, window_bounds = array<i64: 4, 1024>}]} {
    %c0 = arith.constant 0 : index
    %c0_0 = arith.constant 0 : index
    %0 = vector.load %arg2[%c0, %c0_0] : memref<4x108xbf16, #tpu.memory_space<vmem>>, vector<4x108xbf16>
    %c0_1 = arith.constant 0 : index
    %c0_2 = arith.constant 0 : index
    %1 = vector.load %arg1[%c0_1, %c0_2] : memref<108x1024xbf16, #tpu.memory_space<vmem>>, vector<108x1024xbf16>
    %cst = arith.constant dense<0.000000e+00> : vector<4x1024xf32>
    %2 = tpu.matmul %0, %1, %cst {dimension_numbers = #tpu.dot_dimension_numbers<[1], [0], [0], [1], [0, 0, 1, 1], [], []>} : vector<4x108xbf16>, vector<108x1024xbf16>, vector<4x1024xf32> -> vector<4x1024xf32>
    %c0_3 = arith.constant 0 : index
    %c0_4 = arith.constant 0 : index
    %3 = vector.load %arg3[%c0_3, %c0_4] : memref<4x1xf32, #tpu.memory_space<vmem>>, vector<4x1xf32>
    %4 = vector.broadcast %3 : vector<4x1xf32> to vector<4x1024xf32>
    %5 = arith.mulf %2, %4 : vector<4x1024xf32>
    %c0_5 = arith.constant 0 : index
    %c0_6 = arith.constant 0 : index
    %6 = vector.load %arg4[%c0_5, %c0_6] : memref<4x1xf32, #tpu.memory_space<vmem>>, vector<4x1xf32>
    %7 = vector.broadcast %6 : vector<4x1xf32> to vector<4x1024xf32>
    %8 = arith.addf %5, %7 : vector<4x1024xf32>
    %cst_7 = arith.constant 0.000000e+00 : f32
    %9 = vector.broadcast %cst_7 : f32 to vector<4x1024xf32>
    %10 = arith.maximumf %8, %9 : vector<4x1024xf32>
    %11 = arith.truncf %10 : vector<4x1024xf32> to vector<4x1024xbf16>
    %c0_8 = arith.constant 0 : index
    %c0_9 = arith.constant 0 : index
    %12 = vector.load %arg5[%c0_8, %c0_9] : memref<4x1024xbf16, #tpu.memory_space<vmem>>, vector<4x1024xbf16>
    tpu.vector_store %arg5[%c0_8, %c0_9], %11 {strides = array<i32>} : memref<4x1024xbf16, #tpu.memory_space<vmem>>, vector<4x1024xbf16>,
    return
  }
  func.func @transform_0(%arg0: i32) -> (i32, i32) {
    %c0_i32 = arith.constant 0 : i32
    %c0_i32_0 = arith.constant 0 : i32
    return %c0_i32, %arg0 : i32, i32
  }
  func.func @transform_1(%arg0: i32) -> (i32, i32) {
    %c0_i32 = arith.constant 0 : i32
    %c0_i32_0 = arith.constant 0 : i32
    %c0_i32_1 = arith.constant 0 : i32
    return %c0_i32, %c0_i32_0 : i32, i32
  }
  func.func @transform_2(%arg0: i32) -> (i32, i32) {
    %c0_i32 = arith.constant 0 : i32
    %c0_i32_0 = arith.constant 0 : i32
    %c0_i32_1 = arith.constant 0 : i32
    return %c0_i32, %c0_i32_0 : i32, i32
  }
  func.func @transform_3(%arg0: i32) -> (i32, i32) {
    %c0_i32 = arith.constant 0 : i32
    %c0_i32_0 = arith.constant 0 : i32
    %c0_i32_1 = arith.constant 0 : i32
    return %c0_i32, %c0_i32_0 : i32, i32
  }
  func.func @transform_4(%arg0: i32) -> (i32, i32) {
    %c0_i32 = arith.constant 0 : i32
    %c0_i32_0 = arith.constant 0 : i32
    return %c0_i32, %arg0 : i32, i32
  }
}

module attributes {stable_mosaic.version = 11 : i64} {
  func.func @_tail_identity_kernel(%arg0: i32, %arg1: memref<108x1024xbf16, #tpu.memory_space<vmem>>, %arg2: memref<4x108xbf16, #tpu.memory_space<vmem>>, %arg3: memref<4x1xf32, #tpu.memory_space<vmem>>, %arg4: memref<4x1xf32, #tpu.memory_space<vmem>>, %arg5: memref<4x1024xf32, #tpu.memory_space<vmem>>, %arg6: memref<4x1024xf32, #tpu.memory_space<vmem>>) attributes {dimension_semantics = [#tpu.dimension_semantics<parallel>], iteration_bounds = array<i64: 1>, scalar_prefetch = 0 : i64, scratch_operands = 0 : i64, tpu.core_type = #tpu.core_type<tc>, window_params = [{transform_indices = @transform_0, window_bounds = array<i64: 108, 1024>}, {pipeline_mode = #tpu.pipeline_mode<synchronous>, transform_indices = @transform_1, window_bounds = array<i64: 4, 108>}, {pipeline_mode = #tpu.pipeline_mode<synchronous>, transform_indices = @transform_2, window_bounds = array<i64: 4, 1>}, {pipeline_mode = #tpu.pipeline_mode<synchronous>, transform_indices = @transform_3, window_bounds = array<i64: 4, 1>}, {transform_indices = @transform_4, window_bounds = array<i64: 4, 1024>}, {transform_indices = @transform_5, window_bounds = array<i64: 4, 1024>}]} {
    %c0 = arith.constant 0 : index
    %c0_0 = arith.constant 0 : index
    %0 = vector.load %arg2[%c0, %c0_0] : memref<4x108xbf16, #tpu.memory_space<vmem>>, vector<4x108xbf16>
    %c0_1 = arith.constant 0 : index
    %c0_2 = arith.constant 0 : index
    %1 = vector.load %arg1[%c0_1, %c0_2] : memref<108x1024xbf16, #tpu.memory_space<vmem>>, vector<108x1024xbf16>
    %cst = arith.constant dense<0.000000e+00> : vector<4x1024xf32>
    %2 = tpu.matmul %0, %1, %cst {dimension_numbers = #tpu.dot_dimension_numbers<[1], [0], [0], [1], [0, 0, 1, 1], [], []>} : vector<4x108xbf16>, vector<108x1024xbf16>, vector<4x1024xf32> -> vector<4x1024xf32>
    %c0_3 = arith.constant 0 : index
    %c0_4 = arith.constant 0 : index
    %3 = vector.load %arg3[%c0_3, %c0_4] : memref<4x1xf32, #tpu.memory_space<vmem>>, vector<4x1xf32>
    %4 = vector.broadcast %3 : vector<4x1xf32> to vector<4x1024xf32>
    %5 = arith.mulf %2, %4 : vector<4x1024xf32>
    %c0_5 = arith.constant 0 : index
    %c0_6 = arith.constant 0 : index
    %6 = vector.load %arg4[%c0_5, %c0_6] : memref<4x1xf32, #tpu.memory_space<vmem>>, vector<4x1xf32>
    %7 = vector.broadcast %6 : vector<4x1xf32> to vector<4x1024xf32>
    %8 = arith.addf %5, %7 : vector<4x1024xf32>
    %c0_7 = arith.constant 0 : index
    %c0_8 = arith.constant 0 : index
    %9 = vector.load %arg5[%c0_7, %c0_8] : memref<4x1024xf32, #tpu.memory_space<vmem>>, vector<4x1024xf32>
    %10 = arith.addf %8, %9 : vector<4x1024xf32>
    %cst_9 = arith.constant 0.000000e+00 : f32
    %11 = vector.broadcast %cst_9 : f32 to vector<4x1024xf32>
    %12 = arith.maximumf %10, %11 : vector<4x1024xf32>
    %c0_10 = arith.constant 0 : index
    %c0_11 = arith.constant 0 : index
    %13 = vector.load %arg6[%c0_10, %c0_11] : memref<4x1024xf32, #tpu.memory_space<vmem>>, vector<4x1024xf32>
    tpu.vector_store %arg6[%c0_10, %c0_11], %12 {strides = array<i32>} : memref<4x1024xf32, #tpu.memory_space<vmem>>, vector<4x1024xf32>,
    return
  }
  func.func @transform_0(%arg0: i32) -> (i32, i32) {
    %c0_i32 = arith.constant 0 : i32
    %c0_i32_0 = arith.constant 0 : i32
    return %c0_i32, %arg0 : i32, i32
  }
  func.func @transform_1(%arg0: i32) -> (i32, i32) {
    %c0_i32 = arith.constant 0 : i32
    %c0_i32_0 = arith.constant 0 : i32
    %c0_i32_1 = arith.constant 0 : i32
    return %c0_i32, %c0_i32_0 : i32, i32
  }
  func.func @transform_2(%arg0: i32) -> (i32, i32) {
    %c0_i32 = arith.constant 0 : i32
    %c0_i32_0 = arith.constant 0 : i32
    %c0_i32_1 = arith.constant 0 : i32
    return %c0_i32, %c0_i32_0 : i32, i32
  }
  func.func @transform_3(%arg0: i32) -> (i32, i32) {
    %c0_i32 = arith.constant 0 : i32
    %c0_i32_0 = arith.constant 0 : i32
    %c0_i32_1 = arith.constant 0 : i32
    return %c0_i32, %c0_i32_0 : i32, i32
  }
  func.func @transform_4(%arg0: i32) -> (i32, i32) {
    %c0_i32 = arith.constant 0 : i32
    %c0_i32_0 = arith.constant 0 : i32
    return %c0_i32, %arg0 : i32, i32
  }
  func.func @transform_5(%arg0: i32) -> (i32, i32) {
    %c0_i32 = arith.constant 0 : i32
    %c0_i32_0 = arith.constant 0 : i32
    return %c0_i32, %arg0 : i32, i32
  }
}

module attributes {stable_mosaic.version = 11 : i64} {
  func.func @_conv_bn_kernel(%arg0: i32, %arg1: memref<108x128xbf16, #tpu.memory_space<vmem>>, %arg2: memref<8x108xbf16, #tpu.memory_space<vmem>>, %arg3: memref<8x1xf32, #tpu.memory_space<vmem>>, %arg4: memref<8x1xf32, #tpu.memory_space<vmem>>, %arg5: memref<8x128xbf16, #tpu.memory_space<vmem>>) attributes {dimension_semantics = [#tpu.dimension_semantics<parallel>], iteration_bounds = array<i64: 1>, scalar_prefetch = 0 : i64, scratch_operands = 0 : i64, tpu.core_type = #tpu.core_type<tc>, window_params = [{transform_indices = @transform_0, window_bounds = array<i64: 108, 128>}, {pipeline_mode = #tpu.pipeline_mode<synchronous>, transform_indices = @transform_1, window_bounds = array<i64: 8, 108>}, {pipeline_mode = #tpu.pipeline_mode<synchronous>, transform_indices = @transform_2, window_bounds = array<i64: 8, 1>}, {pipeline_mode = #tpu.pipeline_mode<synchronous>, transform_indices = @transform_3, window_bounds = array<i64: 8, 1>}, {transform_indices = @transform_4, window_bounds = array<i64: 8, 128>}]} {
    %c0 = arith.constant 0 : index
    %c0_0 = arith.constant 0 : index
    %0 = vector.load %arg2[%c0, %c0_0] : memref<8x108xbf16, #tpu.memory_space<vmem>>, vector<8x108xbf16>
    %c0_1 = arith.constant 0 : index
    %c0_2 = arith.constant 0 : index
    %1 = vector.load %arg1[%c0_1, %c0_2] : memref<108x128xbf16, #tpu.memory_space<vmem>>, vector<108x128xbf16>
    %cst = arith.constant dense<0.000000e+00> : vector<8x128xf32>
    %2 = tpu.matmul %0, %1, %cst {dimension_numbers = #tpu.dot_dimension_numbers<[1], [0], [0], [1], [0, 0, 1, 1], [], []>} : vector<8x108xbf16>, vector<108x128xbf16>, vector<8x128xf32> -> vector<8x128xf32>
    %c0_3 = arith.constant 0 : index
    %c0_4 = arith.constant 0 : index
    %3 = vector.load %arg3[%c0_3, %c0_4] : memref<8x1xf32, #tpu.memory_space<vmem>>, vector<8x1xf32>
    %4 = vector.broadcast %3 : vector<8x1xf32> to vector<8x128xf32>
    %5 = arith.mulf %2, %4 : vector<8x128xf32>
    %c0_5 = arith.constant 0 : index
    %c0_6 = arith.constant 0 : index
    %6 = vector.load %arg4[%c0_5, %c0_6] : memref<8x1xf32, #tpu.memory_space<vmem>>, vector<8x1xf32>
    %7 = vector.broadcast %6 : vector<8x1xf32> to vector<8x128xf32>
    %8 = arith.addf %5, %7 : vector<8x128xf32>
    %cst_7 = arith.constant 0.000000e+00 : f32
    %9 = vector.broadcast %cst_7 : f32 to vector<8x128xf32>
    %10 = arith.maximumf %8, %9 : vector<8x128xf32>
    %11 = arith.truncf %10 : vector<8x128xf32> to vector<8x128xbf16>
    %c0_8 = arith.constant 0 : index
    %c0_9 = arith.constant 0 : index
    %12 = vector.load %arg5[%c0_8, %c0_9] : memref<8x128xbf16, #tpu.memory_space<vmem>>, vector<8x128xbf16>
    tpu.vector_store %arg5[%c0_8, %c0_9], %11 {strides = array<i32>} : memref<8x128xbf16, #tpu.memory_space<vmem>>, vector<8x128xbf16>,
    return
  }
  func.func @transform_0(%arg0: i32) -> (i32, i32) {
    %c0_i32 = arith.constant 0 : i32
    %c0_i32_0 = arith.constant 0 : i32
    return %c0_i32, %arg0 : i32, i32
  }
  func.func @transform_1(%arg0: i32) -> (i32, i32) {
    %c0_i32 = arith.constant 0 : i32
    %c0_i32_0 = arith.constant 0 : i32
    %c0_i32_1 = arith.constant 0 : i32
    return %c0_i32, %c0_i32_0 : i32, i32
  }
  func.func @transform_2(%arg0: i32) -> (i32, i32) {
    %c0_i32 = arith.constant 0 : i32
    %c0_i32_0 = arith.constant 0 : i32
    %c0_i32_1 = arith.constant 0 : i32
    return %c0_i32, %c0_i32_0 : i32, i32
  }
  func.func @transform_3(%arg0: i32) -> (i32, i32) {
    %c0_i32 = arith.constant 0 : i32
    %c0_i32_0 = arith.constant 0 : i32
    %c0_i32_1 = arith.constant 0 : i32
    return %c0_i32, %c0_i32_0 : i32, i32
  }
  func.func @transform_4(%arg0: i32) -> (i32, i32) {
    %c0_i32 = arith.constant 0 : i32
    %c0_i32_0 = arith.constant 0 : i32
    return %c0_i32, %arg0 : i32, i32
  }
}

module attributes {stable_mosaic.version = 11 : i64} {
  func.func @_tail_down_kernel(%arg0: i32, %arg1: memref<216x128xbf16, #tpu.memory_space<vmem>>, %arg2: memref<8x216xbf16, #tpu.memory_space<vmem>>, %arg3: memref<8x1xf32, #tpu.memory_space<vmem>>, %arg4: memref<8x1xf32, #tpu.memory_space<vmem>>, %arg5: memref<4x128xbf16, #tpu.memory_space<vmem>>, %arg6: memref<8x4xbf16, #tpu.memory_space<vmem>>, %arg7: memref<8x1xf32, #tpu.memory_space<vmem>>, %arg8: memref<8x1xf32, #tpu.memory_space<vmem>>, %arg9: memref<8x128xf32, #tpu.memory_space<vmem>>) attributes {dimension_semantics = [#tpu.dimension_semantics<parallel>], iteration_bounds = array<i64: 1>, scalar_prefetch = 0 : i64, scratch_operands = 0 : i64, tpu.core_type = #tpu.core_type<tc>, window_params = [{transform_indices = @transform_0, window_bounds = array<i64: 216, 128>}, {pipeline_mode = #tpu.pipeline_mode<synchronous>, transform_indices = @transform_1, window_bounds = array<i64: 8, 216>}, {pipeline_mode = #tpu.pipeline_mode<synchronous>, transform_indices = @transform_2, window_bounds = array<i64: 8, 1>}, {pipeline_mode = #tpu.pipeline_mode<synchronous>, transform_indices = @transform_3, window_bounds = array<i64: 8, 1>}, {transform_indices = @transform_4, window_bounds = array<i64: 4, 128>}, {pipeline_mode = #tpu.pipeline_mode<synchronous>, transform_indices = @transform_5, window_bounds = array<i64: 8, 4>}, {pipeline_mode = #tpu.pipeline_mode<synchronous>, transform_indices = @transform_6, window_bounds = array<i64: 8, 1>}, {pipeline_mode = #tpu.pipeline_mode<synchronous>, transform_indices = @transform_7, window_bounds = array<i64: 8, 1>}, {transform_indices = @transform_8, window_bounds = array<i64: 8, 128>}]} {
    %c0 = arith.constant 0 : index
    %c0_0 = arith.constant 0 : index
    %0 = vector.load %arg2[%c0, %c0_0] : memref<8x216xbf16, #tpu.memory_space<vmem>>, vector<8x216xbf16>
    %c0_1 = arith.constant 0 : index
    %c0_2 = arith.constant 0 : index
    %1 = vector.load %arg1[%c0_1, %c0_2] : memref<216x128xbf16, #tpu.memory_space<vmem>>, vector<216x128xbf16>
    %cst = arith.constant dense<0.000000e+00> : vector<8x128xf32>
    %2 = tpu.matmul %0, %1, %cst {dimension_numbers = #tpu.dot_dimension_numbers<[1], [0], [0], [1], [0, 0, 1, 1], [], []>} : vector<8x216xbf16>, vector<216x128xbf16>, vector<8x128xf32> -> vector<8x128xf32>
    %c0_3 = arith.constant 0 : index
    %c0_4 = arith.constant 0 : index
    %3 = vector.load %arg3[%c0_3, %c0_4] : memref<8x1xf32, #tpu.memory_space<vmem>>, vector<8x1xf32>
    %4 = vector.broadcast %3 : vector<8x1xf32> to vector<8x128xf32>
    %5 = arith.mulf %2, %4 : vector<8x128xf32>
    %c0_5 = arith.constant 0 : index
    %c0_6 = arith.constant 0 : index
    %6 = vector.load %arg4[%c0_5, %c0_6] : memref<8x1xf32, #tpu.memory_space<vmem>>, vector<8x1xf32>
    %7 = vector.broadcast %6 : vector<8x1xf32> to vector<8x128xf32>
    %8 = arith.addf %5, %7 : vector<8x128xf32>
    %c0_7 = arith.constant 0 : index
    %c0_8 = arith.constant 0 : index
    %9 = vector.load %arg6[%c0_7, %c0_8] : memref<8x4xbf16, #tpu.memory_space<vmem>>, vector<8x4xbf16>
    %c0_9 = arith.constant 0 : index
    %c0_10 = arith.constant 0 : index
    %10 = vector.load %arg5[%c0_9, %c0_10] : memref<4x128xbf16, #tpu.memory_space<vmem>>, vector<4x128xbf16>
    %cst_11 = arith.constant dense<0.000000e+00> : vector<8x128xf32>
    %11 = tpu.matmul %9, %10, %cst_11 {dimension_numbers = #tpu.dot_dimension_numbers<[1], [0], [0], [1], [0, 0, 1, 1], [], []>} : vector<8x4xbf16>, vector<4x128xbf16>, vector<8x128xf32> -> vector<8x128xf32>
    %c0_12 = arith.constant 0 : index
    %c0_13 = arith.constant 0 : index
    %12 = vector.load %arg7[%c0_12, %c0_13] : memref<8x1xf32, #tpu.memory_space<vmem>>, vector<8x1xf32>
    %13 = vector.broadcast %12 : vector<8x1xf32> to vector<8x128xf32>
    %14 = arith.mulf %11, %13 : vector<8x128xf32>
    %c0_14 = arith.constant 0 : index
    %c0_15 = arith.constant 0 : index
    %15 = vector.load %arg8[%c0_14, %c0_15] : memref<8x1xf32, #tpu.memory_space<vmem>>, vector<8x1xf32>
    %16 = vector.broadcast %15 : vector<8x1xf32> to vector<8x128xf32>
    %17 = arith.addf %14, %16 : vector<8x128xf32>
    %18 = arith.addf %8, %17 : vector<8x128xf32>
    %cst_16 = arith.constant 0.000000e+00 : f32
    %19 = vector.broadcast %cst_16 : f32 to vector<8x128xf32>
    %20 = arith.maximumf %18, %19 : vector<8x128xf32>
    %c0_17 = arith.constant 0 : index
    %c0_18 = arith.constant 0 : index
    %21 = vector.load %arg9[%c0_17, %c0_18] : memref<8x128xf32, #tpu.memory_space<vmem>>, vector<8x128xf32>
    tpu.vector_store %arg9[%c0_17, %c0_18], %20 {strides = array<i32>} : memref<8x128xf32, #tpu.memory_space<vmem>>, vector<8x128xf32>,
    return
  }
  func.func @transform_0(%arg0: i32) -> (i32, i32) {
    %c0_i32 = arith.constant 0 : i32
    %c0_i32_0 = arith.constant 0 : i32
    return %c0_i32, %arg0 : i32, i32
  }
  func.func @transform_1(%arg0: i32) -> (i32, i32) {
    %c0_i32 = arith.constant 0 : i32
    %c0_i32_0 = arith.constant 0 : i32
    %c0_i32_1 = arith.constant 0 : i32
    return %c0_i32, %c0_i32_0 : i32, i32
  }
  func.func @transform_2(%arg0: i32) -> (i32, i32) {
    %c0_i32 = arith.constant 0 : i32
    %c0_i32_0 = arith.constant 0 : i32
    %c0_i32_1 = arith.constant 0 : i32
    return %c0_i32, %c0_i32_0 : i32, i32
  }
  func.func @transform_3(%arg0: i32) -> (i32, i32) {
    %c0_i32 = arith.constant 0 : i32
    %c0_i32_0 = arith.constant 0 : i32
    %c0_i32_1 = arith.constant 0 : i32
    return %c0_i32, %c0_i32_0 : i32, i32
  }
  func.func @transform_4(%arg0: i32) -> (i32, i32) {
    %c0_i32 = arith.constant 0 : i32
    %c0_i32_0 = arith.constant 0 : i32
    return %c0_i32, %arg0 : i32, i32
  }
  func.func @transform_5(%arg0: i32) -> (i32, i32) {
    %c0_i32 = arith.constant 0 : i32
    %c0_i32_0 = arith.constant 0 : i32
    %c0_i32_1 = arith.constant 0 : i32
    return %c0_i32, %c0_i32_0 : i32, i32
  }
  func.func @transform_6(%arg0: i32) -> (i32, i32) {
    %c0_i32 = arith.constant 0 : i32
    %c0_i32_0 = arith.constant 0 : i32
    %c0_i32_1 = arith.constant 0 : i32
    return %c0_i32, %c0_i32_0 : i32, i32
  }
  func.func @transform_7(%arg0: i32) -> (i32, i32) {
    %c0_i32 = arith.constant 0 : i32
    %c0_i32_0 = arith.constant 0 : i32
    %c0_i32_1 = arith.constant 0 : i32
    return %c0_i32, %c0_i32_0 : i32, i32
  }
  func.func @transform_8(%arg0: i32) -> (i32, i32) {
    %c0_i32 = arith.constant 0 : i32
    %c0_i32_0 = arith.constant 0 : i32
    return %c0_i32, %arg0 : i32, i32
  }
}

module attributes {stable_mosaic.version = 11 : i64} {
  func.func @_conv_bn_kernel(%arg0: i32, %arg1: memref<216x16xbf16, #tpu.memory_space<vmem>>, %arg2: memref<16x216xbf16, #tpu.memory_space<vmem>>, %arg3: memref<16x1xf32, #tpu.memory_space<vmem>>, %arg4: memref<16x1xf32, #tpu.memory_space<vmem>>, %arg5: memref<16x16xbf16, #tpu.memory_space<vmem>>) attributes {dimension_semantics = [#tpu.dimension_semantics<parallel>], iteration_bounds = array<i64: 1>, scalar_prefetch = 0 : i64, scratch_operands = 0 : i64, tpu.core_type = #tpu.core_type<tc>, window_params = [{transform_indices = @transform_0, window_bounds = array<i64: 216, 16>}, {pipeline_mode = #tpu.pipeline_mode<synchronous>, transform_indices = @transform_1, window_bounds = array<i64: 16, 216>}, {pipeline_mode = #tpu.pipeline_mode<synchronous>, transform_indices = @transform_2, window_bounds = array<i64: 16, 1>}, {pipeline_mode = #tpu.pipeline_mode<synchronous>, transform_indices = @transform_3, window_bounds = array<i64: 16, 1>}, {transform_indices = @transform_4, window_bounds = array<i64: 16, 16>}]} {
    %c0 = arith.constant 0 : index
    %c0_0 = arith.constant 0 : index
    %0 = vector.load %arg2[%c0, %c0_0] : memref<16x216xbf16, #tpu.memory_space<vmem>>, vector<16x216xbf16>
    %c0_1 = arith.constant 0 : index
    %c0_2 = arith.constant 0 : index
    %1 = vector.load %arg1[%c0_1, %c0_2] : memref<216x16xbf16, #tpu.memory_space<vmem>>, vector<216x16xbf16>
    %cst = arith.constant dense<0.000000e+00> : vector<16x16xf32>
    %2 = tpu.matmul %0, %1, %cst {dimension_numbers = #tpu.dot_dimension_numbers<[1], [0], [0], [1], [0, 0, 1, 1], [], []>} : vector<16x216xbf16>, vector<216x16xbf16>, vector<16x16xf32> -> vector<16x16xf32>
    %c0_3 = arith.constant 0 : index
    %c0_4 = arith.constant 0 : index
    %3 = vector.load %arg3[%c0_3, %c0_4] : memref<16x1xf32, #tpu.memory_space<vmem>>, vector<16x1xf32>
    %4 = vector.broadcast %3 : vector<16x1xf32> to vector<16x16xf32>
    %5 = arith.mulf %2, %4 : vector<16x16xf32>
    %c0_5 = arith.constant 0 : index
    %c0_6 = arith.constant 0 : index
    %6 = vector.load %arg4[%c0_5, %c0_6] : memref<16x1xf32, #tpu.memory_space<vmem>>, vector<16x1xf32>
    %7 = vector.broadcast %6 : vector<16x1xf32> to vector<16x16xf32>
    %8 = arith.addf %5, %7 : vector<16x16xf32>
    %cst_7 = arith.constant 0.000000e+00 : f32
    %9 = vector.broadcast %cst_7 : f32 to vector<16x16xf32>
    %10 = arith.maximumf %8, %9 : vector<16x16xf32>
    %11 = arith.truncf %10 : vector<16x16xf32> to vector<16x16xbf16>
    %c0_8 = arith.constant 0 : index
    %c0_9 = arith.constant 0 : index
    %12 = vector.load %arg5[%c0_8, %c0_9] : memref<16x16xbf16, #tpu.memory_space<vmem>>, vector<16x16xbf16>
    tpu.vector_store %arg5[%c0_8, %c0_9], %11 {strides = array<i32>} : memref<16x16xbf16, #tpu.memory_space<vmem>>, vector<16x16xbf16>,
    return
  }
  func.func @transform_0(%arg0: i32) -> (i32, i32) {
    %c0_i32 = arith.constant 0 : i32
    %c0_i32_0 = arith.constant 0 : i32
    return %c0_i32, %arg0 : i32, i32
  }
  func.func @transform_1(%arg0: i32) -> (i32, i32) {
    %c0_i32 = arith.constant 0 : i32
    %c0_i32_0 = arith.constant 0 : i32
    %c0_i32_1 = arith.constant 0 : i32
    return %c0_i32, %c0_i32_0 : i32, i32
  }
  func.func @transform_2(%arg0: i32) -> (i32, i32) {
    %c0_i32 = arith.constant 0 : i32
    %c0_i32_0 = arith.constant 0 : i32
    %c0_i32_1 = arith.constant 0 : i32
    return %c0_i32, %c0_i32_0 : i32, i32
  }
  func.func @transform_3(%arg0: i32) -> (i32, i32) {
    %c0_i32 = arith.constant 0 : i32
    %c0_i32_0 = arith.constant 0 : i32
    %c0_i32_1 = arith.constant 0 : i32
    return %c0_i32, %c0_i32_0 : i32, i32
  }
  func.func @transform_4(%arg0: i32) -> (i32, i32) {
    %c0_i32 = arith.constant 0 : i32
    %c0_i32_0 = arith.constant 0 : i32
    return %c0_i32, %arg0 : i32, i32
  }
}

module attributes {stable_mosaic.version = 11 : i64} {
  func.func @_tail_down_kernel(%arg0: i32, %arg1: memref<432x16xbf16, #tpu.memory_space<vmem>>, %arg2: memref<16x432xbf16, #tpu.memory_space<vmem>>, %arg3: memref<16x1xf32, #tpu.memory_space<vmem>>, %arg4: memref<16x1xf32, #tpu.memory_space<vmem>>, %arg5: memref<8x16xbf16, #tpu.memory_space<vmem>>, %arg6: memref<16x8xbf16, #tpu.memory_space<vmem>>, %arg7: memref<16x1xf32, #tpu.memory_space<vmem>>, %arg8: memref<16x1xf32, #tpu.memory_space<vmem>>, %arg9: memref<16x16xf32, #tpu.memory_space<vmem>>) attributes {dimension_semantics = [#tpu.dimension_semantics<parallel>], iteration_bounds = array<i64: 1>, scalar_prefetch = 0 : i64, scratch_operands = 0 : i64, tpu.core_type = #tpu.core_type<tc>, window_params = [{transform_indices = @transform_0, window_bounds = array<i64: 432, 16>}, {pipeline_mode = #tpu.pipeline_mode<synchronous>, transform_indices = @transform_1, window_bounds = array<i64: 16, 432>}, {pipeline_mode = #tpu.pipeline_mode<synchronous>, transform_indices = @transform_2, window_bounds = array<i64: 16, 1>}, {pipeline_mode = #tpu.pipeline_mode<synchronous>, transform_indices = @transform_3, window_bounds = array<i64: 16, 1>}, {transform_indices = @transform_4, window_bounds = array<i64: 8, 16>}, {pipeline_mode = #tpu.pipeline_mode<synchronous>, transform_indices = @transform_5, window_bounds = array<i64: 16, 8>}, {pipeline_mode = #tpu.pipeline_mode<synchronous>, transform_indices = @transform_6, window_bounds = array<i64: 16, 1>}, {pipeline_mode = #tpu.pipeline_mode<synchronous>, transform_indices = @transform_7, window_bounds = array<i64: 16, 1>}, {transform_indices = @transform_8, window_bounds = array<i64: 16, 16>}]} {
    %c0 = arith.constant 0 : index
    %c0_0 = arith.constant 0 : index
    %0 = vector.load %arg2[%c0, %c0_0] : memref<16x432xbf16, #tpu.memory_space<vmem>>, vector<16x432xbf16>
    %c0_1 = arith.constant 0 : index
    %c0_2 = arith.constant 0 : index
    %1 = vector.load %arg1[%c0_1, %c0_2] : memref<432x16xbf16, #tpu.memory_space<vmem>>, vector<432x16xbf16>
    %cst = arith.constant dense<0.000000e+00> : vector<16x16xf32>
    %2 = tpu.matmul %0, %1, %cst {dimension_numbers = #tpu.dot_dimension_numbers<[1], [0], [0], [1], [0, 0, 1, 1], [], []>} : vector<16x432xbf16>, vector<432x16xbf16>, vector<16x16xf32> -> vector<16x16xf32>
    %c0_3 = arith.constant 0 : index
    %c0_4 = arith.constant 0 : index
    %3 = vector.load %arg3[%c0_3, %c0_4] : memref<16x1xf32, #tpu.memory_space<vmem>>, vector<16x1xf32>
    %4 = vector.broadcast %3 : vector<16x1xf32> to vector<16x16xf32>
    %5 = arith.mulf %2, %4 : vector<16x16xf32>
    %c0_5 = arith.constant 0 : index
    %c0_6 = arith.constant 0 : index
    %6 = vector.load %arg4[%c0_5, %c0_6] : memref<16x1xf32, #tpu.memory_space<vmem>>, vector<16x1xf32>
    %7 = vector.broadcast %6 : vector<16x1xf32> to vector<16x16xf32>
    %8 = arith.addf %5, %7 : vector<16x16xf32>
    %c0_7 = arith.constant 0 : index
    %c0_8 = arith.constant 0 : index
    %9 = vector.load %arg6[%c0_7, %c0_8] : memref<16x8xbf16, #tpu.memory_space<vmem>>, vector<16x8xbf16>
    %c0_9 = arith.constant 0 : index
    %c0_10 = arith.constant 0 : index
    %10 = vector.load %arg5[%c0_9, %c0_10] : memref<8x16xbf16, #tpu.memory_space<vmem>>, vector<8x16xbf16>
    %cst_11 = arith.constant dense<0.000000e+00> : vector<16x16xf32>
    %11 = tpu.matmul %9, %10, %cst_11 {dimension_numbers = #tpu.dot_dimension_numbers<[1], [0], [0], [1], [0, 0, 1, 1], [], []>} : vector<16x8xbf16>, vector<8x16xbf16>, vector<16x16xf32> -> vector<16x16xf32>
    %c0_12 = arith.constant 0 : index
    %c0_13 = arith.constant 0 : index
    %12 = vector.load %arg7[%c0_12, %c0_13] : memref<16x1xf32, #tpu.memory_space<vmem>>, vector<16x1xf32>
    %13 = vector.broadcast %12 : vector<16x1xf32> to vector<16x16xf32>
    %14 = arith.mulf %11, %13 : vector<16x16xf32>
    %c0_14 = arith.constant 0 : index
    %c0_15 = arith.constant 0 : index
    %15 = vector.load %arg8[%c0_14, %c0_15] : memref<16x1xf32, #tpu.memory_space<vmem>>, vector<16x1xf32>
    %16 = vector.broadcast %15 : vector<16x1xf32> to vector<16x16xf32>
    %17 = arith.addf %14, %16 : vector<16x16xf32>
    %18 = arith.addf %8, %17 : vector<16x16xf32>
    %cst_16 = arith.constant 0.000000e+00 : f32
    %19 = vector.broadcast %cst_16 : f32 to vector<16x16xf32>
    %20 = arith.maximumf %18, %19 : vector<16x16xf32>
    %c0_17 = arith.constant 0 : index
    %c0_18 = arith.constant 0 : index
    %21 = vector.load %arg9[%c0_17, %c0_18] : memref<16x16xf32, #tpu.memory_space<vmem>>, vector<16x16xf32>
    tpu.vector_store %arg9[%c0_17, %c0_18], %20 {strides = array<i32>} : memref<16x16xf32, #tpu.memory_space<vmem>>, vector<16x16xf32>,
    return
  }
  func.func @transform_0(%arg0: i32) -> (i32, i32) {
    %c0_i32 = arith.constant 0 : i32
    %c0_i32_0 = arith.constant 0 : i32
    return %c0_i32, %arg0 : i32, i32
  }
  func.func @transform_1(%arg0: i32) -> (i32, i32) {
    %c0_i32 = arith.constant 0 : i32
    %c0_i32_0 = arith.constant 0 : i32
    %c0_i32_1 = arith.constant 0 : i32
    return %c0_i32, %c0_i32_0 : i32, i32
  }
  func.func @transform_2(%arg0: i32) -> (i32, i32) {
    %c0_i32 = arith.constant 0 : i32
    %c0_i32_0 = arith.constant 0 : i32
    %c0_i32_1 = arith.constant 0 : i32
    return %c0_i32, %c0_i32_0 : i32, i32
  }
  func.func @transform_3(%arg0: i32) -> (i32, i32) {
    %c0_i32 = arith.constant 0 : i32
    %c0_i32_0 = arith.constant 0 : i32
    %c0_i32_1 = arith.constant 0 : i32
    return %c0_i32, %c0_i32_0 : i32, i32
  }
  func.func @transform_4(%arg0: i32) -> (i32, i32) {
    %c0_i32 = arith.constant 0 : i32
    %c0_i32_0 = arith.constant 0 : i32
    return %c0_i32, %arg0 : i32, i32
  }
  func.func @transform_5(%arg0: i32) -> (i32, i32) {
    %c0_i32 = arith.constant 0 : i32
    %c0_i32_0 = arith.constant 0 : i32
    %c0_i32_1 = arith.constant 0 : i32
    return %c0_i32, %c0_i32_0 : i32, i32
  }
  func.func @transform_6(%arg0: i32) -> (i32, i32) {
    %c0_i32 = arith.constant 0 : i32
    %c0_i32_0 = arith.constant 0 : i32
    %c0_i32_1 = arith.constant 0 : i32
    return %c0_i32, %c0_i32_0 : i32, i32
  }
  func.func @transform_7(%arg0: i32) -> (i32, i32) {
    %c0_i32 = arith.constant 0 : i32
    %c0_i32_0 = arith.constant 0 : i32
    %c0_i32_1 = arith.constant 0 : i32
    return %c0_i32, %c0_i32_0 : i32, i32
  }
  func.func @transform_8(%arg0: i32) -> (i32, i32) {
    %c0_i32 = arith.constant 0 : i32
    %c0_i32_0 = arith.constant 0 : i32
    return %c0_i32, %arg0 : i32, i32
  }
}

module attributes {stable_mosaic.version = 11 : i64} {
  func.func @_conv_bn_kernel(%arg0: i32, %arg1: memref<432x2xbf16, #tpu.memory_space<vmem>>, %arg2: memref<32x432xbf16, #tpu.memory_space<vmem>>, %arg3: memref<32x1xf32, #tpu.memory_space<vmem>>, %arg4: memref<32x1xf32, #tpu.memory_space<vmem>>, %arg5: memref<32x2xbf16, #tpu.memory_space<vmem>>) attributes {dimension_semantics = [#tpu.dimension_semantics<parallel>], iteration_bounds = array<i64: 1>, scalar_prefetch = 0 : i64, scratch_operands = 0 : i64, tpu.core_type = #tpu.core_type<tc>, window_params = [{transform_indices = @transform_0, window_bounds = array<i64: 432, 2>}, {pipeline_mode = #tpu.pipeline_mode<synchronous>, transform_indices = @transform_1, window_bounds = array<i64: 32, 432>}, {pipeline_mode = #tpu.pipeline_mode<synchronous>, transform_indices = @transform_2, window_bounds = array<i64: 32, 1>}, {pipeline_mode = #tpu.pipeline_mode<synchronous>, transform_indices = @transform_3, window_bounds = array<i64: 32, 1>}, {transform_indices = @transform_4, window_bounds = array<i64: 32, 2>}]} {
    %c0 = arith.constant 0 : index
    %c0_0 = arith.constant 0 : index
    %0 = vector.load %arg2[%c0, %c0_0] : memref<32x432xbf16, #tpu.memory_space<vmem>>, vector<32x432xbf16>
    %c0_1 = arith.constant 0 : index
    %c0_2 = arith.constant 0 : index
    %1 = vector.load %arg1[%c0_1, %c0_2] : memref<432x2xbf16, #tpu.memory_space<vmem>>, vector<432x2xbf16>
    %cst = arith.constant dense<0.000000e+00> : vector<32x2xf32>
    %2 = tpu.matmul %0, %1, %cst {dimension_numbers = #tpu.dot_dimension_numbers<[1], [0], [0], [1], [0, 0, 1, 1], [], []>} : vector<32x432xbf16>, vector<432x2xbf16>, vector<32x2xf32> -> vector<32x2xf32>
    %c0_3 = arith.constant 0 : index
    %c0_4 = arith.constant 0 : index
    %3 = vector.load %arg3[%c0_3, %c0_4] : memref<32x1xf32, #tpu.memory_space<vmem>>, vector<32x1xf32>
    %4 = vector.broadcast %3 : vector<32x1xf32> to vector<32x2xf32>
    %5 = arith.mulf %2, %4 : vector<32x2xf32>
    %c0_5 = arith.constant 0 : index
    %c0_6 = arith.constant 0 : index
    %6 = vector.load %arg4[%c0_5, %c0_6] : memref<32x1xf32, #tpu.memory_space<vmem>>, vector<32x1xf32>
    %7 = vector.broadcast %6 : vector<32x1xf32> to vector<32x2xf32>
    %8 = arith.addf %5, %7 : vector<32x2xf32>
    %cst_7 = arith.constant 0.000000e+00 : f32
    %9 = vector.broadcast %cst_7 : f32 to vector<32x2xf32>
    %10 = arith.maximumf %8, %9 : vector<32x2xf32>
    %11 = arith.truncf %10 : vector<32x2xf32> to vector<32x2xbf16>
    %c0_8 = arith.constant 0 : index
    %c0_9 = arith.constant 0 : index
    %12 = vector.load %arg5[%c0_8, %c0_9] : memref<32x2xbf16, #tpu.memory_space<vmem>>, vector<32x2xbf16>
    tpu.vector_store %arg5[%c0_8, %c0_9], %11 {strides = array<i32>} : memref<32x2xbf16, #tpu.memory_space<vmem>>, vector<32x2xbf16>,
    return
  }
  func.func @transform_0(%arg0: i32) -> (i32, i32) {
    %c0_i32 = arith.constant 0 : i32
    %c0_i32_0 = arith.constant 0 : i32
    return %c0_i32, %arg0 : i32, i32
  }
  func.func @transform_1(%arg0: i32) -> (i32, i32) {
    %c0_i32 = arith.constant 0 : i32
    %c0_i32_0 = arith.constant 0 : i32
    %c0_i32_1 = arith.constant 0 : i32
    return %c0_i32, %c0_i32_0 : i32, i32
  }
  func.func @transform_2(%arg0: i32) -> (i32, i32) {
    %c0_i32 = arith.constant 0 : i32
    %c0_i32_0 = arith.constant 0 : i32
    %c0_i32_1 = arith.constant 0 : i32
    return %c0_i32, %c0_i32_0 : i32, i32
  }
  func.func @transform_3(%arg0: i32) -> (i32, i32) {
    %c0_i32 = arith.constant 0 : i32
    %c0_i32_0 = arith.constant 0 : i32
    %c0_i32_1 = arith.constant 0 : i32
    return %c0_i32, %c0_i32_0 : i32, i32
  }
  func.func @transform_4(%arg0: i32) -> (i32, i32) {
    %c0_i32 = arith.constant 0 : i32
    %c0_i32_0 = arith.constant 0 : i32
    return %c0_i32, %arg0 : i32, i32
  }
}

module attributes {stable_mosaic.version = 11 : i64} {
  func.func @_tail_down_kernel(%arg0: i32, %arg1: memref<864x2xbf16, #tpu.memory_space<vmem>>, %arg2: memref<32x864xbf16, #tpu.memory_space<vmem>>, %arg3: memref<32x1xf32, #tpu.memory_space<vmem>>, %arg4: memref<32x1xf32, #tpu.memory_space<vmem>>, %arg5: memref<16x2xbf16, #tpu.memory_space<vmem>>, %arg6: memref<32x16xbf16, #tpu.memory_space<vmem>>, %arg7: memref<32x1xf32, #tpu.memory_space<vmem>>, %arg8: memref<32x1xf32, #tpu.memory_space<vmem>>, %arg9: memref<32x2xf32, #tpu.memory_space<vmem>>) attributes {dimension_semantics = [#tpu.dimension_semantics<parallel>], iteration_bounds = array<i64: 1>, scalar_prefetch = 0 : i64, scratch_operands = 0 : i64, tpu.core_type = #tpu.core_type<tc>, window_params = [{transform_indices = @transform_0, window_bounds = array<i64: 864, 2>}, {pipeline_mode = #tpu.pipeline_mode<synchronous>, transform_indices = @transform_1, window_bounds = array<i64: 32, 864>}, {pipeline_mode = #tpu.pipeline_mode<synchronous>, transform_indices = @transform_2, window_bounds = array<i64: 32, 1>}, {pipeline_mode = #tpu.pipeline_mode<synchronous>, transform_indices = @transform_3, window_bounds = array<i64: 32, 1>}, {transform_indices = @transform_4, window_bounds = array<i64: 16, 2>}, {pipeline_mode = #tpu.pipeline_mode<synchronous>, transform_indices = @transform_5, window_bounds = array<i64: 32, 16>}, {pipeline_mode = #tpu.pipeline_mode<synchronous>, transform_indices = @transform_6, window_bounds = array<i64: 32, 1>}, {pipeline_mode = #tpu.pipeline_mode<synchronous>, transform_indices = @transform_7, window_bounds = array<i64: 32, 1>}, {transform_indices = @transform_8, window_bounds = array<i64: 32, 2>}]} {
    %c0 = arith.constant 0 : index
    %c0_0 = arith.constant 0 : index
    %0 = vector.load %arg2[%c0, %c0_0] : memref<32x864xbf16, #tpu.memory_space<vmem>>, vector<32x864xbf16>
    %c0_1 = arith.constant 0 : index
    %c0_2 = arith.constant 0 : index
    %1 = vector.load %arg1[%c0_1, %c0_2] : memref<864x2xbf16, #tpu.memory_space<vmem>>, vector<864x2xbf16>
    %cst = arith.constant dense<0.000000e+00> : vector<32x2xf32>
    %2 = tpu.matmul %0, %1, %cst {dimension_numbers = #tpu.dot_dimension_numbers<[1], [0], [0], [1], [0, 0, 1, 1], [], []>} : vector<32x864xbf16>, vector<864x2xbf16>, vector<32x2xf32> -> vector<32x2xf32>
    %c0_3 = arith.constant 0 : index
    %c0_4 = arith.constant 0 : index
    %3 = vector.load %arg3[%c0_3, %c0_4] : memref<32x1xf32, #tpu.memory_space<vmem>>, vector<32x1xf32>
    %4 = vector.broadcast %3 : vector<32x1xf32> to vector<32x2xf32>
    %5 = arith.mulf %2, %4 : vector<32x2xf32>
    %c0_5 = arith.constant 0 : index
    %c0_6 = arith.constant 0 : index
    %6 = vector.load %arg4[%c0_5, %c0_6] : memref<32x1xf32, #tpu.memory_space<vmem>>, vector<32x1xf32>
    %7 = vector.broadcast %6 : vector<32x1xf32> to vector<32x2xf32>
    %8 = arith.addf %5, %7 : vector<32x2xf32>
    %c0_7 = arith.constant 0 : index
    %c0_8 = arith.constant 0 : index
    %9 = vector.load %arg6[%c0_7, %c0_8] : memref<32x16xbf16, #tpu.memory_space<vmem>>, vector<32x16xbf16>
    %c0_9 = arith.constant 0 : index
    %c0_10 = arith.constant 0 : index
    %10 = vector.load %arg5[%c0_9, %c0_10] : memref<16x2xbf16, #tpu.memory_space<vmem>>, vector<16x2xbf16>
    %cst_11 = arith.constant dense<0.000000e+00> : vector<32x2xf32>
    %11 = tpu.matmul %9, %10, %cst_11 {dimension_numbers = #tpu.dot_dimension_numbers<[1], [0], [0], [1], [0, 0, 1, 1], [], []>} : vector<32x16xbf16>, vector<16x2xbf16>, vector<32x2xf32> -> vector<32x2xf32>
    %c0_12 = arith.constant 0 : index
    %c0_13 = arith.constant 0 : index
    %12 = vector.load %arg7[%c0_12, %c0_13] : memref<32x1xf32, #tpu.memory_space<vmem>>, vector<32x1xf32>
    %13 = vector.broadcast %12 : vector<32x1xf32> to vector<32x2xf32>
    %14 = arith.mulf %11, %13 : vector<32x2xf32>
    %c0_14 = arith.constant 0 : index
    %c0_15 = arith.constant 0 : index
    %15 = vector.load %arg8[%c0_14, %c0_15] : memref<32x1xf32, #tpu.memory_space<vmem>>, vector<32x1xf32>
    %16 = vector.broadcast %15 : vector<32x1xf32> to vector<32x2xf32>
    %17 = arith.addf %14, %16 : vector<32x2xf32>
    %18 = arith.addf %8, %17 : vector<32x2xf32>
    %cst_16 = arith.constant 0.000000e+00 : f32
    %19 = vector.broadcast %cst_16 : f32 to vector<32x2xf32>
    %20 = arith.maximumf %18, %19 : vector<32x2xf32>
    %c0_17 = arith.constant 0 : index
    %c0_18 = arith.constant 0 : index
    %21 = vector.load %arg9[%c0_17, %c0_18] : memref<32x2xf32, #tpu.memory_space<vmem>>, vector<32x2xf32>
    tpu.vector_store %arg9[%c0_17, %c0_18], %20 {strides = array<i32>} : memref<32x2xf32, #tpu.memory_space<vmem>>, vector<32x2xf32>,
    return
  }
  func.func @transform_0(%arg0: i32) -> (i32, i32) {
    %c0_i32 = arith.constant 0 : i32
    %c0_i32_0 = arith.constant 0 : i32
    return %c0_i32, %arg0 : i32, i32
  }
  func.func @transform_1(%arg0: i32) -> (i32, i32) {
    %c0_i32 = arith.constant 0 : i32
    %c0_i32_0 = arith.constant 0 : i32
    %c0_i32_1 = arith.constant 0 : i32
    return %c0_i32, %c0_i32_0 : i32, i32
  }
  func.func @transform_2(%arg0: i32) -> (i32, i32) {
    %c0_i32 = arith.constant 0 : i32
    %c0_i32_0 = arith.constant 0 : i32
    %c0_i32_1 = arith.constant 0 : i32
    return %c0_i32, %c0_i32_0 : i32, i32
  }
  func.func @transform_3(%arg0: i32) -> (i32, i32) {
    %c0_i32 = arith.constant 0 : i32
    %c0_i32_0 = arith.constant 0 : i32
    %c0_i32_1 = arith.constant 0 : i32
    return %c0_i32, %c0_i32_0 : i32, i32
  }
  func.func @transform_4(%arg0: i32) -> (i32, i32) {
    %c0_i32 = arith.constant 0 : i32
    %c0_i32_0 = arith.constant 0 : i32
    return %c0_i32, %arg0 : i32, i32
  }
  func.func @transform_5(%arg0: i32) -> (i32, i32) {
    %c0_i32 = arith.constant 0 : i32
    %c0_i32_0 = arith.constant 0 : i32
    %c0_i32_1 = arith.constant 0 : i32
    return %c0_i32, %c0_i32_0 : i32, i32
  }
  func.func @transform_6(%arg0: i32) -> (i32, i32) {
    %c0_i32 = arith.constant 0 : i32
    %c0_i32_0 = arith.constant 0 : i32
    %c0_i32_1 = arith.constant 0 : i32
    return %c0_i32, %c0_i32_0 : i32, i32
  }
  func.func @transform_7(%arg0: i32) -> (i32, i32) {
    %c0_i32 = arith.constant 0 : i32
    %c0_i32_0 = arith.constant 0 : i32
    %c0_i32_1 = arith.constant 0 : i32
    return %c0_i32, %c0_i32_0 : i32, i32
  }
  func.func @transform_8(%arg0: i32) -> (i32, i32) {
    %c0_i32 = arith.constant 0 : i32
    %c0_i32_0 = arith.constant 0 : i32
    return %c0_i32, %arg0 : i32, i32
  }
}

module attributes {stable_mosaic.version = 11 : i64} {
  func.func @_avgpool_fc_kernel(%arg0: memref<32x2x1xf32, #tpu.memory_space<vmem>>, %arg1: memref<3x32xf32, #tpu.memory_space<vmem>>, %arg2: memref<3x1xf32, #tpu.memory_space<vmem>>, %arg3: memref<3x2xf32, #tpu.memory_space<vmem>>) attributes {dimension_semantics = [], scalar_prefetch = 0 : i64, scratch_operands = 0 : i64, tpu.core_type = #tpu.core_type<tc>} {
    %c0 = arith.constant 0 : index
    %c0_0 = arith.constant 0 : index
    %c0_1 = arith.constant 0 : index
    %0 = vector.load %arg0[%c0, %c0_0, %c0_1] : memref<32x2x1xf32, #tpu.memory_space<vmem>>, vector<32x2x1xf32>
    %cst = arith.constant dense<0.000000e+00> : vector<32x2xf32>
    %1 = vector.multi_reduction <add>, %0, %cst [2] : vector<32x2x1xf32> to vector<32x2xf32>
    %cst_2 = arith.constant 1.000000e+00 : f32
    %2 = vector.broadcast %cst_2 : f32 to vector<32x2xf32>
    %3 = arith.divf %1, %2 : vector<32x2xf32>
    %c0_3 = arith.constant 0 : index
    %c0_4 = arith.constant 0 : index
    %4 = vector.load %arg1[%c0_3, %c0_4] : memref<3x32xf32, #tpu.memory_space<vmem>>, vector<3x32xf32>
    %cst_5 = arith.constant dense<0.000000e+00> : vector<3x2xf32>
    %5 = tpu.matmul %4, %3, %cst_5 {dimension_numbers = #tpu.dot_dimension_numbers<[1], [0], [0], [1], [0, 0, 1, 1], [], []>} : vector<3x32xf32>, vector<32x2xf32>, vector<3x2xf32> -> vector<3x2xf32>
    %c0_6 = arith.constant 0 : index
    %c0_7 = arith.constant 0 : index
    %6 = vector.load %arg2[%c0_6, %c0_7] : memref<3x1xf32, #tpu.memory_space<vmem>>, vector<3x1xf32>
    %7 = vector.broadcast %6 : vector<3x1xf32> to vector<3x2xf32>
    %8 = arith.addf %5, %7 : vector<3x2xf32>
    %c0_8 = arith.constant 0 : index
    %c0_9 = arith.constant 0 : index
    %9 = vector.load %arg3[%c0_8, %c0_9] : memref<3x2xf32, #tpu.memory_space<vmem>>, vector<3x2xf32>
    tpu.vector_store %arg3[%c0_8, %c0_9], %8 {strides = array<i32>} : memref<3x2xf32, #tpu.memory_space<vmem>>, vector<3x2xf32>,
    return
  }
}

</mosaic_0001>

<llo_original>
// kernel: heterogeneous_resnet_forward.10
$region0: #{heterogeneous_resnet_forward.10}
  #allocation0 [shape = 'u32[]', space=smem, size = 0x4, offset = 0x4, fixed_abs, tag = 'smem constant byte address 0x4 - core index']
  #allocation1 [shape = 'u32[144,128]{1,0:T(1,128)}', space=vmem, size = 0x12000, scoped, tag = 'internal scratch']
  %s0 = inlined_call_operand.vmem [shape: bf16[27,8192], index: 0, kind: input, shape index: {}]
  %s1 = inlined_call_operand.vmem [shape: bf16[4,27], index: 1, kind: input, shape index: {}]
  %s2 = inlined_call_operand.vmem [shape: f32[4,1], index: 2, kind: input, shape index: {}]
  %s3 = inlined_call_operand.vmem [shape: f32[4,1], index: 3, kind: input, shape index: {}]
  %s4 = inlined_call_operand.vmem [shape: f32[4,8192], index: 4, kind: output, shape index: {}]
  %s5 = sld [smem:[#allocation0]]
  $region72: #{heterogeneous_resnet_forward.10} parent=0
    _
  %s7 = ssub.s32 1, %s5
  %s8 = scalar_select 0, %s7, %s5
  $region1: #{heterogeneous_resnet_forward.10} parent=0
    #allocation2 [shape = 'u8[262144]{0}', space=vmem, size = 0x40000, scoped, tag = 'input window, operand 0']
    loop: start=0, step=1, limit=6
    $region2: #{heterogeneous_resnet_forward.10} parent=1 // loop_pre_header
      _
    $region3: #{heterogeneous_resnet_forward.10} parent=1 // loop_header
      %s10 = sphi 0, %s14
      %p11 = scmp.ge.s32.totalorder %s10, 6
      %s20 = sphi 0, %s22
      %s23 = sphi 0, %s20
      %s24 = sphi 0, %s23
      %s40 = sphi 0, %s24
      %s44 = sphi 0, %s44
      %s46 = sphi 0, %s44
      %s47 = sphi 0, %s46
      %s61 = sphi 0, %s47
      %s65 = sphi 0, %s65
      %s67 = sphi 0, %s65
      %s68 = sphi 0, %s67
      %s82 = sphi 0, %s68
      %s86 = sphi 0, %s86
      %s88 = sphi 0, %s86
      %s89 = sphi 0, %s88
      %s103 = sphi 0, %s89
      %s109 = sphi 0, %s111
      %s112 = sphi 0, %s109
      %s113 = sphi 0, %s112
      %s129 = sphi 0, %s113
    $region4: #{heterogeneous_resnet_forward.10} parent=1 // loop_header_branch
      %13 = sbr.rel (%p11) target = $region8
    $region5: #{heterogeneous_resnet_forward.10} parent=1 // loop_body
      %s15 = ssub.s32 %s10, 1
      %s16 = ssub.s32 %s10, 2
      %s17 = sadd.s32 %s10, 1
      %s18 = ssub.s32 %s10, %s17
      %p19 = scmp.eq.s32.totalorder %s18, 0
      %s21 = sadd.s32 %s20, 1
      %s22 = scalar_select %p19, %s20, %s21
      %p25 = pneg %p19
      %p26 = scmp.eq.s32.totalorder %s10, 3
      %p27 = por %p25, %p26
      %p28 = scmp.ne.s32.totalorder %s20, %s23
      %p29 = scmp.eq.s32.totalorder %s10, 0
      %p30 = por %p28, %p29
      %p31 = scmp.ne.s32.totalorder %s20, %s23
      %p32 = scmp.eq.s32.totalorder %s15, 3
      %p33 = por %p31, %p32
      %p34 = scmp.ne.s32.totalorder %s23, %s24
      %p35 = scmp.eq.s32.totalorder %s15, 0
      %p36 = por %p34, %p35
      %p37 = scmp.ne.s32.totalorder %s23, %s24
      %p38 = scmp.eq.s32.totalorder %s16, 3
      %p39 = por %p37, %p38
      %p41 = scmp.ne.s32.totalorder %s24, %s40
      %p42 = scmp.eq.s32.totalorder %s16, 0
      %p43 = por %p41, %p42
      %s45 = sadd.s32 %s44, 1
      %p48 = scmp.eq.s32.totalorder %s10, 3
      %p49 = scmp.ne.s32.totalorder %s44, %s46
      %p50 = scmp.eq.s32.totalorder %s10, 0
      %p51 = por %p49, %p50
      %p52 = scmp.ne.s32.totalorder %s44, %s46
      %p53 = scmp.eq.s32.totalorder %s15, 3
      %p54 = por %p52, %p53
      %p55 = scmp.ne.s32.totalorder %s46, %s47
      %p56 = scmp.eq.s32.totalorder %s15, 0
      %p57 = por %p55, %p56
      %p58 = scmp.ne.s32.totalorder %s46, %s47
      %p59 = scmp.eq.s32.totalorder %s16, 3
      %p60 = por %p58, %p59
      %p62 = scmp.ne.s32.totalorder %s47, %s61
      %p63 = scmp.eq.s32.totalorder %s16, 0
      %p64 = por %p62, %p63
      %s66 = sadd.s32 %s65, 1
      %p69 = scmp.eq.s32.totalorder %s10, 3
      %p70 = scmp.ne.s32.totalorder %s65, %s67
      %p71 = scmp.eq.s32.totalorder %s10, 0
      %p72 = por %p70, %p71
      %p73 = scmp.ne.s32.totalorder %s65, %s67
      %p74 = scmp.eq.s32.totalorder %s15, 3
      %p75 = por %p73, %p74
      %p76 = scmp.ne.s32.totalorder %s67, %s68
      %p77 = scmp.eq.s32.totalorder %s15, 0
      %p78 = por %p76, %p77
      %p79 = scmp.ne.s32.totalorder %s67, %s68
      %p80 = scmp.eq.s32.totalorder %s16, 3
      %p81 = por %p79, %p80
      %p83 = scmp.ne.s32.totalorder %s68, %s82
      %p84 = scmp.eq.s32.totalorder %s16, 0
      %p85 = por %p83, %p84
      %s87 = sadd.s32 %s86, 1
      %p90 = scmp.eq.s32.totalorder %s10, 3
      %p91 = scmp.ne.s32.totalorder %s86, %s88
      %p92 = scmp.eq.s32.totalorder %s10, 0
      %p93 = por %p91, %p92
      %p94 = scmp.ne.s32.totalorder %s86, %s88
      %p95 = scmp.eq.s32.totalorder %s15, 3
      %p96 = por %p94, %p95
      %p97 = scmp.ne.s32.totalorder %s88, %s89
      %p98 = scmp.eq.s32.totalorder %s15, 0
      %p99 = por %p97, %p98
      %p100 = scmp.ne.s32.totalorder %s88, %s89
      %p101 = scmp.eq.s32.totalorder %s16, 3
      %p102 = por %p100, %p101
      %p104 = scmp.ne.s32.totalorder %s89, %s103
      %p105 = scmp.eq.s32.totalorder %s16, 0
      %p106 = por %p104, %p105
      %s107 = ssub.s32 %s10, %s17
      %p108 = scmp.eq.s32.totalorder %s107, 0
      %s110 = sadd.s32 %s109, 1
      %s111 = scalar_select %p108, %s109, %s110
      %p114 = pneg %p108
      %p115 = scmp.eq.s32.totalorder %s10, 3
      %p116 = por %p114, %p115
      %p117 = scmp.ne.s32.totalorder %s109, %s112
      %p118 = scmp.eq.s32.totalorder %s10, 0
      %p119 = por %p117, %p118
      %p120 = scmp.ne.s32.totalorder %s109, %s112
      %p121 = scmp.eq.s32.totalorder %s15, 3
      %p122 = por %p120, %p121
      %p123 = scmp.ne.s32.totalorder %s112, %s113
      %p124 = scmp.eq.s32.totalorder %s15, 0
      %p125 = por %p123, %p124
      %p126 = scmp.ne.s32.totalorder %s112, %s113
      %p127 = scmp.eq.s32.totalorder %s16, 3
      %p128 = por %p126, %p127
      %p130 = scmp.ne.s32.totalorder %s113, %s129
      %p131 = scmp.eq.s32.totalorder %s16, 0
      %p132 = por %p130, %p131
      %p133 = scmp.le.s32.totalorder 1, %s10
      %p134 = scmp.lt.s32.totalorder %s10, 5
      %p135 = pnand %p133, %p134
      %p136 = pneg %p135
      // Predicated region
      $region9: #{heterogeneous_resnet_forward.10} parent=5 // pred_check
        _
      $region10: #{heterogeneous_resnet_forward.10} parent=5 // pred_check_branch
        %138 = sbr.rel (%p135) target = $region12
      $region11: #{heterogeneous_resnet_forward.10} parent=5 // pred_region
        %s139 = ssub.s32 %s10, 1
        // Predicated region
        $region13: #{heterogeneous_resnet_forward.10} parent=11 // pred_check
          %p140 = pneg %p57
        $region14: #{heterogeneous_resnet_forward.10} parent=11 // pred_check_branch
          %142 = sbr.rel (%p140) target = $region16
        $region15: #{heterogeneous_resnet_forward.10} parent=11 // pred_region
          _
        $region16: #{heterogeneous_resnet_forward.10} parent=11 // pred_fallthru
          _
        // Predicated region
        $region17: #{heterogeneous_resnet_forward.10} parent=11 // pred_check
          %p143 = pneg %p78
        $region18: #{heterogeneous_resnet_forward.10} parent=11 // pred_check_branch
          %145 = sbr.rel (%p143) target = $region20
        $region19: #{heterogeneous_resnet_forward.10} parent=11 // pred_region
          _
        $region20: #{heterogeneous_resnet_forward.10} parent=11 // pred_fallthru
          _
        // Predicated region
        $region21: #{heterogeneous_resnet_forward.10} parent=11 // pred_check
          %p146 = pneg %p99
        $region22: #{heterogeneous_resnet_forward.10} parent=11 // pred_check_branch
          %148 = sbr.rel (%p146) target = $region24
        $region23: #{heterogeneous_resnet_forward.10} parent=11 // pred_region
          _
        $region24: #{heterogeneous_resnet_forward.10} parent=11 // pred_fallthru
          _
      $region12: #{heterogeneous_resnet_forward.10} parent=5 // pred_fallthru
        _
      %p149 = scmp.lt.s32.totalorder %s10, 4
      // Predicated region
      $region25: #{heterogeneous_resnet_forward.10} parent=5 // pred_check
        %p150 = pneg %p149
      $region26: #{heterogeneous_resnet_forward.10} parent=5 // pred_check_branch
        %152 = sbr.rel (%p150) target = $region28
      $region27: #{heterogeneous_resnet_forward.10} parent=5 // pred_region
        // Predicated region
        $region29: #{heterogeneous_resnet_forward.10} parent=27 // pred_check
          %p153 = pneg %p30
        $region30: #{heterogeneous_resnet_forward.10} parent=27 // pred_check_branch
          %155 = sbr.rel (%p153) target = $region32
        $region31: #{heterogeneous_resnet_forward.10} parent=27 // pred_region
          %s156 = sand.u32 %s20, 1
          %s157 = sand.u32 %s20, 1
          %s158 = smul.addr %s157, 256
          %s159 = scalar_lea.vmem [#allocation2], %s158
          %s160 = smul.u32 16, %s10
          %s161 = smul.addr %s160, 4
          %s162 = scalar_lea.vmem %s0, %s161
          // Predicated region
          $region33: #{heterogeneous_resnet_forward.10} parent=31 // pred_check
            _
          $region34: #{heterogeneous_resnet_forward.10} parent=31 // pred_check_branch
            %164 = sbr.rel (0) target = $region36
          $region35: #{heterogeneous_resnet_forward.10} parent=31 // pred_region
            // Predicated region
            $region37: #{heterogeneous_resnet_forward.10} parent=35 // pred_check
              _
            $region38: #{heterogeneous_resnet_forward.10} parent=35 // pred_check_branch
              %166 = sbr.rel (0) target = $region40
            $region39: #{heterogeneous_resnet_forward.10} parent=35 // pred_region
              loop: start=0, step=1, limit=1
              $region41: #{heterogeneous_resnet_forward.10} parent=39 // loop_pre_header
                _
              $region42: #{heterogeneous_resnet_forward.10} parent=39 // loop_header
                %s168 = sphi 0, %s172
                %p169 = scmp.ge.s32.totalorder %s168, 1
                %s173 = sphi %s162, %s162
                %s174 = sphi %s159, %s159
              $region43: #{heterogeneous_resnet_forward.10} parent=39 // loop_header_branch
                %171 = sbr.rel (%p169) target = $region47
              $region44: #{heterogeneous_resnet_forward.10} parent=39 // loop_body
                %v175 = vld [vmem:[%s173] sm:$0xff]
                %176 = vst [vmem:[%s174] sm:$0xff] %v175
                %v177 = vld [vmem:[%s173 + $0x8] sm:$0xff]
                %178 = vst [vmem:[%s174 + $0x8] sm:$0xff] %v177
                %v179 = vld [vmem:[%s173 + $0x10] sm:$0xff]
                %180 = vst [vmem:[%s174 + $0x10] sm:$0xff] %v179
                %v181 = vld [vmem:[%s173 + $0x18] sm:$0xff]
                %182 = vst [vmem:[%s174 + $0x18] sm:$0xff] %v181
                %v183 = vld [vmem:[%s173 + $0x20] sm:$0xff]
                %184 = vst [vmem:[%s174 + $0x20] sm:$0xff] %v183
                %v185 = vld [vmem:[%s173 + $0x28] sm:$0xff]
                %186 = vst [vmem:[%s174 + $0x28] sm:$0xff] %v185
                %v187 = vld [vmem:[%s173 + $0x30] sm:$0xff]
                %188 = vst [vmem:[%s174 + $0x30] sm:$0xff] %v187
                %v189 = vld [vmem:[%s173 + $0x38] sm:$0xff]
                %190 = vst [vmem:[%s174 + $0x38] sm:$0xff] %v189
                %v191 = vld [vmem:[%s173 + $0x100] sm:$0xff]
                %192 = vst [vmem:[%s174 + $0x40] sm:$0xff] %v191
                %v193 = vld [vmem:[%s173 + $0x108] sm:$0xff]
                %194 = vst [vmem:[%s174 + $0x48] sm:$0xff] %v193
                %v195 = vld [vmem:[%s173 + $0x110] sm:$0xff]
                %196 = vst [vmem:[%s174 + $0x50] sm:$0xff] %v195
                %v197 = vld [vmem:[%s173 + $0x118] sm:$0xff]
                %198 = vst [vmem:[%s174 + $0x58] sm:$0xff] %v197
                %v199 = vld [vmem:[%s173 + $0x120] sm:$0xff]
                %200 = vst [vmem:[%s174 + $0x60] sm:$0xff] %v199
                %v201 = vld [vmem:[%s173 + $0x128] sm:$0xff]
                %202 = vst [vmem:[%s174 + $0x68] sm:$0xff] %v201
                %v203 = vld [vmem:[%s173 + $0x130] sm:$0xff]
                %204 = vst [vmem:[%s174 + $0x70] sm:$0xff] %v203
                %v205 = vld [vmem:[%s173 + $0x138] sm:$0xff]
                %206 = vst [vmem:[%s174 + $0x78] sm:$0xff] %v205
                %v207 = vld [vmem:[%s173 + $0x200] sm:$0xff]
                %208 = vst [vmem:[%s174 + $0x80] sm:$0xff] %v207
                %v209 = vld [vmem:[%s173 + $0x208] sm:$0xff]
                %210 = vst [vmem:[%s174 + $0x88] sm:$0xff] %v209
                %v211 = vld [vmem:[%s173 + $0x210] sm:$0xff]
                %212 = vst [vmem:[%s174 + $0x90] sm:$0xff] %v211
                %v213 = vld [vmem:[%s173 + $0x218] sm:$0xff]
                %214 = vst [vmem:[%s174 + $0x98] sm:$0xff] %v213
                %v215 = vld [vmem:[%s173 + $0x220] sm:$0xff]
                %216 = vst [vmem:[%s174 + $0xa0] sm:$0xff] %v215
                %v217 = vld [vmem:[%s173 + $0x228] sm:$0xff]
                %218 = vst [vmem:[%s174 + $0xa8] sm:$0xff] %v217
                %v219 = vld [vmem:[%s173 + $0x230] sm:$0xff]
                %220 = vst [vmem:[%s174 + $0xb0] sm:$0xff] %v219
                %v221 = vld [vmem:[%s173 + $0x238] sm:$0xff]
                %222 = vst [vmem:[%s174 + $0xb8] sm:$0xff] %v221
                %v223 = vld [vmem:[%s173 + $0x300] sm:$0xff]
                %224 = vst [vmem:[%s174 + $0xc0] sm:$0xff] %v223
                %v225 = vld [vmem:[%s173 + $0x308] sm:$0xff]
                %226 = vst [vmem:[%s174 + $0xc8] sm:$0xff] %v225
                %v227 = vld [vmem:[%s173 + $0x310] sm:$0xff]
                %228 = vst [vmem:[%s174 + $0xd0] sm:$0xff] %v227
                %v229 = vld [vmem:[%s173 + $0x318] sm:$0xff]
                %230 = vst [vmem:[%s174 + $0xd8] sm:$0xff] %v229
                %v231 = vld [vmem:[%s173 + $0x320] sm:$0xff]
                %232 = vst [vmem:[%s174 + $0xe0] sm:$0xff] %v231
                %v233 = vld [vmem:[%s173 + $0x328] sm:$0xff]
                %234 = vst [vmem:[%s174 + $0xe8] sm:$0xff] %v233
                %v235 = vld [vmem:[%s173 + $0x330] sm:$0xff]
                %236 = vst [vmem:[%s174 + $0xf0] sm:$0xff] %v235
                %v237 = vld [vmem:[%s173 + $0x338] sm:$0xff]
                %238 = vst [vmem:[%s174 + $0xf8] sm:$0xff] %v237
              $region45: #{heterogeneous_resnet_forward.10} parent=39 // loop_footer
                %s172 = sadd.s32 1, %s168
              $region46: #{heterogeneous_resnet_forward.10} parent=39 // loop_footer_branch
                %167 = sbr.rel target = $region42
              $region47: #{heterogeneous_resnet_forward.10} parent=39 // loop_exit
                _
            $region40: #{heterogeneous_resnet_forward.10} parent=35 // pred_fallthru
              _
            // Predicated region
            $region48: #{heterogeneous_resnet_forward.10} parent=35 // pred_check
              _
            $region49: #{heterogeneous_resnet_forward.10} parent=35 // pred_check_branch
              %240 = sbr.rel target = $region51
            $region50: #{heterogeneous_resnet_forward.10} parent=35 // pred_region
              _
            $region51: #{heterogeneous_resnet_forward.10} parent=35 // pred_fallthru
              _
          $region36: #{heterogeneous_resnet_forward.10} parent=31 // pred_fallthru
            _
          %241 = vnop
        $region32: #{heterogeneous_resnet_forward.10} parent=27 // pred_fallthru
          _
      $region28: #{heterogeneous_resnet_forward.10} parent=5 // pred_fallthru
        _
      %p242 = scmp.le.s32.totalorder 1, %s10
      %p243 = scmp.lt.s32.totalorder %s10, 5
      %p244 = pnand %p242, %p243
      %p245 = pneg %p244
      // Predicated region
      $region52: #{heterogeneous_resnet_forward.10} parent=5 // pred_check
        _
      $region53: #{heterogeneous_resnet_forward.10} parent=5 // pred_check_branch
        %247 = sbr.rel (%p244) target = $region55
      $region54: #{heterogeneous_resnet_forward.10} parent=5 // pred_region
        %s248 = ssub.s32 %s10, 1
        %s249 = sand.u32 %s23, 1
        %s250 = sand.u32 %s23, 1
        %s251 = smul.addr %s250, 256
        %s252 = scalar_lea.vmem [#allocation2], %s251
        // Predicated region
        $region56: #{heterogeneous_resnet_forward.10} parent=54 // pred_check
          %p253 = pneg %p36
        $region57: #{heterogeneous_resnet_forward.10} parent=54 // pred_check_branch
          %255 = sbr.rel (%p253) target = $region59
        $region58: #{heterogeneous_resnet_forward.10} parent=54 // pred_region
          _
        $region59: #{heterogeneous_resnet_forward.10} parent=54 // pred_fallthru
          _
        %s256 = sand.u32 %s23, 1
        %s257 = sand.u32 %s23, 1
        %s258 = smul.addr %s257, 256
        %s259 = scalar_lea.vmem [#allocation2], %s258
        %p260 = pneg %p36
        %p261 = pneg %p33
        %p262 = pneg %p57
        %p263 = pneg %p54
        %p264 = pneg %p78
        %p265 = pneg %p75
        %p266 = pneg %p99
        %p267 = pneg %p96
        %p268 = pneg %p125
        %p269 = pneg %p122
        %s270 = smul.u32 16, %s15
        %p271 = scmp.lt.s32.totalorder %s270, 63
        %s272 = scalar_select %p271, %s270, 63
        %s273 = smul.addr %s272, 4
        %s274 = scalar_lea.vmem %s4, %s273
        %s275 = smul.u32 16, %s15
        %s276 = smul.u32 16, %s15
        %p277 = scmp.lt.s32.totalorder %s276, 63
        %s278 = scalar_select %p277, %s276, 63
        %s279 = smul.addr %s278, 4
        %s280 = scalar_lea.vmem %s4, %s279
        %s281 = smul.u32 16, %s15
        %v283 = vld [vmem:[%s1] sm:$0x3]
        %v284 = vld [vmem:[%s252] sm:$0xff]
        %v285 = vld [vmem:[%s252 + $0x8] sm:$0xff]
        %v286 = vld [vmem:[%s252 + $0x10] sm:$0xff]
        %v287 = vld [vmem:[%s252 + $0x18] sm:$0xff]
        %v288 = vld [vmem:[%s252 + $0x20] sm:$0xff]
        %v289 = vld [vmem:[%s252 + $0x28] sm:$0xff]
        %v290 = vld [vmem:[%s252 + $0x30] sm:$0xff]
        %v291 = vld [vmem:[%s252 + $0x38] sm:$0xff]
        %v292 = vld [vmem:[%s252 + $0x40] sm:$0xff]
        %v293 = vld [vmem:[%s252 + $0x48] sm:$0xff]
        %v294 = vld [vmem:[%s252 + $0x50] sm:$0xff]
        %v295 = vld [vmem:[%s252 + $0x58] sm:$0xff]
        %v296 = vld [vmem:[%s252 + $0x60] sm:$0xff]
        %v297 = vld [vmem:[%s252 + $0x68] sm:$0xff]
        %v298 = vld [vmem:[%s252 + $0x70] sm:$0xff]
        %v299 = vld [vmem:[%s252 + $0x78] sm:$0xff]
        %v300 = vld [vmem:[%s252 + $0x80] sm:$0xff]
        %v301 = vld [vmem:[%s252 + $0x88] sm:$0xff]
        %v302 = vld [vmem:[%s252 + $0x90] sm:$0xff]
        %v303 = vld [vmem:[%s252 + $0x98] sm:$0xff]
        %v304 = vld [vmem:[%s252 + $0xa0] sm:$0xff]
        %v305 = vld [vmem:[%s252 + $0xa8] sm:$0xff]
        %v306 = vld [vmem:[%s252 + $0xb0] sm:$0xff]
        %v307 = vld [vmem:[%s252 + $0xb8] sm:$0xff]
        %v308 = vld [vmem:[%s252 + $0xc0] sm:$0x33]
        %v309 = vld [vmem:[%s252 + $0xc8] sm:$0x33]
        %v310 = vld [vmem:[%s252 + $0xd0] sm:$0x33]
        %v311 = vld [vmem:[%s252 + $0xd8] sm:$0x33]
        %v312 = vld [vmem:[%s252 + $0xe0] sm:$0x33]
        %v313 = vld [vmem:[%s252 + $0xe8] sm:$0x33]
        %v314 = vld [vmem:[%s252 + $0xf0] sm:$0x33]
        %v315 = vld [vmem:[%s252 + $0xf8] sm:$0x33]
        %v348 = vunpack.c.l.b16 %v284
        %v349 = vunpack.c.h.b16 %v284
        %v350 = vunpack.c.l.b16 %v285
        %v351 = vunpack.c.h.b16 %v285
        %v352 = vunpack.c.l.b16 %v286
        %v353 = vunpack.c.h.b16 %v286
        %v354 = vunpack.c.l.b16 %v287
        %v355 = vunpack.c.h.b16 %v287
        %v356 = vunpack.c.l.b16 %v288
        %v357 = vunpack.c.h.b16 %v288
        %v358 = vunpack.c.l.b16 %v289
        %v359 = vunpack.c.h.b16 %v289
        %v360 = vunpack.c.l.b16 %v290
        %v361 = vunpack.c.h.b16 %v290
        %v362 = vunpack.c.l.b16 %v291
        %v363 = vunpack.c.h.b16 %v291
        %v364 = vunpack.c.l.b16 %v292
        %v365 = vunpack.c.h.b16 %v292
        %v366 = vunpack.c.l.b16 %v293
        %v367 = vunpack.c.h.b16 %v293
        %v368 = vunpack.c.l.b16 %v294
        %v369 = vunpack.c.h.b16 %v294
        %v370 = vunpack.c.l.b16 %v295
        %v371 = vunpack.c.h.b16 %v295
        %v372 = vunpack.c.l.b16 %v296
        %v373 = vunpack.c.h.b16 %v296
        %v374 = vunpack.c.l.b16 %v297
        %v375 = vunpack.c.h.b16 %v297
        %v376 = vunpack.c.l.b16 %v298
        %v377 = vunpack.c.h.b16 %v298
        %v378 = vunpack.c.l.b16 %v299
        %v379 = vunpack.c.h.b16 %v299
        %v380 = vunpack.c.l.b16 %v300
        %v381 = vunpack.c.h.b16 %v300
        %v382 = vunpack.c.l.b16 %v301
        %v383 = vunpack.c.h.b16 %v301
        %v384 = vunpack.c.l.b16 %v302
        %v385 = vunpack.c.h.b16 %v302
        %v386 = vunpack.c.l.b16 %v303
        %v387 = vunpack.c.h.b16 %v303
        %v388 = vunpack.c.l.b16 %v304
        %v389 = vunpack.c.h.b16 %v304
        %v390 = vunpack.c.l.b16 %v305
        %v391 = vunpack.c.h.b16 %v305
        %v392 = vunpack.c.l.b16 %v306
        %v393 = vunpack.c.h.b16 %v306
        %v394 = vunpack.c.l.b16 %v307
        %v395 = vunpack.c.h.b16 %v307
        %v396 = vunpack.c.l.b16 %v308
        %v397 = vunpack.c.h.b16 %v308
        %v398 = vunpack.c.l.b16 %v309
        %v399 = vunpack.c.h.b16 %v309
        %v400 = vunpack.c.l.b16 %v310
        %v401 = vunpack.c.h.b16 %v310
        %v402 = vunpack.c.l.b16 %v311
        %v403 = vunpack.c.h.b16 %v311
        %v404 = vunpack.c.l.b16 %v312
        %v405 = vunpack.c.h.b16 %v312
        %v406 = vunpack.c.l.b16 %v313
        %v407 = vunpack.c.h.b16 %v313
        %v408 = vunpack.c.l.b16 %v314
        %v409 = vunpack.c.h.b16 %v314
        %v410 = vunpack.c.l.b16 %v315
        %v411 = vunpack.c.h.b16 %v315
        %v412 = vpack.c.b16 %v364, %v348
        %v413 = vpack.c.b16 %v365, %v349
        %v414 = vpack.c.b16 %v366, %v350
        %v415 = vpack.c.b16 %v367, %v351
        %v416 = vpack.c.b16 %v368, %v352
        %v417 = vpack.c.b16 %v369, %v353
        %v418 = vpack.c.b16 %v370, %v354
        %v419 = vpack.c.b16 %v371, %v355
        %v420 = vpack.c.b16 %v372, %v356
        %v421 = vpack.c.b16 %v373, %v357
        %v422 = vpack.c.b16 %v374, %v358
        %v423 = vpack.c.b16 %v375, %v359
        %v424 = vpack.c.b16 %v376, %v360
        %v425 = vpack.c.b16 %v377, %v361
        %v426 = vpack.c.b16 %v378, %v362
        %v427 = vpack.c.b16 %v379, %v363
        %v428 = vpack.c.b16 %v396, %v380
        %v429 = vpack.c.b16 %v397, %v381
        %v430 = vpack.c.b16 %v398, %v382
        %v431 = vpack.c.b16 %v399, %v383
        %v432 = vpack.c.b16 %v400, %v384
        %v433 = vpack.c.b16 %v401, %v385
        %v434 = vpack.c.b16 %v402, %v386
        %v435 = vpack.c.b16 %v403, %v387
        %v436 = vpack.c.b16 %v404, %v388
        %v437 = vpack.c.b16 %v405, %v389
        %v438 = vpack.c.b16 %v406, %v390
        %v439 = vpack.c.b16 %v407, %v391
        %v440 = vpack.c.b16 %v408, %v392
        %v441 = vpack.c.b16 %v409, %v393
        %v442 = vpack.c.b16 %v410, %v394
        %v443 = vpack.c.b16 %v411, %v395
        %vm460 = vcmask 220160
        %v462 = vsel %vm460, %v283, 0
        %vm464 = vcmask 1044480
        %vm465 = vcmask 1045504
        %v466 = vsel %vm464, 4294967295, 65535
        %v467 = vsel %vm465, %v466, 0
        %v469 = vand.u32 %v428, %v467
        %v472 = vand.u32 %v429, %v467
        %v475 = vand.u32 %v430, %v467
        %v478 = vand.u32 %v431, %v467
        %v481 = vand.u32 %v432, %v467
        %v484 = vand.u32 %v433, %v467
        %v487 = vand.u32 %v434, %v467
        %v490 = vand.u32 %v435, %v467
        %v493 = vand.u32 %v436, %v467
        %v496 = vand.u32 %v437, %v467
        %v499 = vand.u32 %v438, %v467
        %v502 = vand.u32 %v439, %v467
        %v505 = vand.u32 %v440, %v467
        %v508 = vand.u32 %v441, %v467
        %v511 = vand.u32 %v442, %v467
        %v514 = vand.u32 %v443, %v467
        %516 = vmatprep.subr.bf16.mxu0 %v413
        %517 = vmatpush1.bf16.msra.mxu0 %v412
        %518 = vmatprep.subr.bf16.mxu0 %v472
        %519 = vmatpush1.bf16.msra.mxu0 %v469
        %520 = vmatprep.subr.bf16.mxu0 0
        %521 = vmatpush1.bf16.msra.mxu0 0
        %522 = vmatprep.subr.bf16.mxu0 0
        %523 = vmatpush1.bf16.msra.mxu0 0
        %524 = vmatprep.subr.bf16.mxu0 0
        %525 = vmatpush1.bf16.msra.mxu0 0
        %526 = vmatprep.subr.bf16.mxu0 0
        %527 = vmatpush1.bf16.msra.mxu0 0
        %528 = vmatprep.subr.bf16.mxu0 0
        %529 = vmatpush1.bf16.msra.mxu0 0
        %530 = vmatprep.subr.bf16.mxu0 0
        %531 = vmatpush1.bf16.msra.mxu0 0
        %532 = vmatprep.subr.bf16.mxu0 0
        %533 = vmatpush1.bf16.msra.mxu0 0
        %534 = vmatprep.subr.bf16.mxu0 0
        %535 = vmatpush1.bf16.msra.mxu0 0
        %536 = vmatprep.subr.bf16.mxu0 0
        %537 = vmatpush1.bf16.msra.mxu0 0
        %538 = vmatprep.subr.bf16.mxu0 0
        %539 = vmatpush1.bf16.msra.mxu0 0
        %540 = vmatprep.subr.bf16.mxu0 0
        %541 = vmatpush1.bf16.msra.mxu0 0
        %542 = vmatprep.subr.bf16.mxu0 0
        %543 = vmatpush1.bf16.msra.mxu0 0
        %544 = vmatprep.subr.bf16.mxu0 0
        %545 = vmatpush1.bf16.msra.mxu0 0
        %546 = vmatprep.subr.bf16.mxu0 0
        %547 = vmatpush1.bf16.msra.mxu0 0
        %548 = vmatprep.mubr.bf16.mxu0 0
        %549 = vmatmul.mubr.bf16.gmra.mrb[0].mxu0 %v462
        %v550 = vpop.f32.mrb[0].mxu0
        %v551 = vadd.f32 0.0, %v550
        %v552 = vpop.f32.mrb[0].mxu0
        %v553 = vadd.f32 0.0, %v552
        %v554 = vpop.f32.mrb[0].mxu0
        %v555 = vpop.f32.mrb[0].mxu0
        %556 = vdwg.mxu0
        %557 = vmatprep.subr.bf16.mxu0 %v415
        %558 = vmatpush1.bf16.msra.mxu0 %v414
        %559 = vmatprep.subr.bf16.mxu0 %v478
        %560 = vmatpush1.bf16.msra.mxu0 %v475
        %561 = vmatprep.subr.bf16.mxu0 0
        %562 = vmatpush1.bf16.msra.mxu0 0
        %563 = vmatprep.subr.bf16.mxu0 0
        %564 = vmatpush1.bf16.msra.mxu0 0
        %565 = vmatprep.subr.bf16.mxu0 0
        %566 = vmatpush1.bf16.msra.mxu0 0
        %567 = vmatprep.subr.bf16.mxu0 0
        %568 = vmatpush1.bf16.msra.mxu0 0
        %569 = vmatprep.subr.bf16.mxu0 0
        %570 = vmatpush1.bf16.msra.mxu0 0
        %571 = vmatprep.subr.bf16.mxu0 0
        %572 = vmatpush1.bf16.msra.mxu0 0
        %573 = vmatprep.subr.bf16.mxu0 0
        %574 = vmatpush1.bf16.msra.mxu0 0
        %575 = vmatprep.subr.bf16.mxu0 0
        %576 = vmatpush1.bf16.msra.mxu0 0
        %577 = vmatprep.subr.bf16.mxu0 0
        %578 = vmatpush1.bf16.msra.mxu0 0
        %579 = vmatprep.subr.bf16.mxu0 0
        %580 = vmatpush1.bf16.msra.mxu0 0
        %581 = vmatprep.subr.bf16.mxu0 0
        %582 = vmatpush1.bf16.msra.mxu0 0
        %583 = vmatprep.subr.bf16.mxu0 0
        %584 = vmatpush1.bf16.msra.mxu0 0
        %585 = vmatprep.subr.bf16.mxu0 0
        %586 = vmatpush1.bf16.msra.mxu0 0
        %587 = vmatprep.subr.bf16.mxu0 0
        %588 = vmatpush1.bf16.msra.mxu0 0
        %589 = vmatprep.mubr.bf16.mxu0 0
        %590 = vmatmul.mubr.bf16.gmra.mrb[0].mxu0 %v462
        %v591 = vpop.f32.mrb[0].mxu0
        %v592 = vadd.f32 0.0, %v591
        %v593 = vpop.f32.mrb[0].mxu0
        %v594 = vadd.f32 0.0, %v593
        %v595 = vpop.f32.mrb[0].mxu0
        %v596 = vpop.f32.mrb[0].mxu0
        %597 = vdwg.mxu0
        %598 = vmatprep.subr.bf16.mxu0 %v417
        %599 = vmatpush1.bf16.msra.mxu0 %v416
        %600 = vmatprep.subr.bf16.mxu0 %v484
        %601 = vmatpush1.bf16.msra.mxu0 %v481
        %602 = vmatprep.subr.bf16.mxu0 0
        %603 = vmatpush1.bf16.msra.mxu0 0
        %604 = vmatprep.subr.bf16.mxu0 0
        %605 = vmatpush1.bf16.msra.mxu0 0
        %606 = vmatprep.subr.bf16.mxu0 0
        %607 = vmatpush1.bf16.msra.mxu0 0
        %608 = vmatprep.subr.bf16.mxu0 0
        %609 = vmatpush1.bf16.msra.mxu0 0
        %610 = vmatprep.subr.bf16.mxu0 0
        %611 = vmatpush1.bf16.msra.mxu0 0
        %612 = vmatprep.subr.bf16.mxu0 0
        %613 = vmatpush1.bf16.msra.mxu0 0
        %614 = vmatprep.subr.bf16.mxu0 0
        %615 = vmatpush1.bf16.msra.mxu0 0
        %616 = vmatprep.subr.bf16.mxu0 0
        %617 = vmatpush1.bf16.msra.mxu0 0
        %618 = vmatprep.subr.bf16.mxu0 0
        %619 = vmatpush1.bf16.msra.mxu0 0
        %620 = vmatprep.subr.bf16.mxu0 0
        %621 = vmatpush1.bf16.msra.mxu0 0
        %622 = vmatprep.subr.bf16.mxu0 0
        %623 = vmatpush1.bf16.msra.mxu0 0
        %624 = vmatprep.subr.bf16.mxu0 0
        %625 = vmatpush1.bf16.msra.mxu0 0
        %626 = vmatprep.subr.bf16.mxu0 0
        %627 = vmatpush1.bf16.msra.mxu0 0
        %628 = vmatprep.subr.bf16.mxu0 0
        %629 = vmatpush1.bf16.msra.mxu0 0
        %630 = vmatprep.mubr.bf16.mxu0 0
        %631 = vmatmul.mubr.bf16.gmra.mrb[0].mxu0 %v462
        %v632 = vpop.f32.mrb[0].mxu0
        %v633 = vadd.f32 0.0, %v632
        %v634 = vpop.f32.mrb[0].mxu0
        %v635 = vadd.f32 0.0, %v634
        %v636 = vpop.f32.mrb[0].mxu0
        %v637 = vpop.f32.mrb[0].mxu0
        %638 = vdwg.mxu0
        %639 = vmatprep.subr.bf16.mxu0 %v419
        %640 = vmatpush1.bf16.msra.mxu0 %v418
        %641 = vmatprep.subr.bf16.mxu0 %v490
        %642 = vmatpush1.bf16.msra.mxu0 %v487
        %643 = vmatprep.subr.bf16.mxu0 0
        %644 = vmatpush1.bf16.msra.mxu0 0
        %645 = vmatprep.subr.bf16.mxu0 0
        %646 = vmatpush1.bf16.msra.mxu0 0
        %647 = vmatprep.subr.bf16.mxu0 0
        %648 = vmatpush1.bf16.msra.mxu0 0
        %649 = vmatprep.subr.bf16.mxu0 0
        %650 = vmatpush1.bf16.msra.mxu0 0
        %651 = vmatprep.subr.bf16.mxu0 0
        %652 = vmatpush1.bf16.msra.mxu0 0
        %653 = vmatprep.subr.bf16.mxu0 0
        %654 = vmatpush1.bf16.msra.mxu0 0
        %655 = vmatprep.subr.bf16.mxu0 0
        %656 = vmatpush1.bf16.msra.mxu0 0
        %657 = vmatprep.subr.bf16.mxu0 0
        %658 = vmatpush1.bf16.msra.mxu0 0
        %659 = vmatprep.subr.bf16.mxu0 0
        %660 = vmatpush1.bf16.msra.mxu0 0
        %661 = vmatprep.subr.bf16.mxu0 0
        %662 = vmatpush1.bf16.msra.mxu0 0
        %663 = vmatprep.subr.bf16.mxu0 0
        %664 = vmatpush1.bf16.msra.mxu0 0
        %665 = vmatprep.subr.bf16.mxu0 0
        %666 = vmatpush1.bf16.msra.mxu0 0
        %667 = vmatprep.subr.bf16.mxu0 0
        %668 = vmatpush1.bf16.msra.mxu0 0
        %669 = vmatprep.subr.bf16.mxu0 0
        %670 = vmatpush1.bf16.msra.mxu0 0
        %671 = vmatprep.mubr.bf16.mxu0 0
        %672 = vmatmul.mubr.bf16.gmra.mrb[0].mxu0 %v462
        %v673 = vpop.f32.mrb[0].mxu0
        %v674 = vadd.f32 0.0, %v673
        %v675 = vpop.f32.mrb[0].mxu0
        %v676 = vadd.f32 0.0, %v675
        %v677 = vpop.f32.mrb[0].mxu0
        %v678 = vpop.f32.mrb[0].mxu0
        %679 = vdwg.mxu0
        %680 = vmatprep.subr.bf16.mxu0 %v421
        %681 = vmatpush1.bf16.msra.mxu0 %v420
        %682 = vmatprep.subr.bf16.mxu0 %v496
        %683 = vmatpush1.bf16.msra.mxu0 %v493
        %684 = vmatprep.subr.bf16.mxu0 0
        %685 = vmatpush1.bf16.msra.mxu0 0
        %686 = vmatprep.subr.bf16.mxu0 0
        %687 = vmatpush1.bf16.msra.mxu0 0
        %688 = vmatprep.subr.bf16.mxu0 0
        %689 = vmatpush1.bf16.msra.mxu0 0
        %690 = vmatprep.subr.bf16.mxu0 0
        %691 = vmatpush1.bf16.msra.mxu0 0
        %692 = vmatprep.subr.bf16.mxu0 0
        %693 = vmatpush1.bf16.msra.mxu0 0
        %694 = vmatprep.subr.bf16.mxu0 0
        %695 = vmatpush1.bf16.msra.mxu0 0
        %696 = vmatprep.subr.bf16.mxu0 0
        %697 = vmatpush1.bf16.msra.mxu0 0
        %698 = vmatprep.subr.bf16.mxu0 0
        %699 = vmatpush1.bf16.msra.mxu0 0
        %700 = vmatprep.subr.bf16.mxu0 0
        %701 = vmatpush1.bf16.msra.mxu0 0
        %702 = vmatprep.subr.bf16.mxu0 0
        %703 = vmatpush1.bf16.msra.mxu0 0
        %704 = vmatprep.subr.bf16.mxu0 0
        %705 = vmatpush1.bf16.msra.mxu0 0
        %706 = vmatprep.subr.bf16.mxu0 0
        %707 = vmatpush1.bf16.msra.mxu0 0
        %708 = vmatprep.subr.bf16.mxu0 0
        %709 = vmatpush1.bf16.msra.mxu0 0
        %710 = vmatprep.subr.bf16.mxu0 0
        %711 = vmatpush1.bf16.msra.mxu0 0
        %712 = vmatprep.mubr.bf16.mxu0 0
        %713 = vmatmul.mubr.bf16.gmra.mrb[0].mxu0 %v462
        %v714 = vpop.f32.mrb[0].mxu0
        %v715 = vadd.f32 0.0, %v714
        %v716 = vpop.f32.mrb[0].mxu0
        %v717 = vadd.f32 0.0, %v716
        %v718 = vpop.f32.mrb[0].mxu0
        %v719 = vpop.f32.mrb[0].mxu0
        %720 = vdwg.mxu0
        %721 = vmatprep.subr.bf16.mxu0 %v423
        %722 = vmatpush1.bf16.msra.mxu0 %v422
        %723 = vmatprep.subr.bf16.mxu0 %v502
        %724 = vmatpush1.bf16.msra.mxu0 %v499
        %725 = vmatprep.subr.bf16.mxu0 0
        %726 = vmatpush1.bf16.msra.mxu0 0
        %727 = vmatprep.subr.bf16.mxu0 0
        %728 = vmatpush1.bf16.msra.mxu0 0
        %729 = vmatprep.subr.bf16.mxu0 0
        %730 = vmatpush1.bf16.msra.mxu0 0
        %731 = vmatprep.subr.bf16.mxu0 0
        %732 = vmatpush1.bf16.msra.mxu0 0
        %733 = vmatprep.subr.bf16.mxu0 0
        %734 = vmatpush1.bf16.msra.mxu0 0
        %735 = vmatprep.subr.bf16.mxu0 0
        %736 = vmatpush1.bf16.msra.mxu0 0
        %737 = vmatprep.subr.bf16.mxu0 0
        %738 = vmatpush1.bf16.msra.mxu0 0
        %739 = vmatprep.subr.bf16.mxu0 0
        %740 = vmatpush1.bf16.msra.mxu0 0
        %741 = vmatprep.subr.bf16.mxu0 0
        %742 = vmatpush1.bf16.msra.mxu0 0
        %743 = vmatprep.subr.bf16.mxu0 0
        %744 = vmatpush1.bf16.msra.mxu0 0
        %745 = vmatprep.subr.bf16.mxu0 0
        %746 = vmatpush1.bf16.msra.mxu0 0
        %747 = vmatprep.subr.bf16.mxu0 0
        %748 = vmatpush1.bf16.msra.mxu0 0
        %749 = vmatprep.subr.bf16.mxu0 0
        %750 = vmatpush1.bf16.msra.mxu0 0
        %751 = vmatprep.subr.bf16.mxu0 0
        %752 = vmatpush1.bf16.msra.mxu0 0
        %753 = vmatprep.mubr.bf16.mxu0 0
        %754 = vmatmul.mubr.bf16.gmra.mrb[0].mxu0 %v462
        %v755 = vpop.f32.mrb[0].mxu0
        %v756 = vadd.f32 0.0, %v755
        %v757 = vpop.f32.mrb[0].mxu0
        %v758 = vadd.f32 0.0, %v757
        %v759 = vpop.f32.mrb[0].mxu0
        %v760 = vpop.f32.mrb[0].mxu0
        %761 = vdwg.mxu0
        %762 = vmatprep.subr.bf16.mxu0 %v425
        %763 = vmatpush1.bf16.msra.mxu0 %v424
        %764 = vmatprep.subr.bf16.mxu0 %v508
        %765 = vmatpush1.bf16.msra.mxu0 %v505
        %766 = vmatprep.subr.bf16.mxu0 0
        %767 = vmatpush1.bf16.msra.mxu0 0
        %768 = vmatprep.subr.bf16.mxu0 0
        %769 = vmatpush1.bf16.msra.mxu0 0
        %770 = vmatprep.subr.bf16.mxu0 0
        %771 = vmatpush1.bf16.msra.mxu0 0
        %772 = vmatprep.subr.bf16.mxu0 0
        %773 = vmatpush1.bf16.msra.mxu0 0
        %774 = vmatprep.subr.bf16.mxu0 0
        %775 = vmatpush1.bf16.msra.mxu0 0
        %776 = vmatprep.subr.bf16.mxu0 0
        %777 = vmatpush1.bf16.msra.mxu0 0
        %778 = vmatprep.subr.bf16.mxu0 0
        %779 = vmatpush1.bf16.msra.mxu0 0
        %780 = vmatprep.subr.bf16.mxu0 0
        %781 = vmatpush1.bf16.msra.mxu0 0
        %782 = vmatprep.subr.bf16.mxu0 0
        %783 = vmatpush1.bf16.msra.mxu0 0
        %784 = vmatprep.subr.bf16.mxu0 0
        %785 = vmatpush1.bf16.msra.mxu0 0
        %786 = vmatprep.subr.bf16.mxu0 0
        %787 = vmatpush1.bf16.msra.mxu0 0
        %788 = vmatprep.subr.bf16.mxu0 0
        %789 = vmatpush1.bf16.msra.mxu0 0
        %790 = vmatprep.subr.bf16.mxu0 0
        %791 = vmatpush1.bf16.msra.mxu0 0
        %792 = vmatprep.subr.bf16.mxu0 0
        %793 = vmatpush1.bf16.msra.mxu0 0
        %794 = vmatprep.mubr.bf16.mxu0 0
        %795 = vmatmul.mubr.bf16.gmra.mrb[0].mxu0 %v462
        %v796 = vpop.f32.mrb[0].mxu0
        %v797 = vadd.f32 0.0, %v796
        %v798 = vpop.f32.mrb[0].mxu0
        %v799 = vadd.f32 0.0, %v798
        %v800 = vpop.f32.mrb[0].mxu0
        %v801 = vpop.f32.mrb[0].mxu0
        %802 = vdwg.mxu0
        %803 = vmatprep.subr.bf16.mxu0 %v427
        %804 = vmatpush1.bf16.msra.mxu0 %v426
        %805 = vmatprep.subr.bf16.mxu0 %v514
        %806 = vmatpush1.bf16.msra.mxu0 %v511
        %807 = vmatprep.subr.bf16.mxu0 0
        %808 = vmatpush1.bf16.msra.mxu0 0
        %809 = vmatprep.subr.bf16.mxu0 0
        %810 = vmatpush1.bf16.msra.mxu0 0
        %811 = vmatprep.subr.bf16.mxu0 0
        %812 = vmatpush1.bf16.msra.mxu0 0
        %813 = vmatprep.subr.bf16.mxu0 0
        %814 = vmatpush1.bf16.msra.mxu0 0
        %815 = vmatprep.subr.bf16.mxu0 0
        %816 = vmatpush1.bf16.msra.mxu0 0
        %817 = vmatprep.subr.bf16.mxu0 0
        %818 = vmatpush1.bf16.msra.mxu0 0
        %819 = vmatprep.subr.bf16.mxu0 0
        %820 = vmatpush1.bf16.msra.mxu0 0
        %821 = vmatprep.subr.bf16.mxu0 0
        %822 = vmatpush1.bf16.msra.mxu0 0
        %823 = vmatprep.subr.bf16.mxu0 0
        %824 = vmatpush1.bf16.msra.mxu0 0
        %825 = vmatprep.subr.bf16.mxu0 0
        %826 = vmatpush1.bf16.msra.mxu0 0
        %827 = vmatprep.subr.bf16.mxu0 0
        %828 = vmatpush1.bf16.msra.mxu0 0
        %829 = vmatprep.subr.bf16.mxu0 0
        %830 = vmatpush1.bf16.msra.mxu0 0
        %831 = vmatprep.subr.bf16.mxu0 0
        %832 = vmatpush1.bf16.msra.mxu0 0
        %833 = vmatprep.subr.bf16.mxu0 0
        %834 = vmatpush1.bf16.msra.mxu0 0
        %835 = vmatprep.mubr.bf16.mxu0 0
        %836 = vmatmul.mubr.bf16.gmra.mrb[0].mxu0 %v462
        %v837 = vpop.f32.mrb[0].mxu0
        %v838 = vadd.f32 0.0, %v837
        %v839 = vpop.f32.mrb[0].mxu0
        %v840 = vadd.f32 0.0, %v839
        %v841 = vpop.f32.mrb[0].mxu0
        %v842 = vpop.f32.mrb[0].mxu0
        %843 = vdwg.mxu0
        %v844 = vld [vmem:[%s2] sm:$0xf]
        %846 = vset.pattern.permute.xlu0 0
        %847 = vperm.xlu0 %846, %v844
        %v848 = vpop.permute.xlu0 %847
        %v850 = vmul.f32 %v551, %v848
        %v851 = vmul.f32 %v553, %v848
        %v852 = vmul.f32 %v592, %v848
        %v853 = vmul.f32 %v594, %v848
        %v854 = vmul.f32 %v633, %v848
        %v855 = vmul.f32 %v635, %v848
        %v856 = vmul.f32 %v674, %v848
        %v857 = vmul.f32 %v676, %v848
        %v858 = vmul.f32 %v715, %v848
        %v859 = vmul.f32 %v717, %v848
        %v860 = vmul.f32 %v756, %v848
        %v861 = vmul.f32 %v758, %v848
        %v862 = vmul.f32 %v797, %v848
        %v863 = vmul.f32 %v799, %v848
        %v864 = vmul.f32 %v838, %v848
        %v865 = vmul.f32 %v840, %v848
        %v866 = vld [vmem:[%s3] sm:$0xf]
        %868 = vset.pattern.permute.xlu0 0
        %869 = vperm.xlu0 %868, %v866
        %v870 = vpop.permute.xlu0 %869
        %v872 = vadd.f32 %v850, %v870
        %v873 = vadd.f32 %v851, %v870
        %v874 = vadd.f32 %v852, %v870
        %v875 = vadd.f32 %v853, %v870
        %v876 = vadd.f32 %v854, %v870
        %v877 = vadd.f32 %v855, %v870
        %v878 = vadd.f32 %v856, %v870
        %v879 = vadd.f32 %v857, %v870
        %v880 = vadd.f32 %v858, %v870
        %v881 = vadd.f32 %v859, %v870
        %v882 = vadd.f32 %v860, %v870
        %v883 = vadd.f32 %v861, %v870
        %v884 = vadd.f32 %v862, %v870
        %v885 = vadd.f32 %v863, %v870
        %v886 = vadd.f32 %v864, %v870
        %v887 = vadd.f32 %v865, %v870
        %v888 = vmax.f32 %v872, 0.0
        %v889 = vmax.f32 %v873, 0.0
        %v890 = vmax.f32 %v874, 0.0
        %v891 = vmax.f32 %v875, 0.0
        %v892 = vmax.f32 %v876, 0.0
        %v893 = vmax.f32 %v877, 0.0
        %v894 = vmax.f32 %v878, 0.0
        %v895 = vmax.f32 %v879, 0.0
        %v896 = vmax.f32 %v880, 0.0
        %v897 = vmax.f32 %v881, 0.0
        %v898 = vmax.f32 %v882, 0.0
        %v899 = vmax.f32 %v883, 0.0
        %v900 = vmax.f32 %v884, 0.0
        %v901 = vmax.f32 %v885, 0.0
        %v902 = vmax.f32 %v886, 0.0
        %v903 = vmax.f32 %v887, 0.0
        %v920 = vcombine.low %v888, %v889
        %v921 = vcombine.low %v890, %v891
        %v922 = vcombine.low %v892, %v893
        %v923 = vcombine.low %v894, %v895
        %v924 = vcombine.low %v896, %v897
        %v925 = vcombine.low %v898, %v899
        %v926 = vcombine.low %v900, %v901
        %v927 = vcombine.low %v902, %v903
        %936 = vst [vmem:[%s280] sm:$0xff] %v920
        %937 = vst [vmem:[%s280 + $0x8] sm:$0xff] %v921
        %938 = vst [vmem:[%s280 + $0x10] sm:$0xff] %v922
        %939 = vst [vmem:[%s280 + $0x18] sm:$0xff] %v923
        %940 = vst [vmem:[%s280 + $0x20] sm:$0xff] %v924
        %941 = vst [vmem:[%s280 + $0x28] sm:$0xff] %v925
        %942 = vst [vmem:[%s280 + $0x30] sm:$0xff] %v926
        %943 = vst [vmem:[%s280 + $0x38] sm:$0xff] %v927
        %s944 = smul.u32 16, %s15
        %p945 = scmp.lt.s32.totalorder %s944, 63
        %s946 = scalar_select %p945, %s944, 63
        %s947 = smul.addr %s946, 4
        %s948 = scalar_lea.vmem %s4, %s947
        // Predicated region
        $region60: #{heterogeneous_resnet_forward.10} parent=54 // pred_check
          %p949 = pneg %p122
        $region61: #{heterogeneous_resnet_forward.10} parent=54 // pred_check_branch
          %951 = sbr.rel (%p949) target = $region63
        $region62: #{heterogeneous_resnet_forward.10} parent=54 // pred_region
          %s952 = smul.u32 16, %s15
        $region63: #{heterogeneous_resnet_forward.10} parent=54 // pred_fallthru
          _
      $region55: #{heterogeneous_resnet_forward.10} parent=5 // pred_fallthru
        _
      %p953 = scmp.le.s32.totalorder 2, %s10
      // Predicated region
      $region64: #{heterogeneous_resnet_forward.10} parent=5 // pred_check
        %p954 = pneg %p953
      $region65: #{heterogeneous_resnet_forward.10} parent=5 // pred_check_branch
        %956 = sbr.rel (%p954) target = $region67
      $region66: #{heterogeneous_resnet_forward.10} parent=5 // pred_region
        %s957 = ssub.s32 %s10, 2
        // Predicated region
        $region68: #{heterogeneous_resnet_forward.10} parent=66 // pred_check
          %p958 = pneg %p128
        $region69: #{heterogeneous_resnet_forward.10} parent=66 // pred_check_branch
          %960 = sbr.rel (%p958) target = $region71
        $region70: #{heterogeneous_resnet_forward.10} parent=66 // pred_region
          %s961 = smul.u32 16, %s16
          %p962 = scmp.lt.s32.totalorder %s961, 63
          %s963 = scalar_select %p962, %s961, 63
          %s964 = smul.addr %s963, 4
          %s965 = scalar_lea.vmem %s4, %s964
        $region71: #{heterogeneous_resnet_forward.10} parent=66 // pred_fallthru
          _
      $region67: #{heterogeneous_resnet_forward.10} parent=5 // pred_fallthru
        _
    $region6: #{heterogeneous_resnet_forward.10} parent=1 // loop_footer
      %s14 = sadd.s32 1, %s10
    $region7: #{heterogeneous_resnet_forward.10} parent=1 // loop_footer_branch
      %9 = sbr.rel target = $region3
    $region8: #{heterogeneous_resnet_forward.10} parent=1 // loop_exit
      _

// kernel: heterogeneous_resnet_forward.11
$region0: #{heterogeneous_resnet_forward.11}
  #allocation0 [shape = 'u32[]', space=smem, size = 0x4, offset = 0x4, fixed_abs, tag = 'smem constant byte address 0x4 - core index']
  #allocation1 [shape = 'u32[144,128]{1,0:T(1,128)}', space=vmem, size = 0x12000, scoped, tag = 'internal scratch']
  %s0 = inlined_call_operand.vmem [shape: bf16[108,1024], index: 0, kind: input, shape index: {}]
  %s1 = inlined_call_operand.vmem [shape: bf16[4,108], index: 1, kind: input, shape index: {}]
  %s2 = inlined_call_operand.vmem [shape: f32[4,1], index: 2, kind: input, shape index: {}]
  %s3 = inlined_call_operand.vmem [shape: f32[4,1], index: 3, kind: input, shape index: {}]
  %s4 = inlined_call_operand.vmem [shape: bf16[4,1024], index: 4, kind: output, shape index: {}]
  %s5 = sld [smem:[#allocation0]]
  $region26: #{heterogeneous_resnet_forward.11} parent=0
    _
  %s7 = ssub.s32 1, %s5
  %s8 = scalar_select 0, %s7, %s5
  // Predicated region
  $region2: #{heterogeneous_resnet_forward.11} parent=0 // pred_check
    _
  $region3: #{heterogeneous_resnet_forward.11} parent=0 // pred_check_branch
    %10 = sbr.rel (0) target = $region5
  $region4: #{heterogeneous_resnet_forward.11} parent=0 // pred_region
    _
  $region5: #{heterogeneous_resnet_forward.11} parent=0 // pred_fallthru
    _
  // Predicated region
  $region6: #{heterogeneous_resnet_forward.11} parent=0 // pred_check
    _
  $region7: #{heterogeneous_resnet_forward.11} parent=0 // pred_check_branch
    %12 = sbr.rel (0) target = $region9
  $region8: #{heterogeneous_resnet_forward.11} parent=0 // pred_region
    _
  $region9: #{heterogeneous_resnet_forward.11} parent=0 // pred_fallthru
    _
  // Predicated region
  $region10: #{heterogeneous_resnet_forward.11} parent=0 // pred_check
    _
  $region11: #{heterogeneous_resnet_forward.11} parent=0 // pred_check_branch
    %14 = sbr.rel (0) target = $region13
  $region12: #{heterogeneous_resnet_forward.11} parent=0 // pred_region
    _
  $region13: #{heterogeneous_resnet_forward.11} parent=0 // pred_fallthru
    _
  // Predicated region
  $region14: #{heterogeneous_resnet_forward.11} parent=0 // pred_check
    _
  $region15: #{heterogeneous_resnet_forward.11} parent=0 // pred_check_branch
    %16 = sbr.rel (0) target = $region17
  $region16: #{heterogeneous_resnet_forward.11} parent=0 // pred_region
    _
  $region17: #{heterogeneous_resnet_forward.11} parent=0 // pred_fallthru
    _
  %v18 = vld [vmem:[%s1] sm:$0x3]
  %v19 = vld [vmem:[%s0] sm:$0xff]
  %v20 = vld [vmem:[%s0 + $0x8] sm:$0xff]
  %v21 = vld [vmem:[%s0 + $0x10] sm:$0xff]
  %v22 = vld [vmem:[%s0 + $0x18] sm:$0xff]
  %v23 = vld [vmem:[%s0 + $0x20] sm:$0xff]
  %v24 = vld [vmem:[%s0 + $0x28] sm:$0xff]
  %v25 = vld [vmem:[%s0 + $0x30] sm:$0xff]
  %v26 = vld [vmem:[%s0 + $0x38] sm:$0xff]
  %v27 = vld [vmem:[%s0 + $0x40] sm:$0xff]
  %v28 = vld [vmem:[%s0 + $0x48] sm:$0xff]
  %v29 = vld [vmem:[%s0 + $0x50] sm:$0xff]
  %v30 = vld [vmem:[%s0 + $0x58] sm:$0xff]
  %v31 = vld [vmem:[%s0 + $0x60] sm:$0xff]
  %v32 = vld [vmem:[%s0 + $0x68] sm:$0xff]
  %v33 = vld [vmem:[%s0 + $0x70] sm:$0xff]
  %v34 = vld [vmem:[%s0 + $0x78] sm:$0xff]
  %v35 = vld [vmem:[%s0 + $0x80] sm:$0xff]
  %v36 = vld [vmem:[%s0 + $0x88] sm:$0xff]
  %v37 = vld [vmem:[%s0 + $0x90] sm:$0xff]
  %v38 = vld [vmem:[%s0 + $0x98] sm:$0xff]
  %v39 = vld [vmem:[%s0 + $0xa0] sm:$0xff]
  %v40 = vld [vmem:[%s0 + $0xa8] sm:$0xff]
  %v41 = vld [vmem:[%s0 + $0xb0] sm:$0xff]
  %v42 = vld [vmem:[%s0 + $0xb8] sm:$0xff]
  %v43 = vld [vmem:[%s0 + $0xc0] sm:$0xff]
  %v44 = vld [vmem:[%s0 + $0xc8] sm:$0xff]
  %v45 = vld [vmem:[%s0 + $0xd0] sm:$0xff]
  %v46 = vld [vmem:[%s0 + $0xd8] sm:$0xff]
  %v47 = vld [vmem:[%s0 + $0xe0] sm:$0xff]
  %v48 = vld [vmem:[%s0 + $0xe8] sm:$0xff]
  %v49 = vld [vmem:[%s0 + $0xf0] sm:$0xff]
  %v50 = vld [vmem:[%s0 + $0xf8] sm:$0xff]
  %v51 = vld [vmem:[%s0 + $0x100] sm:$0xff]
  %v52 = vld [vmem:[%s0 + $0x108] sm:$0xff]
  %v53 = vld [vmem:[%s0 + $0x110] sm:$0xff]
  %v54 = vld [vmem:[%s0 + $0x118] sm:$0xff]
  %v55 = vld [vmem:[%s0 + $0x120] sm:$0xff]
  %v56 = vld [vmem:[%s0 + $0x128] sm:$0xff]
  %v57 = vld [vmem:[%s0 + $0x130] sm:$0xff]
  %v58 = vld [vmem:[%s0 + $0x138] sm:$0xff]
  %v59 = vld [vmem:[%s0 + $0x140] sm:$0xff]
  %v60 = vld [vmem:[%s0 + $0x148] sm:$0xff]
  %v61 = vld [vmem:[%s0 + $0x150] sm:$0xff]
  %v62 = vld [vmem:[%s0 + $0x158] sm:$0xff]
  %v63 = vld [vmem:[%s0 + $0x160] sm:$0xff]
  %v64 = vld [vmem:[%s0 + $0x168] sm:$0xff]
  %v65 = vld [vmem:[%s0 + $0x170] sm:$0xff]
  %v66 = vld [vmem:[%s0 + $0x178] sm:$0xff]
  %v67 = vld [vmem:[%s0 + $0x180] sm:$0xff]
  %v68 = vld [vmem:[%s0 + $0x188] sm:$0xff]
  %v69 = vld [vmem:[%s0 + $0x190] sm:$0xff]
  %v70 = vld [vmem:[%s0 + $0x198] sm:$0xff]
  %v71 = vld [vmem:[%s0 + $0x1a0] sm:$0x33]
  %v72 = vld [vmem:[%s0 + $0x1a8] sm:$0x33]
  %v73 = vld [vmem:[%s0 + $0x1b0] sm:$0x33]
  %v74 = vld [vmem:[%s0 + $0x1b8] sm:$0x33]
  %v131 = vunpack.c.l.b16 %v19
  %v132 = vunpack.c.h.b16 %v19
  %v133 = vunpack.c.l.b16 %v20
  %v134 = vunpack.c.h.b16 %v20
  %v135 = vunpack.c.l.b16 %v21
  %v136 = vunpack.c.h.b16 %v21
  %v137 = vunpack.c.l.b16 %v22
  %v138 = vunpack.c.h.b16 %v22
  %v139 = vunpack.c.l.b16 %v23
  %v140 = vunpack.c.h.b16 %v23
  %v141 = vunpack.c.l.b16 %v24
  %v142 = vunpack.c.h.b16 %v24
  %v143 = vunpack.c.l.b16 %v25
  %v144 = vunpack.c.h.b16 %v25
  %v145 = vunpack.c.l.b16 %v26
  %v146 = vunpack.c.h.b16 %v26
  %v147 = vunpack.c.l.b16 %v27
  %v148 = vunpack.c.h.b16 %v27
  %v149 = vunpack.c.l.b16 %v28
  %v150 = vunpack.c.h.b16 %v28
  %v151 = vunpack.c.l.b16 %v29
  %v152 = vunpack.c.h.b16 %v29
  %v153 = vunpack.c.l.b16 %v30
  %v154 = vunpack.c.h.b16 %v30
  %v155 = vunpack.c.l.b16 %v31
  %v156 = vunpack.c.h.b16 %v31
  %v157 = vunpack.c.l.b16 %v32
  %v158 = vunpack.c.h.b16 %v32
  %v159 = vunpack.c.l.b16 %v33
  %v160 = vunpack.c.h.b16 %v33
  %v161 = vunpack.c.l.b16 %v34
  %v162 = vunpack.c.h.b16 %v34
  %v163 = vunpack.c.l.b16 %v35
  %v164 = vunpack.c.h.b16 %v35
  %v165 = vunpack.c.l.b16 %v36
  %v166 = vunpack.c.h.b16 %v36
  %v167 = vunpack.c.l.b16 %v37
  %v168 = vunpack.c.h.b16 %v37
  %v169 = vunpack.c.l.b16 %v38
  %v170 = vunpack.c.h.b16 %v38
  %v171 = vunpack.c.l.b16 %v39
  %v172 = vunpack.c.h.b16 %v39
  %v173 = vunpack.c.l.b16 %v40
  %v174 = vunpack.c.h.b16 %v40
  %v175 = vunpack.c.l.b16 %v41
  %v176 = vunpack.c.h.b16 %v41
  %v177 = vunpack.c.l.b16 %v42
  %v178 = vunpack.c.h.b16 %v42
  %v179 = vunpack.c.l.b16 %v43
  %v180 = vunpack.c.h.b16 %v43
  %v181 = vunpack.c.l.b16 %v44
  %v182 = vunpack.c.h.b16 %v44
  %v183 = vunpack.c.l.b16 %v45
  %v184 = vunpack.c.h.b16 %v45
  %v185 = vunpack.c.l.b16 %v46
  %v186 = vunpack.c.h.b16 %v46
  %v187 = vunpack.c.l.b16 %v47
  %v188 = vunpack.c.h.b16 %v47
  %v189 = vunpack.c.l.b16 %v48
  %v190 = vunpack.c.h.b16 %v48
  %v191 = vunpack.c.l.b16 %v49
  %v192 = vunpack.c.h.b16 %v49
  %v193 = vunpack.c.l.b16 %v50
  %v194 = vunpack.c.h.b16 %v50
  %v195 = vunpack.c.l.b16 %v51
  %v196 = vunpack.c.h.b16 %v51
  %v197 = vunpack.c.l.b16 %v52
  %v198 = vunpack.c.h.b16 %v52
  %v199 = vunpack.c.l.b16 %v53
  %v200 = vunpack.c.h.b16 %v53
  %v201 = vunpack.c.l.b16 %v54
  %v202 = vunpack.c.h.b16 %v54
  %v203 = vunpack.c.l.b16 %v55
  %v204 = vunpack.c.h.b16 %v55
  %v205 = vunpack.c.l.b16 %v56
  %v206 = vunpack.c.h.b16 %v56
  %v207 = vunpack.c.l.b16 %v57
  %v208 = vunpack.c.h.b16 %v57
  %v209 = vunpack.c.l.b16 %v58
  %v210 = vunpack.c.h.b16 %v58
  %v211 = vunpack.c.l.b16 %v59
  %v212 = vunpack.c.h.b16 %v59
  %v213 = vunpack.c.l.b16 %v60
  %v214 = vunpack.c.h.b16 %v60
  %v215 = vunpack.c.l.b16 %v61
  %v216 = vunpack.c.h.b16 %v61
  %v217 = vunpack.c.l.b16 %v62
  %v218 = vunpack.c.h.b16 %v62
  %v219 = vunpack.c.l.b16 %v63
  %v220 = vunpack.c.h.b16 %v63
  %v221 = vunpack.c.l.b16 %v64
  %v222 = vunpack.c.h.b16 %v64
  %v223 = vunpack.c.l.b16 %v65
  %v224 = vunpack.c.h.b16 %v65
  %v225 = vunpack.c.l.b16 %v66
  %v226 = vunpack.c.h.b16 %v66
  %v227 = vunpack.c.l.b16 %v67
  %v228 = vunpack.c.h.b16 %v67
  %v229 = vunpack.c.l.b16 %v68
  %v230 = vunpack.c.h.b16 %v68
  %v231 = vunpack.c.l.b16 %v69
  %v232 = vunpack.c.h.b16 %v69
  %v233 = vunpack.c.l.b16 %v70
  %v234 = vunpack.c.h.b16 %v70
  %v235 = vunpack.c.l.b16 %v71
  %v236 = vunpack.c.h.b16 %v71
  %v237 = vunpack.c.l.b16 %v72
  %v238 = vunpack.c.h.b16 %v72
  %v239 = vunpack.c.l.b16 %v73
  %v240 = vunpack.c.h.b16 %v73
  %v241 = vunpack.c.l.b16 %v74
  %v242 = vunpack.c.h.b16 %v74
  %v243 = vpack.c.b16 %v139, %v131
  %v244 = vpack.c.b16 %v140, %v132
  %v245 = vpack.c.b16 %v141, %v133
  %v246 = vpack.c.b16 %v142, %v134
  %v247 = vpack.c.b16 %v143, %v135
  %v248 = vpack.c.b16 %v144, %v136
  %v249 = vpack.c.b16 %v145, %v137
  %v250 = vpack.c.b16 %v146, %v138
  %v251 = vpack.c.b16 %v155, %v147
  %v252 = vpack.c.b16 %v156, %v148
  %v253 = vpack.c.b16 %v157, %v149
  %v254 = vpack.c.b16 %v158, %v150
  %v255 = vpack.c.b16 %v159, %v151
  %v256 = vpack.c.b16 %v160, %v152
  %v257 = vpack.c.b16 %v161, %v153
  %v258 = vpack.c.b16 %v162, %v154
  %v259 = vpack.c.b16 %v171, %v163
  %v260 = vpack.c.b16 %v172, %v164
  %v261 = vpack.c.b16 %v173, %v165
  %v262 = vpack.c.b16 %v174, %v166
  %v263 = vpack.c.b16 %v175, %v167
  %v264 = vpack.c.b16 %v176, %v168
  %v265 = vpack.c.b16 %v177, %v169
  %v266 = vpack.c.b16 %v178, %v170
  %v267 = vpack.c.b16 %v187, %v179
  %v268 = vpack.c.b16 %v188, %v180
  %v269 = vpack.c.b16 %v189, %v181
  %v270 = vpack.c.b16 %v190, %v182
  %v271 = vpack.c.b16 %v191, %v183
  %v272 = vpack.c.b16 %v192, %v184
  %v273 = vpack.c.b16 %v193, %v185
  %v274 = vpack.c.b16 %v194, %v186
  %v275 = vpack.c.b16 %v203, %v195
  %v276 = vpack.c.b16 %v204, %v196
  %v277 = vpack.c.b16 %v205, %v197
  %v278 = vpack.c.b16 %v206, %v198
  %v279 = vpack.c.b16 %v207, %v199
  %v280 = vpack.c.b16 %v208, %v200
  %v281 = vpack.c.b16 %v209, %v201
  %v282 = vpack.c.b16 %v210, %v202
  %v283 = vpack.c.b16 %v219, %v211
  %v284 = vpack.c.b16 %v220, %v212
  %v285 = vpack.c.b16 %v221, %v213
  %v286 = vpack.c.b16 %v222, %v214
  %v287 = vpack.c.b16 %v223, %v215
  %v288 = vpack.c.b16 %v224, %v216
  %v289 = vpack.c.b16 %v225, %v217
  %v290 = vpack.c.b16 %v226, %v218
  %v291 = vpack.c.b16 %v235, %v227
  %v292 = vpack.c.b16 %v236, %v228
  %v293 = vpack.c.b16 %v237, %v229
  %v294 = vpack.c.b16 %v238, %v230
  %v295 = vpack.c.b16 %v239, %v231
  %v296 = vpack.c.b16 %v240, %v232
  %v297 = vpack.c.b16 %v241, %v233
  %v298 = vpack.c.b16 %v242, %v234
  %vm347 = vcmask 883712
  %v349 = vsel %vm347, %v18, 0
  %vm351 = vcmask 1045504
  %v353 = vsel %vm351, %v291, 0
  %v356 = vsel %vm351, %v292, 0
  %v359 = vsel %vm351, %v293, 0
  %v362 = vsel %vm351, %v294, 0
  %v365 = vsel %vm351, %v295, 0
  %v368 = vsel %vm351, %v296, 0
  %v371 = vsel %vm351, %v297, 0
  %v374 = vsel %vm351, %v298, 0
  %376 = vmatprep.subr.bf16.mxu0 %v244
  %377 = vmatpush1.bf16.msra.mxu0 %v243
  %378 = vmatprep.subr.bf16.mxu0 %v252
  %379 = vmatpush1.bf16.msra.mxu0 %v251
  %380 = vmatprep.subr.bf16.mxu0 %v260
  %381 = vmatpush1.bf16.msra.mxu0 %v259
  %382 = vmatprep.subr.bf16.mxu0 %v268
  %383 = vmatpush1.bf16.msra.mxu0 %v267
  %384 = vmatprep.subr.bf16.mxu0 %v276
  %385 = vmatpush1.bf16.msra.mxu0 %v275
  %386 = vmatprep.subr.bf16.mxu0 %v284
  %387 = vmatpush1.bf16.msra.mxu0 %v283
  %388 = vmatprep.subr.bf16.mxu0 %v356
  %389 = vmatpush1.bf16.msra.mxu0 %v353
  %390 = vmatprep.subr.bf16.mxu0 0
  %391 = vmatpush1.bf16.msra.mxu0 0
  %392 = vmatprep.subr.bf16.mxu0 0
  %393 = vmatpush1.bf16.msra.mxu0 0
  %394 = vmatprep.subr.bf16.mxu0 0
  %395 = vmatpush1.bf16.msra.mxu0 0
  %396 = vmatprep.subr.bf16.mxu0 0
  %397 = vmatpush1.bf16.msra.mxu0 0
  %398 = vmatprep.subr.bf16.mxu0 0
  %399 = vmatpush1.bf16.msra.mxu0 0
  %400 = vmatprep.subr.bf16.mxu0 0
  %401 = vmatpush1.bf16.msra.mxu0 0
  %402 = vmatprep.subr.bf16.mxu0 0
  %403 = vmatpush1.bf16.msra.mxu0 0
  %404 = vmatprep.subr.bf16.mxu0 0
  %405 = vmatpush1.bf16.msra.mxu0 0
  %406 = vmatprep.subr.bf16.mxu0 0
  %407 = vmatpush1.bf16.msra.mxu0 0
  %408 = vmatprep.mubr.bf16.mxu0 0
  %409 = vmatmul.mubr.bf16.gmra.mrb[0].mxu0 %v349
  %v410 = vpop.f32.mrb[0].mxu0
  %v411 = vadd.f32 0.0, %v410
  %v412 = vpop.f32.mrb[0].mxu0
  %v413 = vadd.f32 0.0, %v412
  %v414 = vpop.f32.mrb[0].mxu0
  %v415 = vpop.f32.mrb[0].mxu0
  %416 = vdwg.mxu0
  %417 = vmatprep.subr.bf16.mxu0 %v246
  %418 = vmatpush1.bf16.msra.mxu0 %v245
  %419 = vmatprep.subr.bf16.mxu0 %v254
  %420 = vmatpush1.bf16.msra.mxu0 %v253
  %421 = vmatprep.subr.bf16.mxu0 %v262
  %422 = vmatpush1.bf16.msra.mxu0 %v261
  %423 = vmatprep.subr.bf16.mxu0 %v270
  %424 = vmatpush1.bf16.msra.mxu0 %v269
  %425 = vmatprep.subr.bf16.mxu0 %v278
  %426 = vmatpush1.bf16.msra.mxu0 %v277
  %427 = vmatprep.subr.bf16.mxu0 %v286
  %428 = vmatpush1.bf16.msra.mxu0 %v285
  %429 = vmatprep.subr.bf16.mxu0 %v362
  %430 = vmatpush1.bf16.msra.mxu0 %v359
  %431 = vmatprep.subr.bf16.mxu0 0
  %432 = vmatpush1.bf16.msra.mxu0 0
  %433 = vmatprep.subr.bf16.mxu0 0
  %434 = vmatpush1.bf16.msra.mxu0 0
  %435 = vmatprep.subr.bf16.mxu0 0
  %436 = vmatpush1.bf16.msra.mxu0 0
  %437 = vmatprep.subr.bf16.mxu0 0
  %438 = vmatpush1.bf16.msra.mxu0 0
  %439 = vmatprep.subr.bf16.mxu0 0
  %440 = vmatpush1.bf16.msra.mxu0 0
  %441 = vmatprep.subr.bf16.mxu0 0
  %442 = vmatpush1.bf16.msra.mxu0 0
  %443 = vmatprep.subr.bf16.mxu0 0
  %444 = vmatpush1.bf16.msra.mxu0 0
  %445 = vmatprep.subr.bf16.mxu0 0
  %446 = vmatpush1.bf16.msra.mxu0 0
  %447 = vmatprep.subr.bf16.mxu0 0
  %448 = vmatpush1.bf16.msra.mxu0 0
  %449 = vmatprep.mubr.bf16.mxu0 0
  %450 = vmatmul.mubr.bf16.gmra.mrb[0].mxu0 %v349
  %v451 = vpop.f32.mrb[0].mxu0
  %v452 = vadd.f32 0.0, %v451
  %v453 = vpop.f32.mrb[0].mxu0
  %v454 = vadd.f32 0.0, %v453
  %v455 = vpop.f32.mrb[0].mxu0
  %v456 = vpop.f32.mrb[0].mxu0
  %457 = vdwg.mxu0
  %458 = vmatprep.subr.bf16.mxu0 %v248
  %459 = vmatpush1.bf16.msra.mxu0 %v247
  %460 = vmatprep.subr.bf16.mxu0 %v256
  %461 = vmatpush1.bf16.msra.mxu0 %v255
  %462 = vmatprep.subr.bf16.mxu0 %v264
  %463 = vmatpush1.bf16.msra.mxu0 %v263
  %464 = vmatprep.subr.bf16.mxu0 %v272
  %465 = vmatpush1.bf16.msra.mxu0 %v271
  %466 = vmatprep.subr.bf16.mxu0 %v280
  %467 = vmatpush1.bf16.msra.mxu0 %v279
  %468 = vmatprep.subr.bf16.mxu0 %v288
  %469 = vmatpush1.bf16.msra.mxu0 %v287
  %470 = vmatprep.subr.bf16.mxu0 %v368
  %471 = vmatpush1.bf16.msra.mxu0 %v365
  %472 = vmatprep.subr.bf16.mxu0 0
  %473 = vmatpush1.bf16.msra.mxu0 0
  %474 = vmatprep.subr.bf16.mxu0 0
  %475 = vmatpush1.bf16.msra.mxu0 0
  %476 = vmatprep.subr.bf16.mxu0 0
  %477 = vmatpush1.bf16.msra.mxu0 0
  %478 = vmatprep.subr.bf16.mxu0 0
  %479 = vmatpush1.bf16.msra.mxu0 0
  %480 = vmatprep.subr.bf16.mxu0 0
  %481 = vmatpush1.bf16.msra.mxu0 0
  %482 = vmatprep.subr.bf16.mxu0 0
  %483 = vmatpush1.bf16.msra.mxu0 0
  %484 = vmatprep.subr.bf16.mxu0 0
  %485 = vmatpush1.bf16.msra.mxu0 0
  %486 = vmatprep.subr.bf16.mxu0 0
  %487 = vmatpush1.bf16.msra.mxu0 0
  %488 = vmatprep.subr.bf16.mxu0 0
  %489 = vmatpush1.bf16.msra.mxu0 0
  %490 = vmatprep.mubr.bf16.mxu0 0
  %491 = vmatmul.mubr.bf16.gmra.mrb[0].mxu0 %v349
  %v492 = vpop.f32.mrb[0].mxu0
  %v493 = vadd.f32 0.0, %v492
  %v494 = vpop.f32.mrb[0].mxu0
  %v495 = vadd.f32 0.0, %v494
  %v496 = vpop.f32.mrb[0].mxu0
  %v497 = vpop.f32.mrb[0].mxu0
  %498 = vdwg.mxu0
  %499 = vmatprep.subr.bf16.mxu0 %v250
  %500 = vmatpush1.bf16.msra.mxu0 %v249
  %501 = vmatprep.subr.bf16.mxu0 %v258
  %502 = vmatpush1.bf16.msra.mxu0 %v257
  %503 = vmatprep.subr.bf16.mxu0 %v266
  %504 = vmatpush1.bf16.msra.mxu0 %v265
  %505 = vmatprep.subr.bf16.mxu0 %v274
  %506 = vmatpush1.bf16.msra.mxu0 %v273
  %507 = vmatprep.subr.bf16.mxu0 %v282
  %508 = vmatpush1.bf16.msra.mxu0 %v281
  %509 = vmatprep.subr.bf16.mxu0 %v290
  %510 = vmatpush1.bf16.msra.mxu0 %v289
  %511 = vmatprep.subr.bf16.mxu0 %v374
  %512 = vmatpush1.bf16.msra.mxu0 %v371
  %513 = vmatprep.subr.bf16.mxu0 0
  %514 = vmatpush1.bf16.msra.mxu0 0
  %515 = vmatprep.subr.bf16.mxu0 0
  %516 = vmatpush1.bf16.msra.mxu0 0
  %517 = vmatprep.subr.bf16.mxu0 0
  %518 = vmatpush1.bf16.msra.mxu0 0
  %519 = vmatprep.subr.bf16.mxu0 0
  %520 = vmatpush1.bf16.msra.mxu0 0
  %521 = vmatprep.subr.bf16.mxu0 0
  %522 = vmatpush1.bf16.msra.mxu0 0
  %523 = vmatprep.subr.bf16.mxu0 0
  %524 = vmatpush1.bf16.msra.mxu0 0
  %525 = vmatprep.subr.bf16.mxu0 0
  %526 = vmatpush1.bf16.msra.mxu0 0
  %527 = vmatprep.subr.bf16.mxu0 0
  %528 = vmatpush1.bf16.msra.mxu0 0
  %529 = vmatprep.subr.bf16.mxu0 0
  %530 = vmatpush1.bf16.msra.mxu0 0
  %531 = vmatprep.mubr.bf16.mxu0 0
  %532 = vmatmul.mubr.bf16.gmra.mrb[0].mxu0 %v349
  %v533 = vpop.f32.mrb[0].mxu0
  %v534 = vadd.f32 0.0, %v533
  %v535 = vpop.f32.mrb[0].mxu0
  %v536 = vadd.f32 0.0, %v535
  %v537 = vpop.f32.mrb[0].mxu0
  %v538 = vpop.f32.mrb[0].mxu0
  %539 = vdwg.mxu0
  %v540 = vld [vmem:[%s2] sm:$0xf]
  %542 = vset.pattern.permute.xlu0 0
  %543 = vperm.xlu0 %542, %v540
  %v544 = vpop.permute.xlu0 %543
  %v546 = vmul.f32 %v411, %v544
  %v547 = vmul.f32 %v413, %v544
  %v548 = vmul.f32 %v452, %v544
  %v549 = vmul.f32 %v454, %v544
  %v550 = vmul.f32 %v493, %v544
  %v551 = vmul.f32 %v495, %v544
  %v552 = vmul.f32 %v534, %v544
  %v553 = vmul.f32 %v536, %v544
  %v554 = vld [vmem:[%s3] sm:$0xf]
  %556 = vset.pattern.permute.xlu0 0
  %557 = vperm.xlu0 %556, %v554
  %v558 = vpop.permute.xlu0 %557
  %v560 = vadd.f32 %v546, %v558
  %v561 = vadd.f32 %v547, %v558
  %v562 = vadd.f32 %v548, %v558
  %v563 = vadd.f32 %v549, %v558
  %v564 = vadd.f32 %v550, %v558
  %v565 = vadd.f32 %v551, %v558
  %v566 = vadd.f32 %v552, %v558
  %v567 = vadd.f32 %v553, %v558
  %v568 = vmax.f32 %v560, 0.0
  %v569 = vmax.f32 %v561, 0.0
  %v570 = vmax.f32 %v562, 0.0
  %v571 = vmax.f32 %v563, 0.0
  %v572 = vmax.f32 %v564, 0.0
  %v573 = vmax.f32 %v565, 0.0
  %v574 = vmax.f32 %v566, 0.0
  %v575 = vmax.f32 %v567, 0.0
  %v576 = vpack.c.bf16 %v568, %v568
  %v577 = vpack.c.bf16 %v569, %v569
  %v578 = vpack.c.bf16 %v570, %v570
  %v579 = vpack.c.bf16 %v571, %v571
  %v580 = vpack.c.bf16 %v572, %v572
  %v581 = vpack.c.bf16 %v573, %v573
  %v582 = vpack.c.bf16 %v574, %v574
  %v583 = vpack.c.bf16 %v575, %v575
  %v592 = vcombine.low %v576, %v577
  %v593 = vcombine.low %v578, %v579
  %v595 = vunpack.c.l.s4 1983009808
  %v596 = vunpack.c.0.s8 %v595
  %v597 = vlaneseq
  %v598 = vshrl.u32 %v597, 7
  %v599 = vsub.s32 %v596, %v598
  %v600 = vrot.slane %v592, %v599
  %v602 = vunpack.c.l.s4 1983009808
  %v603 = vunpack.c.0.s8 %v602
  %v604 = vlaneseq
  %v605 = vshrl.u32 %v604, 7
  %v606 = vsub.s32 %v603, %v605
  %v607 = vrot.slane %v593, %v606
  %v608 = vcombine.low %v600, %v607
  %v609 = vcombine.low %v580, %v581
  %v610 = vcombine.low %v582, %v583
  %v612 = vunpack.c.l.s4 1983009808
  %v613 = vunpack.c.0.s8 %v612
  %v614 = vlaneseq
  %v615 = vshrl.u32 %v614, 7
  %v616 = vsub.s32 %v613, %v615
  %v617 = vrot.slane %v609, %v616
  %v619 = vunpack.c.l.s4 1983009808
  %v620 = vunpack.c.0.s8 %v619
  %v621 = vlaneseq
  %v622 = vshrl.u32 %v621, 7
  %v623 = vsub.s32 %v620, %v622
  %v624 = vrot.slane %v610, %v623
  %v625 = vcombine.low %v617, %v624
  %628 = vst [vmem:[%s4] sm:$0xff] %v608
  %629 = vst [vmem:[%s4 + $0x8] sm:$0xff] %v625
  // Predicated region
  $region18: #{heterogeneous_resnet_forward.11} parent=0 // pred_check
    _
  $region19: #{heterogeneous_resnet_forward.11} parent=0 // pred_check_branch
    %631 = sbr.rel (0) target = $region21
  $region20: #{heterogeneous_resnet_forward.11} parent=0 // pred_region
    _
  $region21: #{heterogeneous_resnet_forward.11} parent=0 // pred_fallthru
    _
  // Predicated region
  $region22: #{heterogeneous_resnet_forward.11} parent=0 // pred_check
    _
  $region23: #{heterogeneous_resnet_forward.11} parent=0 // pred_check_branch
    %633 = sbr.rel (0) target = $region25
  $region24: #{heterogeneous_resnet_forward.11} parent=0 // pred_region
    _
  $region25: #{heterogeneous_resnet_forward.11} parent=0 // pred_fallthru
    _

// kernel: heterogeneous_resnet_forward.12
$region0: #{heterogeneous_resnet_forward.12}
  #allocation0 [shape = 'u32[]', space=smem, size = 0x4, offset = 0x4, fixed_abs, tag = 'smem constant byte address 0x4 - core index']
  #allocation1 [shape = 'u32[144,128]{1,0:T(1,128)}', space=vmem, size = 0x12000, scoped, tag = 'internal scratch']
  %s0 = inlined_call_operand.vmem [shape: bf16[108,1024], index: 0, kind: input, shape index: {}]
  %s1 = inlined_call_operand.vmem [shape: bf16[4,108], index: 1, kind: input, shape index: {}]
  %s2 = inlined_call_operand.vmem [shape: f32[4,1], index: 2, kind: input, shape index: {}]
  %s3 = inlined_call_operand.vmem [shape: f32[4,1], index: 3, kind: input, shape index: {}]
  %s4 = inlined_call_operand.vmem [shape: f32[4,1024], index: 4, kind: input, shape index: {}]
  %s5 = inlined_call_operand.vmem [shape: f32[4,1024], index: 5, kind: output, shape index: {}]
  %s6 = sld [smem:[#allocation0]]
  $region30: #{heterogeneous_resnet_forward.12} parent=0
    _
  %s8 = ssub.s32 1, %s6
  %s9 = scalar_select 0, %s8, %s6
  // Predicated region
  $region2: #{heterogeneous_resnet_forward.12} parent=0 // pred_check
    _
  $region3: #{heterogeneous_resnet_forward.12} parent=0 // pred_check_branch
    %11 = sbr.rel (0) target = $region5
  $region4: #{heterogeneous_resnet_forward.12} parent=0 // pred_region
    _
  $region5: #{heterogeneous_resnet_forward.12} parent=0 // pred_fallthru
    _
  // Predicated region
  $region6: #{heterogeneous_resnet_forward.12} parent=0 // pred_check
    _
  $region7: #{heterogeneous_resnet_forward.12} parent=0 // pred_check_branch
    %13 = sbr.rel (0) target = $region9
  $region8: #{heterogeneous_resnet_forward.12} parent=0 // pred_region
    _
  $region9: #{heterogeneous_resnet_forward.12} parent=0 // pred_fallthru
    _
  // Predicated region
  $region10: #{heterogeneous_resnet_forward.12} parent=0 // pred_check
    _
  $region11: #{heterogeneous_resnet_forward.12} parent=0 // pred_check_branch
    %15 = sbr.rel (0) target = $region13
  $region12: #{heterogeneous_resnet_forward.12} parent=0 // pred_region
    _
  $region13: #{heterogeneous_resnet_forward.12} parent=0 // pred_fallthru
    _
  // Predicated region
  $region14: #{heterogeneous_resnet_forward.12} parent=0 // pred_check
    _
  $region15: #{heterogeneous_resnet_forward.12} parent=0 // pred_check_branch
    %17 = sbr.rel (0) target = $region17
  $region16: #{heterogeneous_resnet_forward.12} parent=0 // pred_region
    _
  $region17: #{heterogeneous_resnet_forward.12} parent=0 // pred_fallthru
    _
  // Predicated region
  $region18: #{heterogeneous_resnet_forward.12} parent=0 // pred_check
    _
  $region19: #{heterogeneous_resnet_forward.12} parent=0 // pred_check_branch
    %19 = sbr.rel (0) target = $region21
  $region20: #{heterogeneous_resnet_forward.12} parent=0 // pred_region
    _
  $region21: #{heterogeneous_resnet_forward.12} parent=0 // pred_fallthru
    _
  %v21 = vld [vmem:[%s1] sm:$0x3]
  %v22 = vld [vmem:[%s0] sm:$0xff]
  %v23 = vld [vmem:[%s0 + $0x8] sm:$0xff]
  %v24 = vld [vmem:[%s0 + $0x10] sm:$0xff]
  %v25 = vld [vmem:[%s0 + $0x18] sm:$0xff]
  %v26 = vld [vmem:[%s0 + $0x20] sm:$0xff]
  %v27 = vld [vmem:[%s0 + $0x28] sm:$0xff]
  %v28 = vld [vmem:[%s0 + $0x30] sm:$0xff]
  %v29 = vld [vmem:[%s0 + $0x38] sm:$0xff]
  %v30 = vld [vmem:[%s0 + $0x40] sm:$0xff]
  %v31 = vld [vmem:[%s0 + $0x48] sm:$0xff]
  %v32 = vld [vmem:[%s0 + $0x50] sm:$0xff]
  %v33 = vld [vmem:[%s0 + $0x58] sm:$0xff]
  %v34 = vld [vmem:[%s0 + $0x60] sm:$0xff]
  %v35 = vld [vmem:[%s0 + $0x68] sm:$0xff]
  %v36 = vld [vmem:[%s0 + $0x70] sm:$0xff]
  %v37 = vld [vmem:[%s0 + $0x78] sm:$0xff]
  %v38 = vld [vmem:[%s0 + $0x80] sm:$0xff]
  %v39 = vld [vmem:[%s0 + $0x88] sm:$0xff]
  %v40 = vld [vmem:[%s0 + $0x90] sm:$0xff]
  %v41 = vld [vmem:[%s0 + $0x98] sm:$0xff]
  %v42 = vld [vmem:[%s0 + $0xa0] sm:$0xff]
  %v43 = vld [vmem:[%s0 + $0xa8] sm:$0xff]
  %v44 = vld [vmem:[%s0 + $0xb0] sm:$0xff]
  %v45 = vld [vmem:[%s0 + $0xb8] sm:$0xff]
  %v46 = vld [vmem:[%s0 + $0xc0] sm:$0xff]
  %v47 = vld [vmem:[%s0 + $0xc8] sm:$0xff]
  %v48 = vld [vmem:[%s0 + $0xd0] sm:$0xff]
  %v49 = vld [vmem:[%s0 + $0xd8] sm:$0xff]
  %v50 = vld [vmem:[%s0 + $0xe0] sm:$0xff]
  %v51 = vld [vmem:[%s0 + $0xe8] sm:$0xff]
  %v52 = vld [vmem:[%s0 + $0xf0] sm:$0xff]
  %v53 = vld [vmem:[%s0 + $0xf8] sm:$0xff]
  %v54 = vld [vmem:[%s0 + $0x100] sm:$0xff]
  %v55 = vld [vmem:[%s0 + $0x108] sm:$0xff]
  %v56 = vld [vmem:[%s0 + $0x110] sm:$0xff]
  %v57 = vld [vmem:[%s0 + $0x118] sm:$0xff]
  %v58 = vld [vmem:[%s0 + $0x120] sm:$0xff]
  %v59 = vld [vmem:[%s0 + $0x128] sm:$0xff]
  %v60 = vld [vmem:[%s0 + $0x130] sm:$0xff]
  %v61 = vld [vmem:[%s0 + $0x138] sm:$0xff]
  %v62 = vld [vmem:[%s0 + $0x140] sm:$0xff]
  %v63 = vld [vmem:[%s0 + $0x148] sm:$0xff]
  %v64 = vld [vmem:[%s0 + $0x150] sm:$0xff]
  %v65 = vld [vmem:[%s0 + $0x158] sm:$0xff]
  %v66 = vld [vmem:[%s0 + $0x160] sm:$0xff]
  %v67 = vld [vmem:[%s0 + $0x168] sm:$0xff]
  %v68 = vld [vmem:[%s0 + $0x170] sm:$0xff]
  %v69 = vld [vmem:[%s0 + $0x178] sm:$0xff]
  %v70 = vld [vmem:[%s0 + $0x180] sm:$0xff]
  %v71 = vld [vmem:[%s0 + $0x188] sm:$0xff]
  %v72 = vld [vmem:[%s0 + $0x190] sm:$0xff]
  %v73 = vld [vmem:[%s0 + $0x198] sm:$0xff]
  %v74 = vld [vmem:[%s0 + $0x1a0] sm:$0x33]
  %v75 = vld [vmem:[%s0 + $0x1a8] sm:$0x33]
  %v76 = vld [vmem:[%s0 + $0x1b0] sm:$0x33]
  %v77 = vld [vmem:[%s0 + $0x1b8] sm:$0x33]
  %v134 = vunpack.c.l.b16 %v22
  %v135 = vunpack.c.h.b16 %v22
  %v136 = vunpack.c.l.b16 %v23
  %v137 = vunpack.c.h.b16 %v23
  %v138 = vunpack.c.l.b16 %v24
  %v139 = vunpack.c.h.b16 %v24
  %v140 = vunpack.c.l.b16 %v25
  %v141 = vunpack.c.h.b16 %v25
  %v142 = vunpack.c.l.b16 %v26
  %v143 = vunpack.c.h.b16 %v26
  %v144 = vunpack.c.l.b16 %v27
  %v145 = vunpack.c.h.b16 %v27
  %v146 = vunpack.c.l.b16 %v28
  %v147 = vunpack.c.h.b16 %v28
  %v148 = vunpack.c.l.b16 %v29
  %v149 = vunpack.c.h.b16 %v29
  %v150 = vunpack.c.l.b16 %v30
  %v151 = vunpack.c.h.b16 %v30
  %v152 = vunpack.c.l.b16 %v31
  %v153 = vunpack.c.h.b16 %v31
  %v154 = vunpack.c.l.b16 %v32
  %v155 = vunpack.c.h.b16 %v32
  %v156 = vunpack.c.l.b16 %v33
  %v157 = vunpack.c.h.b16 %v33
  %v158 = vunpack.c.l.b16 %v34
  %v159 = vunpack.c.h.b16 %v34
  %v160 = vunpack.c.l.b16 %v35
  %v161 = vunpack.c.h.b16 %v35
  %v162 = vunpack.c.l.b16 %v36
  %v163 = vunpack.c.h.b16 %v36
  %v164 = vunpack.c.l.b16 %v37
  %v165 = vunpack.c.h.b16 %v37
  %v166 = vunpack.c.l.b16 %v38
  %v167 = vunpack.c.h.b16 %v38
  %v168 = vunpack.c.l.b16 %v39
  %v169 = vunpack.c.h.b16 %v39
  %v170 = vunpack.c.l.b16 %v40
  %v171 = vunpack.c.h.b16 %v40
  %v172 = vunpack.c.l.b16 %v41
  %v173 = vunpack.c.h.b16 %v41
  %v174 = vunpack.c.l.b16 %v42
  %v175 = vunpack.c.h.b16 %v42
  %v176 = vunpack.c.l.b16 %v43
  %v177 = vunpack.c.h.b16 %v43
  %v178 = vunpack.c.l.b16 %v44
  %v179 = vunpack.c.h.b16 %v44
  %v180 = vunpack.c.l.b16 %v45
  %v181 = vunpack.c.h.b16 %v45
  %v182 = vunpack.c.l.b16 %v46
  %v183 = vunpack.c.h.b16 %v46
  %v184 = vunpack.c.l.b16 %v47
  %v185 = vunpack.c.h.b16 %v47
  %v186 = vunpack.c.l.b16 %v48
  %v187 = vunpack.c.h.b16 %v48
  %v188 = vunpack.c.l.b16 %v49
  %v189 = vunpack.c.h.b16 %v49
  %v190 = vunpack.c.l.b16 %v50
  %v191 = vunpack.c.h.b16 %v50
  %v192 = vunpack.c.l.b16 %v51
  %v193 = vunpack.c.h.b16 %v51
  %v194 = vunpack.c.l.b16 %v52
  %v195 = vunpack.c.h.b16 %v52
  %v196 = vunpack.c.l.b16 %v53
  %v197 = vunpack.c.h.b16 %v53
  %v198 = vunpack.c.l.b16 %v54
  %v199 = vunpack.c.h.b16 %v54
  %v200 = vunpack.c.l.b16 %v55
  %v201 = vunpack.c.h.b16 %v55
  %v202 = vunpack.c.l.b16 %v56
  %v203 = vunpack.c.h.b16 %v56
  %v204 = vunpack.c.l.b16 %v57
  %v205 = vunpack.c.h.b16 %v57
  %v206 = vunpack.c.l.b16 %v58
  %v207 = vunpack.c.h.b16 %v58
  %v208 = vunpack.c.l.b16 %v59
  %v209 = vunpack.c.h.b16 %v59
  %v210 = vunpack.c.l.b16 %v60
  %v211 = vunpack.c.h.b16 %v60
  %v212 = vunpack.c.l.b16 %v61
  %v213 = vunpack.c.h.b16 %v61
  %v214 = vunpack.c.l.b16 %v62
  %v215 = vunpack.c.h.b16 %v62
  %v216 = vunpack.c.l.b16 %v63
  %v217 = vunpack.c.h.b16 %v63
  %v218 = vunpack.c.l.b16 %v64
  %v219 = vunpack.c.h.b16 %v64
  %v220 = vunpack.c.l.b16 %v65
  %v221 = vunpack.c.h.b16 %v65
  %v222 = vunpack.c.l.b16 %v66
  %v223 = vunpack.c.h.b16 %v66
  %v224 = vunpack.c.l.b16 %v67
  %v225 = vunpack.c.h.b16 %v67
  %v226 = vunpack.c.l.b16 %v68
  %v227 = vunpack.c.h.b16 %v68
  %v228 = vunpack.c.l.b16 %v69
  %v229 = vunpack.c.h.b16 %v69
  %v230 = vunpack.c.l.b16 %v70
  %v231 = vunpack.c.h.b16 %v70
  %v232 = vunpack.c.l.b16 %v71
  %v233 = vunpack.c.h.b16 %v71
  %v234 = vunpack.c.l.b16 %v72
  %v235 = vunpack.c.h.b16 %v72
  %v236 = vunpack.c.l.b16 %v73
  %v237 = vunpack.c.h.b16 %v73
  %v238 = vunpack.c.l.b16 %v74
  %v239 = vunpack.c.h.b16 %v74
  %v240 = vunpack.c.l.b16 %v75
  %v241 = vunpack.c.h.b16 %v75
  %v242 = vunpack.c.l.b16 %v76
  %v243 = vunpack.c.h.b16 %v76
  %v244 = vunpack.c.l.b16 %v77
  %v245 = vunpack.c.h.b16 %v77
  %v246 = vpack.c.b16 %v142, %v134
  %v247 = vpack.c.b16 %v143, %v135
  %v248 = vpack.c.b16 %v144, %v136
  %v249 = vpack.c.b16 %v145, %v137
  %v250 = vpack.c.b16 %v146, %v138
  %v251 = vpack.c.b16 %v147, %v139
  %v252 = vpack.c.b16 %v148, %v140
  %v253 = vpack.c.b16 %v149, %v141
  %v254 = vpack.c.b16 %v158, %v150
  %v255 = vpack.c.b16 %v159, %v151
  %v256 = vpack.c.b16 %v160, %v152
  %v257 = vpack.c.b16 %v161, %v153
  %v258 = vpack.c.b16 %v162, %v154
  %v259 = vpack.c.b16 %v163, %v155
  %v260 = vpack.c.b16 %v164, %v156
  %v261 = vpack.c.b16 %v165, %v157
  %v262 = vpack.c.b16 %v174, %v166
  %v263 = vpack.c.b16 %v175, %v167
  %v264 = vpack.c.b16 %v176, %v168
  %v265 = vpack.c.b16 %v177, %v169
  %v266 = vpack.c.b16 %v178, %v170
  %v267 = vpack.c.b16 %v179, %v171
  %v268 = vpack.c.b16 %v180, %v172
  %v269 = vpack.c.b16 %v181, %v173
  %v270 = vpack.c.b16 %v190, %v182
  %v271 = vpack.c.b16 %v191, %v183
  %v272 = vpack.c.b16 %v192, %v184
  %v273 = vpack.c.b16 %v193, %v185
  %v274 = vpack.c.b16 %v194, %v186
  %v275 = vpack.c.b16 %v195, %v187
  %v276 = vpack.c.b16 %v196, %v188
  %v277 = vpack.c.b16 %v197, %v189
  %v278 = vpack.c.b16 %v206, %v198
  %v279 = vpack.c.b16 %v207, %v199
  %v280 = vpack.c.b16 %v208, %v200
  %v281 = vpack.c.b16 %v209, %v201
  %v282 = vpack.c.b16 %v210, %v202
  %v283 = vpack.c.b16 %v211, %v203
  %v284 = vpack.c.b16 %v212, %v204
  %v285 = vpack.c.b16 %v213, %v205
  %v286 = vpack.c.b16 %v222, %v214
  %v287 = vpack.c.b16 %v223, %v215
  %v288 = vpack.c.b16 %v224, %v216
  %v289 = vpack.c.b16 %v225, %v217
  %v290 = vpack.c.b16 %v226, %v218
  %v291 = vpack.c.b16 %v227, %v219
  %v292 = vpack.c.b16 %v228, %v220
  %v293 = vpack.c.b16 %v229, %v221
  %v294 = vpack.c.b16 %v238, %v230
  %v295 = vpack.c.b16 %v239, %v231
  %v296 = vpack.c.b16 %v240, %v232
  %v297 = vpack.c.b16 %v241, %v233
  %v298 = vpack.c.b16 %v242, %v234
  %v299 = vpack.c.b16 %v243, %v235
  %v300 = vpack.c.b16 %v244, %v236
  %v301 = vpack.c.b16 %v245, %v237
  %vm350 = vcmask 883712
  %v352 = vsel %vm350, %v21, 0
  %vm354 = vcmask 1045504
  %v356 = vsel %vm354, %v294, 0
  %v359 = vsel %vm354, %v295, 0
  %v362 = vsel %vm354, %v296, 0
  %v365 = vsel %vm354, %v297, 0
  %v368 = vsel %vm354, %v298, 0
  %v371 = vsel %vm354, %v299, 0
  %v374 = vsel %vm354, %v300, 0
  %v377 = vsel %vm354, %v301, 0
  %379 = vmatprep.subr.bf16.mxu0 %v247
  %380 = vmatpush1.bf16.msra.mxu0 %v246
  %381 = vmatprep.subr.bf16.mxu0 %v255
  %382 = vmatpush1.bf16.msra.mxu0 %v254
  %383 = vmatprep.subr.bf16.mxu0 %v263
  %384 = vmatpush1.bf16.msra.mxu0 %v262
  %385 = vmatprep.subr.bf16.mxu0 %v271
  %386 = vmatpush1.bf16.msra.mxu0 %v270
  %387 = vmatprep.subr.bf16.mxu0 %v279
  %388 = vmatpush1.bf16.msra.mxu0 %v278
  %389 = vmatprep.subr.bf16.mxu0 %v287
  %390 = vmatpush1.bf16.msra.mxu0 %v286
  %391 = vmatprep.subr.bf16.mxu0 %v359
  %392 = vmatpush1.bf16.msra.mxu0 %v356
  %393 = vmatprep.subr.bf16.mxu0 0
  %394 = vmatpush1.bf16.msra.mxu0 0
  %395 = vmatprep.subr.bf16.mxu0 0
  %396 = vmatpush1.bf16.msra.mxu0 0
  %397 = vmatprep.subr.bf16.mxu0 0
  %398 = vmatpush1.bf16.msra.mxu0 0
  %399 = vmatprep.subr.bf16.mxu0 0
  %400 = vmatpush1.bf16.msra.mxu0 0
  %401 = vmatprep.subr.bf16.mxu0 0
  %402 = vmatpush1.bf16.msra.mxu0 0
  %403 = vmatprep.subr.bf16.mxu0 0
  %404 = vmatpush1.bf16.msra.mxu0 0
  %405 = vmatprep.subr.bf16.mxu0 0
  %406 = vmatpush1.bf16.msra.mxu0 0
  %407 = vmatprep.subr.bf16.mxu0 0
  %408 = vmatpush1.bf16.msra.mxu0 0
  %409 = vmatprep.subr.bf16.mxu0 0
  %410 = vmatpush1.bf16.msra.mxu0 0
  %411 = vmatprep.mubr.bf16.mxu0 0
  %412 = vmatmul.mubr.bf16.gmra.mrb[0].mxu0 %v352
  %v413 = vpop.f32.mrb[0].mxu0
  %v414 = vadd.f32 0.0, %v413
  %v415 = vpop.f32.mrb[0].mxu0
  %v416 = vadd.f32 0.0, %v415
  %v417 = vpop.f32.mrb[0].mxu0
  %v418 = vpop.f32.mrb[0].mxu0
  %419 = vdwg.mxu0
  %420 = vmatprep.subr.bf16.mxu0 %v249
  %421 = vmatpush1.bf16.msra.mxu0 %v248
  %422 = vmatprep.subr.bf16.mxu0 %v257
  %423 = vmatpush1.bf16.msra.mxu0 %v256
  %424 = vmatprep.subr.bf16.mxu0 %v265
  %425 = vmatpush1.bf16.msra.mxu0 %v264
  %426 = vmatprep.subr.bf16.mxu0 %v273
  %427 = vmatpush1.bf16.msra.mxu0 %v272
  %428 = vmatprep.subr.bf16.mxu0 %v281
  %429 = vmatpush1.bf16.msra.mxu0 %v280
  %430 = vmatprep.subr.bf16.mxu0 %v289
  %431 = vmatpush1.bf16.msra.mxu0 %v288
  %432 = vmatprep.subr.bf16.mxu0 %v365
  %433 = vmatpush1.bf16.msra.mxu0 %v362
  %434 = vmatprep.subr.bf16.mxu0 0
  %435 = vmatpush1.bf16.msra.mxu0 0
  %436 = vmatprep.subr.bf16.mxu0 0
  %437 = vmatpush1.bf16.msra.mxu0 0
  %438 = vmatprep.subr.bf16.mxu0 0
  %439 = vmatpush1.bf16.msra.mxu0 0
  %440 = vmatprep.subr.bf16.mxu0 0
  %441 = vmatpush1.bf16.msra.mxu0 0
  %442 = vmatprep.subr.bf16.mxu0 0
  %443 = vmatpush1.bf16.msra.mxu0 0
  %444 = vmatprep.subr.bf16.mxu0 0
  %445 = vmatpush1.bf16.msra.mxu0 0
  %446 = vmatprep.subr.bf16.mxu0 0
  %447 = vmatpush1.bf16.msra.mxu0 0
  %448 = vmatprep.subr.bf16.mxu0 0
  %449 = vmatpush1.bf16.msra.mxu0 0
  %450 = vmatprep.subr.bf16.mxu0 0
  %451 = vmatpush1.bf16.msra.mxu0 0
  %452 = vmatprep.mubr.bf16.mxu0 0
  %453 = vmatmul.mubr.bf16.gmra.mrb[0].mxu0 %v352
  %v454 = vpop.f32.mrb[0].mxu0
  %v455 = vadd.f32 0.0, %v454
  %v456 = vpop.f32.mrb[0].mxu0
  %v457 = vadd.f32 0.0, %v456
  %v458 = vpop.f32.mrb[0].mxu0
  %v459 = vpop.f32.mrb[0].mxu0
  %460 = vdwg.mxu0
  %461 = vmatprep.subr.bf16.mxu0 %v251
  %462 = vmatpush1.bf16.msra.mxu0 %v250
  %463 = vmatprep.subr.bf16.mxu0 %v259
  %464 = vmatpush1.bf16.msra.mxu0 %v258
  %465 = vmatprep.subr.bf16.mxu0 %v267
  %466 = vmatpush1.bf16.msra.mxu0 %v266
  %467 = vmatprep.subr.bf16.mxu0 %v275
  %468 = vmatpush1.bf16.msra.mxu0 %v274
  %469 = vmatprep.subr.bf16.mxu0 %v283
  %470 = vmatpush1.bf16.msra.mxu0 %v282
  %471 = vmatprep.subr.bf16.mxu0 %v291
  %472 = vmatpush1.bf16.msra.mxu0 %v290
  %473 = vmatprep.subr.bf16.mxu0 %v371
  %474 = vmatpush1.bf16.msra.mxu0 %v368
  %475 = vmatprep.subr.bf16.mxu0 0
  %476 = vmatpush1.bf16.msra.mxu0 0
  %477 = vmatprep.subr.bf16.mxu0 0
  %478 = vmatpush1.bf16.msra.mxu0 0
  %479 = vmatprep.subr.bf16.mxu0 0
  %480 = vmatpush1.bf16.msra.mxu0 0
  %481 = vmatprep.subr.bf16.mxu0 0
  %482 = vmatpush1.bf16.msra.mxu0 0
  %483 = vmatprep.subr.bf16.mxu0 0
  %484 = vmatpush1.bf16.msra.mxu0 0
  %485 = vmatprep.subr.bf16.mxu0 0
  %486 = vmatpush1.bf16.msra.mxu0 0
  %487 = vmatprep.subr.bf16.mxu0 0
  %488 = vmatpush1.bf16.msra.mxu0 0
  %489 = vmatprep.subr.bf16.mxu0 0
  %490 = vmatpush1.bf16.msra.mxu0 0
  %491 = vmatprep.subr.bf16.mxu0 0
  %492 = vmatpush1.bf16.msra.mxu0 0
  %493 = vmatprep.mubr.bf16.mxu0 0
  %494 = vmatmul.mubr.bf16.gmra.mrb[0].mxu0 %v352
  %v495 = vpop.f32.mrb[0].mxu0
  %v496 = vadd.f32 0.0, %v495
  %v497 = vpop.f32.mrb[0].mxu0
  %v498 = vadd.f32 0.0, %v497
  %v499 = vpop.f32.mrb[0].mxu0
  %v500 = vpop.f32.mrb[0].mxu0
  %501 = vdwg.mxu0
  %502 = vmatprep.subr.bf16.mxu0 %v253
  %503 = vmatpush1.bf16.msra.mxu0 %v252
  %504 = vmatprep.subr.bf16.mxu0 %v261
  %505 = vmatpush1.bf16.msra.mxu0 %v260
  %506 = vmatprep.subr.bf16.mxu0 %v269
  %507 = vmatpush1.bf16.msra.mxu0 %v268
  %508 = vmatprep.subr.bf16.mxu0 %v277
  %509 = vmatpush1.bf16.msra.mxu0 %v276
  %510 = vmatprep.subr.bf16.mxu0 %v285
  %511 = vmatpush1.bf16.msra.mxu0 %v284
  %512 = vmatprep.subr.bf16.mxu0 %v293
  %513 = vmatpush1.bf16.msra.mxu0 %v292
  %514 = vmatprep.subr.bf16.mxu0 %v377
  %515 = vmatpush1.bf16.msra.mxu0 %v374
  %516 = vmatprep.subr.bf16.mxu0 0
  %517 = vmatpush1.bf16.msra.mxu0 0
  %518 = vmatprep.subr.bf16.mxu0 0
  %519 = vmatpush1.bf16.msra.mxu0 0
  %520 = vmatprep.subr.bf16.mxu0 0
  %521 = vmatpush1.bf16.msra.mxu0 0
  %522 = vmatprep.subr.bf16.mxu0 0
  %523 = vmatpush1.bf16.msra.mxu0 0
  %524 = vmatprep.subr.bf16.mxu0 0
  %525 = vmatpush1.bf16.msra.mxu0 0
  %526 = vmatprep.subr.bf16.mxu0 0
  %527 = vmatpush1.bf16.msra.mxu0 0
  %528 = vmatprep.subr.bf16.mxu0 0
  %529 = vmatpush1.bf16.msra.mxu0 0
  %530 = vmatprep.subr.bf16.mxu0 0
  %531 = vmatpush1.bf16.msra.mxu0 0
  %532 = vmatprep.subr.bf16.mxu0 0
  %533 = vmatpush1.bf16.msra.mxu0 0
  %534 = vmatprep.mubr.bf16.mxu0 0
  %535 = vmatmul.mubr.bf16.gmra.mrb[0].mxu0 %v352
  %v536 = vpop.f32.mrb[0].mxu0
  %v537 = vadd.f32 0.0, %v536
  %v538 = vpop.f32.mrb[0].mxu0
  %v539 = vadd.f32 0.0, %v538
  %v540 = vpop.f32.mrb[0].mxu0
  %v541 = vpop.f32.mrb[0].mxu0
  %542 = vdwg.mxu0
  %v543 = vld [vmem:[%s2] sm:$0xf]
  %545 = vset.pattern.permute.xlu0 0
  %546 = vperm.xlu0 %545, %v543
  %v547 = vpop.permute.xlu0 %546
  %v549 = vmul.f32 %v414, %v547
  %v550 = vmul.f32 %v416, %v547
  %v551 = vmul.f32 %v455, %v547
  %v552 = vmul.f32 %v457, %v547
  %v553 = vmul.f32 %v496, %v547
  %v554 = vmul.f32 %v498, %v547
  %v555 = vmul.f32 %v537, %v547
  %v556 = vmul.f32 %v539, %v547
  %v557 = vld [vmem:[%s3] sm:$0xf]
  %559 = vset.pattern.permute.xlu0 0
  %560 = vperm.xlu0 %559, %v557
  %v561 = vpop.permute.xlu0 %560
  %v563 = vadd.f32 %v549, %v561
  %v564 = vadd.f32 %v550, %v561
  %v565 = vadd.f32 %v551, %v561
  %v566 = vadd.f32 %v552, %v561
  %v567 = vadd.f32 %v553, %v561
  %v568 = vadd.f32 %v554, %v561
  %v569 = vadd.f32 %v555, %v561
  %v570 = vadd.f32 %v556, %v561
  %v571 = vld [vmem:[%s4] sm:$0xff]
  %v572 = vld [vmem:[%s4 + $0x8] sm:$0xff]
  %v573 = vld [vmem:[%s4 + $0x10] sm:$0xff]
  %v574 = vld [vmem:[%s4 + $0x18] sm:$0xff]
  %v579 = vcombine.high %v571, %v571
  %v580 = vcombine.high %v572, %v572
  %v581 = vcombine.high %v573, %v573
  %v582 = vcombine.high %v574, %v574
  %v587 = vadd.f32 %v563, %v571
  %v588 = vadd.f32 %v564, %v579
  %v589 = vadd.f32 %v565, %v572
  %v590 = vadd.f32 %v566, %v580
  %v591 = vadd.f32 %v567, %v573
  %v592 = vadd.f32 %v568, %v581
  %v593 = vadd.f32 %v569, %v574
  %v594 = vadd.f32 %v570, %v582
  %v595 = vmax.f32 %v587, 0.0
  %v596 = vmax.f32 %v588, 0.0
  %v597 = vmax.f32 %v589, 0.0
  %v598 = vmax.f32 %v590, 0.0
  %v599 = vmax.f32 %v591, 0.0
  %v600 = vmax.f32 %v592, 0.0
  %v601 = vmax.f32 %v593, 0.0
  %v602 = vmax.f32 %v594, 0.0
  %v611 = vcombine.low %v595, %v596
  %v612 = vcombine.low %v597, %v598
  %v613 = vcombine.low %v599, %v600
  %v614 = vcombine.low %v601, %v602
  %619 = vst [vmem:[%s5] sm:$0xff] %v611
  %620 = vst [vmem:[%s5 + $0x8] sm:$0xff] %v612
  %621 = vst [vmem:[%s5 + $0x10] sm:$0xff] %v613
  %622 = vst [vmem:[%s5 + $0x18] sm:$0xff] %v614
  // Predicated region
  $region22: #{heterogeneous_resnet_forward.12} parent=0 // pred_check
    _
  $region23: #{heterogeneous_resnet_forward.12} parent=0 // pred_check_branch
    %624 = sbr.rel (0) target = $region25
  $region24: #{heterogeneous_resnet_forward.12} parent=0 // pred_region
    _
  $region25: #{heterogeneous_resnet_forward.12} parent=0 // pred_fallthru
    _
  // Predicated region
  $region26: #{heterogeneous_resnet_forward.12} parent=0 // pred_check
    _
  $region27: #{heterogeneous_resnet_forward.12} parent=0 // pred_check_branch
    %626 = sbr.rel (0) target = $region29
  $region28: #{heterogeneous_resnet_forward.12} parent=0 // pred_region
    _
  $region29: #{heterogeneous_resnet_forward.12} parent=0 // pred_fallthru
    _

// kernel: heterogeneous_resnet_forward.13
$region0: #{heterogeneous_resnet_forward.13}
  #allocation0 [shape = 'u32[]', space=smem, size = 0x4, offset = 0x4, fixed_abs, tag = 'smem constant byte address 0x4 - core index']
  #allocation1 [shape = 'u32[144,128]{1,0:T(1,128)}', space=vmem, size = 0x12000, scoped, tag = 'internal scratch']
  %s0 = inlined_call_operand.vmem [shape: bf16[108,128], index: 0, kind: input, shape index: {}]
  %s1 = inlined_call_operand.vmem [shape: bf16[8,108], index: 1, kind: input, shape index: {}]
  %s2 = inlined_call_operand.vmem [shape: f32[8,1], index: 2, kind: input, shape index: {}]
  %s3 = inlined_call_operand.vmem [shape: f32[8,1], index: 3, kind: input, shape index: {}]
  %s4 = inlined_call_operand.vmem [shape: bf16[8,128], index: 4, kind: output, shape index: {}]
  %s5 = sld [smem:[#allocation0]]
  $region26: #{heterogeneous_resnet_forward.13} parent=0
    _
  %s7 = ssub.s32 1, %s5
  %s8 = scalar_select 0, %s7, %s5
  // Predicated region
  $region2: #{heterogeneous_resnet_forward.13} parent=0 // pred_check
    _
  $region3: #{heterogeneous_resnet_forward.13} parent=0 // pred_check_branch
    %10 = sbr.rel (0) target = $region5
  $region4: #{heterogeneous_resnet_forward.13} parent=0 // pred_region
    _
  $region5: #{heterogeneous_resnet_forward.13} parent=0 // pred_fallthru
    _
  // Predicated region
  $region6: #{heterogeneous_resnet_forward.13} parent=0 // pred_check
    _
  $region7: #{heterogeneous_resnet_forward.13} parent=0 // pred_check_branch
    %12 = sbr.rel (0) target = $region9
  $region8: #{heterogeneous_resnet_forward.13} parent=0 // pred_region
    _
  $region9: #{heterogeneous_resnet_forward.13} parent=0 // pred_fallthru
    _
  // Predicated region
  $region10: #{heterogeneous_resnet_forward.13} parent=0 // pred_check
    _
  $region11: #{heterogeneous_resnet_forward.13} parent=0 // pred_check_branch
    %14 = sbr.rel (0) target = $region13
  $region12: #{heterogeneous_resnet_forward.13} parent=0 // pred_region
    _
  $region13: #{heterogeneous_resnet_forward.13} parent=0 // pred_fallthru
    _
  // Predicated region
  $region14: #{heterogeneous_resnet_forward.13} parent=0 // pred_check
    _
  $region15: #{heterogeneous_resnet_forward.13} parent=0 // pred_check_branch
    %16 = sbr.rel (0) target = $region17
  $region16: #{heterogeneous_resnet_forward.13} parent=0 // pred_region
    _
  $region17: #{heterogeneous_resnet_forward.13} parent=0 // pred_fallthru
    _
  %v18 = vld [vmem:[%s1] sm:$0xf]
  %v19 = vld [vmem:[%s0] sm:$0xf]
  %v20 = vld [vmem:[%s0 + $0x4] sm:$0xf]
  %v21 = vld [vmem:[%s0 + $0x8] sm:$0xf]
  %v22 = vld [vmem:[%s0 + $0xc] sm:$0xf]
  %v23 = vld [vmem:[%s0 + $0x10] sm:$0xf]
  %v24 = vld [vmem:[%s0 + $0x14] sm:$0xf]
  %v25 = vld [vmem:[%s0 + $0x18] sm:$0xf]
  %v26 = vld [vmem:[%s0 + $0x1c] sm:$0xf]
  %v27 = vld [vmem:[%s0 + $0x20] sm:$0xf]
  %v28 = vld [vmem:[%s0 + $0x24] sm:$0xf]
  %v29 = vld [vmem:[%s0 + $0x28] sm:$0xf]
  %v30 = vld [vmem:[%s0 + $0x2c] sm:$0xf]
  %v31 = vld [vmem:[%s0 + $0x30] sm:$0xf]
  %v32 = vld [vmem:[%s0 + $0x34] sm:$0x3]
  %v47 = vunpack.c.l.b16 %v19
  %v48 = vunpack.c.l.b16 %v20
  %v49 = vunpack.c.l.b16 %v21
  %v50 = vunpack.c.l.b16 %v22
  %v51 = vunpack.c.l.b16 %v23
  %v52 = vunpack.c.l.b16 %v24
  %v53 = vunpack.c.l.b16 %v25
  %v54 = vunpack.c.l.b16 %v26
  %v55 = vunpack.c.l.b16 %v27
  %v56 = vunpack.c.l.b16 %v28
  %v57 = vunpack.c.l.b16 %v29
  %v58 = vunpack.c.l.b16 %v30
  %v59 = vunpack.c.l.b16 %v31
  %v60 = vunpack.c.l.b16 %v32
  %v61 = vpack.c.b16 %v48, %v47
  %v62 = vpack.c.b16 %v50, %v49
  %v63 = vpack.c.b16 %v52, %v51
  %v64 = vpack.c.b16 %v54, %v53
  %v65 = vpack.c.b16 %v56, %v55
  %v66 = vpack.c.b16 %v58, %v57
  %v67 = vpack.c.b16 %v60, %v59
  %vm74 = vcmask 883712
  %v76 = vsel %vm74, %v18, 0
  %vm78 = vcmask 1045504
  %v80 = vsel %vm78, %v67, 0
  %82 = vmatprep.subr.bf16.mxu0 0
  %83 = vmatpush1.bf16.msra.mxu0 %v61
  %84 = vmatprep.subr.bf16.mxu0 0
  %85 = vmatpush1.bf16.msra.mxu0 %v62
  %86 = vmatprep.subr.bf16.mxu0 0
  %87 = vmatpush1.bf16.msra.mxu0 %v63
  %88 = vmatprep.subr.bf16.mxu0 0
  %89 = vmatpush1.bf16.msra.mxu0 %v64
  %90 = vmatprep.subr.bf16.mxu0 0
  %91 = vmatpush1.bf16.msra.mxu0 %v65
  %92 = vmatprep.subr.bf16.mxu0 0
  %93 = vmatpush1.bf16.msra.mxu0 %v66
  %94 = vmatprep.subr.bf16.mxu0 0
  %95 = vmatpush1.bf16.msra.mxu0 %v80
  %96 = vmatprep.subr.bf16.mxu0 0
  %97 = vmatpush1.bf16.msra.mxu0 0
  %98 = vmatprep.subr.bf16.mxu0 0
  %99 = vmatpush1.bf16.msra.mxu0 0
  %100 = vmatprep.subr.bf16.mxu0 0
  %101 = vmatpush1.bf16.msra.mxu0 0
  %102 = vmatprep.subr.bf16.mxu0 0
  %103 = vmatpush1.bf16.msra.mxu0 0
  %104 = vmatprep.subr.bf16.mxu0 0
  %105 = vmatpush1.bf16.msra.mxu0 0
  %106 = vmatprep.subr.bf16.mxu0 0
  %107 = vmatpush1.bf16.msra.mxu0 0
  %108 = vmatprep.subr.bf16.mxu0 0
  %109 = vmatpush1.bf16.msra.mxu0 0
  %110 = vmatprep.subr.bf16.mxu0 0
  %111 = vmatpush1.bf16.msra.mxu0 0
  %112 = vmatprep.subr.bf16.mxu0 0
  %113 = vmatpush1.bf16.msra.mxu0 0
  %114 = vmatprep.mubr.bf16.mxu0 0
  %115 = vmatmul.mubr.bf16.gmra.mrb[0].mxu0 %v76
  %v116 = vpop.f32.mrb[0].mxu0
  %v117 = vadd.f32 0.0, %v116
  %v118 = vpop.f32.mrb[0].mxu0
  %v119 = vpop.f32.mrb[0].mxu0
  %v120 = vpop.f32.mrb[0].mxu0
  %121 = vdwg.mxu0
  %v122 = vld [vmem:[%s2] sm:$0xff]
  %124 = vset.pattern.permute.xlu0 0
  %125 = vperm.xlu0 %124, %v122
  %v126 = vpop.permute.xlu0 %125
  %v128 = vmul.f32 %v117, %v126
  %v129 = vld [vmem:[%s3] sm:$0xff]
  %131 = vset.pattern.permute.xlu0 0
  %132 = vperm.xlu0 %131, %v129
  %v133 = vpop.permute.xlu0 %132
  %v135 = vadd.f32 %v128, %v133
  %v136 = vmax.f32 %v135, 0.0
  %v137 = vpack.c.bf16 %v136, %v136
  %138 = vst [vmem:[%s4] sm:$0xf] %v137
  // Predicated region
  $region18: #{heterogeneous_resnet_forward.13} parent=0 // pred_check
    _
  $region19: #{heterogeneous_resnet_forward.13} parent=0 // pred_check_branch
    %140 = sbr.rel (0) target = $region21
  $region20: #{heterogeneous_resnet_forward.13} parent=0 // pred_region
    _
  $region21: #{heterogeneous_resnet_forward.13} parent=0 // pred_fallthru
    _
  // Predicated region
  $region22: #{heterogeneous_resnet_forward.13} parent=0 // pred_check
    _
  $region23: #{heterogeneous_resnet_forward.13} parent=0 // pred_check_branch
    %142 = sbr.rel (0) target = $region25
  $region24: #{heterogeneous_resnet_forward.13} parent=0 // pred_region
    _
  $region25: #{heterogeneous_resnet_forward.13} parent=0 // pred_fallthru
    _

// kernel: heterogeneous_resnet_forward.14
$region0: #{heterogeneous_resnet_forward.14}
  #allocation0 [shape = 'u32[]', space=smem, size = 0x4, offset = 0x4, fixed_abs, tag = 'smem constant byte address 0x4 - core index']
  #allocation1 [shape = 'u32[144,128]{1,0:T(1,128)}', space=vmem, size = 0x12000, scoped, tag = 'internal scratch']
  %s0 = inlined_call_operand.vmem [shape: bf16[216,128], index: 0, kind: input, shape index: {}]
  %s1 = inlined_call_operand.vmem [shape: bf16[8,216], index: 1, kind: input, shape index: {}]
  %s2 = inlined_call_operand.vmem [shape: f32[8,1], index: 2, kind: input, shape index: {}]
  %s3 = inlined_call_operand.vmem [shape: f32[8,1], index: 3, kind: input, shape index: {}]
  %s4 = inlined_call_operand.vmem [shape: bf16[4,128], index: 4, kind: input, shape index: {}]
  %s5 = inlined_call_operand.vmem [shape: bf16[8,4], index: 5, kind: input, shape index: {}]
  %s6 = inlined_call_operand.vmem [shape: f32[8,1], index: 6, kind: input, shape index: {}]
  %s7 = inlined_call_operand.vmem [shape: f32[8,1], index: 7, kind: input, shape index: {}]
  %s8 = inlined_call_operand.vmem [shape: f32[8,128], index: 8, kind: output, shape index: {}]
  %s9 = sld [smem:[#allocation0]]
  $region42: #{heterogeneous_resnet_forward.14} parent=0
    _
  %s11 = ssub.s32 1, %s9
  %s12 = scalar_select 0, %s11, %s9
  // Predicated region
  $region2: #{heterogeneous_resnet_forward.14} parent=0 // pred_check
    _
  $region3: #{heterogeneous_resnet_forward.14} parent=0 // pred_check_branch
    %14 = sbr.rel (0) target = $region5
  $region4: #{heterogeneous_resnet_forward.14} parent=0 // pred_region
    _
  $region5: #{heterogeneous_resnet_forward.14} parent=0 // pred_fallthru
    _
  // Predicated region
  $region6: #{heterogeneous_resnet_forward.14} parent=0 // pred_check
    _
  $region7: #{heterogeneous_resnet_forward.14} parent=0 // pred_check_branch
    %16 = sbr.rel (0) target = $region9
  $region8: #{heterogeneous_resnet_forward.14} parent=0 // pred_region
    _
  $region9: #{heterogeneous_resnet_forward.14} parent=0 // pred_fallthru
    _
  // Predicated region
  $region10: #{heterogeneous_resnet_forward.14} parent=0 // pred_check
    _
  $region11: #{heterogeneous_resnet_forward.14} parent=0 // pred_check_branch
    %18 = sbr.rel (0) target = $region13
  $region12: #{heterogeneous_resnet_forward.14} parent=0 // pred_region
    _
  $region13: #{heterogeneous_resnet_forward.14} parent=0 // pred_fallthru
    _
  // Predicated region
  $region14: #{heterogeneous_resnet_forward.14} parent=0 // pred_check
    _
  $region15: #{heterogeneous_resnet_forward.14} parent=0 // pred_check_branch
    %20 = sbr.rel (0) target = $region17
  $region16: #{heterogeneous_resnet_forward.14} parent=0 // pred_region
    _
  $region17: #{heterogeneous_resnet_forward.14} parent=0 // pred_fallthru
    _
  // Predicated region
  $region18: #{heterogeneous_resnet_forward.14} parent=0 // pred_check
    _
  $region19: #{heterogeneous_resnet_forward.14} parent=0 // pred_check_branch
    %22 = sbr.rel (0) target = $region21
  $region20: #{heterogeneous_resnet_forward.14} parent=0 // pred_region
    _
  $region21: #{heterogeneous_resnet_forward.14} parent=0 // pred_fallthru
    _
  // Predicated region
  $region22: #{heterogeneous_resnet_forward.14} parent=0 // pred_check
    _
  $region23: #{heterogeneous_resnet_forward.14} parent=0 // pred_check_branch
    %24 = sbr.rel (0) target = $region25
  $region24: #{heterogeneous_resnet_forward.14} parent=0 // pred_region
    _
  $region25: #{heterogeneous_resnet_forward.14} parent=0 // pred_fallthru
    _
  // Predicated region
  $region26: #{heterogeneous_resnet_forward.14} parent=0 // pred_check
    _
  $region27: #{heterogeneous_resnet_forward.14} parent=0 // pred_check_branch
    %26 = sbr.rel (0) target = $region29
  $region28: #{heterogeneous_resnet_forward.14} parent=0 // pred_region
    _
  $region29: #{heterogeneous_resnet_forward.14} parent=0 // pred_fallthru
    _
  // Predicated region
  $region30: #{heterogeneous_resnet_forward.14} parent=0 // pred_check
    _
  $region31: #{heterogeneous_resnet_forward.14} parent=0 // pred_check_branch
    %28 = sbr.rel (0) target = $region33
  $region32: #{heterogeneous_resnet_forward.14} parent=0 // pred_region
    _
  $region33: #{heterogeneous_resnet_forward.14} parent=0 // pred_fallthru
    _
  %v30 = vld [vmem:[%s1] sm:$0xff]
  %v31 = vld [vmem:[%s0] sm:$0xf]
  %v32 = vld [vmem:[%s0 + $0x4] sm:$0xf]
  %v33 = vld [vmem:[%s0 + $0x8] sm:$0xf]
  %v34 = vld [vmem:[%s0 + $0xc] sm:$0xf]
  %v35 = vld [vmem:[%s0 + $0x10] sm:$0xf]
  %v36 = vld [vmem:[%s0 + $0x14] sm:$0xf]
  %v37 = vld [vmem:[%s0 + $0x18] sm:$0xf]
  %v38 = vld [vmem:[%s0 + $0x1c] sm:$0xf]
  %v39 = vld [vmem:[%s0 + $0x20] sm:$0xf]
  %v40 = vld [vmem:[%s0 + $0x24] sm:$0xf]
  %v41 = vld [vmem:[%s0 + $0x28] sm:$0xf]
  %v42 = vld [vmem:[%s0 + $0x2c] sm:$0xf]
  %v43 = vld [vmem:[%s0 + $0x30] sm:$0xf]
  %v44 = vld [vmem:[%s0 + $0x34] sm:$0xf]
  %v45 = vld [vmem:[%s0 + $0x38] sm:$0xf]
  %v46 = vld [vmem:[%s0 + $0x3c] sm:$0xf]
  %v47 = vld [vmem:[%s0 + $0x40] sm:$0xf]
  %v48 = vld [vmem:[%s0 + $0x44] sm:$0xf]
  %v49 = vld [vmem:[%s0 + $0x48] sm:$0xf]
  %v50 = vld [vmem:[%s0 + $0x4c] sm:$0xf]
  %v51 = vld [vmem:[%s0 + $0x50] sm:$0xf]
  %v52 = vld [vmem:[%s0 + $0x54] sm:$0xf]
  %v53 = vld [vmem:[%s0 + $0x58] sm:$0xf]
  %v54 = vld [vmem:[%s0 + $0x5c] sm:$0xf]
  %v55 = vld [vmem:[%s0 + $0x60] sm:$0xf]
  %v56 = vld [vmem:[%s0 + $0x64] sm:$0xf]
  %v57 = vld [vmem:[%s0 + $0x68] sm:$0xf]
  %v59 = vunpack.c.l.b16 %v30
  %v60 = vunpack.c.h.b16 %v30
  %v61 = vpack.c.b16 %v59, %v59
  %v62 = vpack.c.b16 %v60, %v60
  %v91 = vunpack.c.l.b16 %v31
  %v92 = vunpack.c.l.b16 %v32
  %v93 = vunpack.c.l.b16 %v33
  %v94 = vunpack.c.l.b16 %v34
  %v95 = vunpack.c.l.b16 %v35
  %v96 = vunpack.c.l.b16 %v36
  %v97 = vunpack.c.l.b16 %v37
  %v98 = vunpack.c.l.b16 %v38
  %v99 = vunpack.c.l.b16 %v39
  %v100 = vunpack.c.l.b16 %v40
  %v101 = vunpack.c.l.b16 %v41
  %v102 = vunpack.c.l.b16 %v42
  %v103 = vunpack.c.l.b16 %v43
  %v104 = vunpack.c.l.b16 %v44
  %v105 = vunpack.c.l.b16 %v45
  %v106 = vunpack.c.l.b16 %v46
  %v107 = vunpack.c.l.b16 %v47
  %v108 = vunpack.c.l.b16 %v48
  %v109 = vunpack.c.l.b16 %v49
  %v110 = vunpack.c.l.b16 %v50
  %v111 = vunpack.c.l.b16 %v51
  %v112 = vunpack.c.l.b16 %v52
  %v113 = vunpack.c.l.b16 %v53
  %v114 = vunpack.c.l.b16 %v54
  %v115 = vunpack.c.l.b16 %v55
  %v116 = vunpack.c.l.b16 %v56
  %v117 = vunpack.c.l.b16 %v57
  %v118 = vpack.c.b16 %v92, %v91
  %v119 = vpack.c.b16 %v94, %v93
  %v120 = vpack.c.b16 %v96, %v95
  %v121 = vpack.c.b16 %v98, %v97
  %v122 = vpack.c.b16 %v100, %v99
  %v123 = vpack.c.b16 %v102, %v101
  %v124 = vpack.c.b16 %v104, %v103
  %v125 = vpack.c.b16 %v106, %v105
  %v126 = vpack.c.b16 %v108, %v107
  %v127 = vpack.c.b16 %v110, %v109
  %v128 = vpack.c.b16 %v112, %v111
  %v129 = vpack.c.b16 %v114, %v113
  %v130 = vpack.c.b16 %v116, %v115
  %v131 = vpack.c.b16 %v117, %v117
  %vm145 = vcmask 719872
  %v147 = vsel %vm145, %v62, 0
  %vm149 = vcmask 1043456
  %v151 = vsel %vm149, %v131, 0
  %153 = vmatprep.subr.bf16.mxu0 0
  %154 = vmatpush1.bf16.msra.mxu0 %v118
  %155 = vmatprep.subr.bf16.mxu0 0
  %156 = vmatpush1.bf16.msra.mxu0 %v119
  %157 = vmatprep.subr.bf16.mxu0 0
  %158 = vmatpush1.bf16.msra.mxu0 %v120
  %159 = vmatprep.subr.bf16.mxu0 0
  %160 = vmatpush1.bf16.msra.mxu0 %v121
  %161 = vmatprep.subr.bf16.mxu0 0
  %162 = vmatpush1.bf16.msra.mxu0 %v122
  %163 = vmatprep.subr.bf16.mxu0 0
  %164 = vmatpush1.bf16.msra.mxu0 %v123
  %165 = vmatprep.subr.bf16.mxu0 0
  %166 = vmatpush1.bf16.msra.mxu0 %v124
  %167 = vmatprep.subr.bf16.mxu0 0
  %168 = vmatpush1.bf16.msra.mxu0 %v125
  %169 = vmatprep.subr.bf16.mxu0 0
  %170 = vmatpush1.bf16.msra.mxu0 %v126
  %171 = vmatprep.subr.bf16.mxu0 0
  %172 = vmatpush1.bf16.msra.mxu0 %v127
  %173 = vmatprep.subr.bf16.mxu0 0
  %174 = vmatpush1.bf16.msra.mxu0 %v128
  %175 = vmatprep.subr.bf16.mxu0 0
  %176 = vmatpush1.bf16.msra.mxu0 %v129
  %177 = vmatprep.subr.bf16.mxu0 0
  %178 = vmatpush1.bf16.msra.mxu0 %v130
  %179 = vmatprep.subr.bf16.mxu0 0
  %180 = vmatpush1.bf16.msra.mxu0 %v151
  %181 = vmatprep.subr.bf16.mxu0 0
  %182 = vmatpush1.bf16.msra.mxu0 0
  %183 = vmatprep.subr.bf16.mxu0 0
  %184 = vmatpush1.bf16.msra.mxu0 0
  %185 = vmatprep.mubr.bf16.mxu0 %v147
  %186 = vmatmul.mubr.bf16.gmra.mrb[0].mxu0 %v61
  %v187 = vpop.f32.mrb[0].mxu0
  %v188 = vadd.f32 0.0, %v187
  %v189 = vpop.f32.mrb[0].mxu0
  %v190 = vpop.f32.mrb[0].mxu0
  %v191 = vpop.f32.mrb[0].mxu0
  %192 = vdwg.mxu0
  %v193 = vld [vmem:[%s2] sm:$0xff]
  %195 = vset.pattern.permute.xlu0 0
  %196 = vperm.xlu0 %195, %v193
  %v197 = vpop.permute.xlu0 %196
  %v199 = vmul.f32 %v188, %v197
  %v200 = vld [vmem:[%s3] sm:$0xff]
  %202 = vset.pattern.permute.xlu0 0
  %203 = vperm.xlu0 %202, %v200
  %v204 = vpop.permute.xlu0 %203
  %v206 = vadd.f32 %v199, %v204
  %v207 = vld [vmem:[%s5] sm:$0xf]
  %v208 = vld [vmem:[%s4] sm:$0x3]
  %vm209 = vcmask 31744
  %v211 = vsel %vm209, %v207, 0
  %vm213 = vcmask 1041408
  %v215 = vsel %vm213, %v208, 0
  %217 = vmatprep.subr.bf16.mxu0 0
  %218 = vmatpush1.bf16.msra.mxu0 %v215
  %219 = vmatprep.subr.bf16.mxu0 0
  %220 = vmatpush1.bf16.msra.mxu0 0
  %221 = vmatprep.subr.bf16.mxu0 0
  %222 = vmatpush1.bf16.msra.mxu0 0
  %223 = vmatprep.subr.bf16.mxu0 0
  %224 = vmatpush1.bf16.msra.mxu0 0
  %225 = vmatprep.subr.bf16.mxu0 0
  %226 = vmatpush1.bf16.msra.mxu0 0
  %227 = vmatprep.subr.bf16.mxu0 0
  %228 = vmatpush1.bf16.msra.mxu0 0
  %229 = vmatprep.subr.bf16.mxu0 0
  %230 = vmatpush1.bf16.msra.mxu0 0
  %231 = vmatprep.subr.bf16.mxu0 0
  %232 = vmatpush1.bf16.msra.mxu0 0
  %233 = vmatprep.subr.bf16.mxu0 0
  %234 = vmatpush1.bf16.msra.mxu0 0
  %235 = vmatprep.subr.bf16.mxu0 0
  %236 = vmatpush1.bf16.msra.mxu0 0
  %237 = vmatprep.subr.bf16.mxu0 0
  %238 = vmatpush1.bf16.msra.mxu0 0
  %239 = vmatprep.subr.bf16.mxu0 0
  %240 = vmatpush1.bf16.msra.mxu0 0
  %241 = vmatprep.subr.bf16.mxu0 0
  %242 = vmatpush1.bf16.msra.mxu0 0
  %243 = vmatprep.subr.bf16.mxu0 0
  %244 = vmatpush1.bf16.msra.mxu0 0
  %245 = vmatprep.subr.bf16.mxu0 0
  %246 = vmatpush1.bf16.msra.mxu0 0
  %247 = vmatprep.subr.bf16.mxu0 0
  %248 = vmatpush1.bf16.msra.mxu0 0
  %249 = vmatprep.mubr.bf16.mxu0 0
  %250 = vmatmul.mubr.bf16.gmra.mrb[0].mxu0 %v211
  %v251 = vpop.f32.mrb[0].mxu0
  %v252 = vadd.f32 0.0, %v251
  %v253 = vpop.f32.mrb[0].mxu0
  %v254 = vpop.f32.mrb[0].mxu0
  %v255 = vpop.f32.mrb[0].mxu0
  %256 = vdwg.mxu0
  %v257 = vld [vmem:[%s6] sm:$0xff]
  %259 = vset.pattern.permute.xlu0 0
  %260 = vperm.xlu0 %259, %v257
  %v261 = vpop.permute.xlu0 %260
  %v263 = vmul.f32 %v252, %v261
  %v264 = vld [vmem:[%s7] sm:$0xff]
  %266 = vset.pattern.permute.xlu0 0
  %267 = vperm.xlu0 %266, %v264
  %v268 = vpop.permute.xlu0 %267
  %v270 = vadd.f32 %v263, %v268
  %v271 = vadd.f32 %v206, %v270
  %v272 = vmax.f32 %v271, 0.0
  %273 = vst [vmem:[%s8] sm:$0xff] %v272
  // Predicated region
  $region34: #{heterogeneous_resnet_forward.14} parent=0 // pred_check
    _
  $region35: #{heterogeneous_resnet_forward.14} parent=0 // pred_check_branch
    %275 = sbr.rel (0) target = $region37
  $region36: #{heterogeneous_resnet_forward.14} parent=0 // pred_region
    _
  $region37: #{heterogeneous_resnet_forward.14} parent=0 // pred_fallthru
    _
  // Predicated region
  $region38: #{heterogeneous_resnet_forward.14} parent=0 // pred_check
    _
  $region39: #{heterogeneous_resnet_forward.14} parent=0 // pred_check_branch
    %277 = sbr.rel (0) target = $region41
  $region40: #{heterogeneous_resnet_forward.14} parent=0 // pred_region
    _
  $region41: #{heterogeneous_resnet_forward.14} parent=0 // pred_fallthru
    _

// kernel: heterogeneous_resnet_forward.15
$region0: #{heterogeneous_resnet_forward.15}
  #allocation0 [shape = 'u32[]', space=smem, size = 0x4, offset = 0x4, fixed_abs, tag = 'smem constant byte address 0x4 - core index']
  #allocation1 [shape = 'u32[144,128]{1,0:T(1,128)}', space=vmem, size = 0x12000, scoped, tag = 'internal scratch']
  %s0 = inlined_call_operand.vmem [shape: bf16[216,16], index: 0, kind: input, shape index: {}]
  %s1 = inlined_call_operand.vmem [shape: bf16[16,216], index: 1, kind: input, shape index: {}]
  %s2 = inlined_call_operand.vmem [shape: f32[16,1], index: 2, kind: input, shape index: {}]
  %s3 = inlined_call_operand.vmem [shape: f32[16,1], index: 3, kind: input, shape index: {}]
  %s4 = inlined_call_operand.vmem [shape: bf16[16,16], index: 4, kind: output, shape index: {}]
  %s5 = sld [smem:[#allocation0]]
  $region26: #{heterogeneous_resnet_forward.15} parent=0
    _
  %s7 = ssub.s32 1, %s5
  %s8 = scalar_select 0, %s7, %s5
  // Predicated region
  $region2: #{heterogeneous_resnet_forward.15} parent=0 // pred_check
    _
  $region3: #{heterogeneous_resnet_forward.15} parent=0 // pred_check_branch
    %10 = sbr.rel (0) target = $region5
  $region4: #{heterogeneous_resnet_forward.15} parent=0 // pred_region
    _
  $region5: #{heterogeneous_resnet_forward.15} parent=0 // pred_fallthru
    _
  // Predicated region
  $region6: #{heterogeneous_resnet_forward.15} parent=0 // pred_check
    _
  $region7: #{heterogeneous_resnet_forward.15} parent=0 // pred_check_branch
    %12 = sbr.rel (0) target = $region9
  $region8: #{heterogeneous_resnet_forward.15} parent=0 // pred_region
    _
  $region9: #{heterogeneous_resnet_forward.15} parent=0 // pred_fallthru
    _
  // Predicated region
  $region10: #{heterogeneous_resnet_forward.15} parent=0 // pred_check
    _
  $region11: #{heterogeneous_resnet_forward.15} parent=0 // pred_check_branch
    %14 = sbr.rel (0) target = $region13
  $region12: #{heterogeneous_resnet_forward.15} parent=0 // pred_region
    _
  $region13: #{heterogeneous_resnet_forward.15} parent=0 // pred_fallthru
    _
  // Predicated region
  $region14: #{heterogeneous_resnet_forward.15} parent=0 // pred_check
    _
  $region15: #{heterogeneous_resnet_forward.15} parent=0 // pred_check_branch
    %16 = sbr.rel (0) target = $region17
  $region16: #{heterogeneous_resnet_forward.15} parent=0 // pred_region
    _
  $region17: #{heterogeneous_resnet_forward.15} parent=0 // pred_fallthru
    _
  %v18 = vld [vmem:[%s1] sm:$0xff]
  %v19 = vld [vmem:[%s1 + $0x8] sm:$0xff]
  %v20 = vld [vmem:[%s0] sm:$0xf]
  %v21 = vld [vmem:[%s0 + $0x4] sm:$0xf]
  %v22 = vld [vmem:[%s0 + $0x8] sm:$0xf]
  %v23 = vld [vmem:[%s0 + $0xc] sm:$0xf]
  %v24 = vld [vmem:[%s0 + $0x10] sm:$0xf]
  %v25 = vld [vmem:[%s0 + $0x14] sm:$0xf]
  %v26 = vld [vmem:[%s0 + $0x18] sm:$0xf]
  %v27 = vld [vmem:[%s0 + $0x1c] sm:$0xf]
  %v28 = vld [vmem:[%s0 + $0x20] sm:$0xf]
  %v29 = vld [vmem:[%s0 + $0x24] sm:$0xf]
  %v30 = vld [vmem:[%s0 + $0x28] sm:$0xf]
  %v31 = vld [vmem:[%s0 + $0x2c] sm:$0xf]
  %v32 = vld [vmem:[%s0 + $0x30] sm:$0xf]
  %v33 = vld [vmem:[%s0 + $0x34] sm:$0xf]
  %v34 = vld [vmem:[%s0 + $0x38] sm:$0xf]
  %v35 = vld [vmem:[%s0 + $0x3c] sm:$0xf]
  %v36 = vld [vmem:[%s0 + $0x40] sm:$0xf]
  %v37 = vld [vmem:[%s0 + $0x44] sm:$0xf]
  %v38 = vld [vmem:[%s0 + $0x48] sm:$0xf]
  %v39 = vld [vmem:[%s0 + $0x4c] sm:$0xf]
  %v40 = vld [vmem:[%s0 + $0x50] sm:$0xf]
  %v41 = vld [vmem:[%s0 + $0x54] sm:$0xf]
  %v42 = vld [vmem:[%s0 + $0x58] sm:$0xf]
  %v43 = vld [vmem:[%s0 + $0x5c] sm:$0xf]
  %v44 = vld [vmem:[%s0 + $0x60] sm:$0xf]
  %v45 = vld [vmem:[%s0 + $0x64] sm:$0xf]
  %v46 = vld [vmem:[%s0 + $0x68] sm:$0xf]
  %v49 = vunpack.c.l.b16 %v18
  %v50 = vunpack.c.h.b16 %v18
  %v51 = vunpack.c.l.b16 %v19
  %v52 = vunpack.c.h.b16 %v19
  %v53 = vpack.c.b16 %v51, %v49
  %v54 = vpack.c.b16 %v52, %v50
  %v83 = vunpack.c.l.b16 %v20
  %v84 = vunpack.c.l.b16 %v21
  %v85 = vunpack.c.l.b16 %v22
  %v86 = vunpack.c.l.b16 %v23
  %v87 = vunpack.c.l.b16 %v24
  %v88 = vunpack.c.l.b16 %v25
  %v89 = vunpack.c.l.b16 %v26
  %v90 = vunpack.c.l.b16 %v27
  %v91 = vunpack.c.l.b16 %v28
  %v92 = vunpack.c.l.b16 %v29
  %v93 = vunpack.c.l.b16 %v30
  %v94 = vunpack.c.l.b16 %v31
  %v95 = vunpack.c.l.b16 %v32
  %v96 = vunpack.c.l.b16 %v33
  %v97 = vunpack.c.l.b16 %v34
  %v98 = vunpack.c.l.b16 %v35
  %v99 = vunpack.c.l.b16 %v36
  %v100 = vunpack.c.l.b16 %v37
  %v101 = vunpack.c.l.b16 %v38
  %v102 = vunpack.c.l.b16 %v39
  %v103 = vunpack.c.l.b16 %v40
  %v104 = vunpack.c.l.b16 %v41
  %v105 = vunpack.c.l.b16 %v42
  %v106 = vunpack.c.l.b16 %v43
  %v107 = vunpack.c.l.b16 %v44
  %v108 = vunpack.c.l.b16 %v45
  %v109 = vunpack.c.l.b16 %v46
  %v110 = vpack.c.b16 %v84, %v83
  %v111 = vpack.c.b16 %v86, %v85
  %v112 = vpack.c.b16 %v88, %v87
  %v113 = vpack.c.b16 %v90, %v89
  %v114 = vpack.c.b16 %v92, %v91
  %v115 = vpack.c.b16 %v94, %v93
  %v116 = vpack.c.b16 %v96, %v95
  %v117 = vpack.c.b16 %v98, %v97
  %v118 = vpack.c.b16 %v100, %v99
  %v119 = vpack.c.b16 %v102, %v101
  %v120 = vpack.c.b16 %v104, %v103
  %v121 = vpack.c.b16 %v106, %v105
  %v122 = vpack.c.b16 %v108, %v107
  %v123 = vpack.c.b16 %v109, %v109
  %vm137 = vcmask 719872
  %v139 = vsel %vm137, %v54, 0
  %vm141 = vcmask 1043456
  %v143 = vsel %vm141, %v123, 0
  %145 = vmatprep.subr.bf16.mxu0 0
  %146 = vmatpush1.bf16.msra.mxu0 %v110
  %147 = vmatprep.subr.bf16.mxu0 0
  %148 = vmatpush1.bf16.msra.mxu0 %v111
  %149 = vmatprep.subr.bf16.mxu0 0
  %150 = vmatpush1.bf16.msra.mxu0 %v112
  %151 = vmatprep.subr.bf16.mxu0 0
  %152 = vmatpush1.bf16.msra.mxu0 %v113
  %153 = vmatprep.subr.bf16.mxu0 0
  %154 = vmatpush1.bf16.msra.mxu0 %v114
  %155 = vmatprep.subr.bf16.mxu0 0
  %156 = vmatpush1.bf16.msra.mxu0 %v115
  %157 = vmatprep.subr.bf16.mxu0 0
  %158 = vmatpush1.bf16.msra.mxu0 %v116
  %159 = vmatprep.subr.bf16.mxu0 0
  %160 = vmatpush1.bf16.msra.mxu0 %v117
  %161 = vmatprep.subr.bf16.mxu0 0
  %162 = vmatpush1.bf16.msra.mxu0 %v118
  %163 = vmatprep.subr.bf16.mxu0 0
  %164 = vmatpush1.bf16.msra.mxu0 %v119
  %165 = vmatprep.subr.bf16.mxu0 0
  %166 = vmatpush1.bf16.msra.mxu0 %v120
  %167 = vmatprep.subr.bf16.mxu0 0
  %168 = vmatpush1.bf16.msra.mxu0 %v121
  %169 = vmatprep.subr.bf16.mxu0 0
  %170 = vmatpush1.bf16.msra.mxu0 %v122
  %171 = vmatprep.subr.bf16.mxu0 0
  %172 = vmatpush1.bf16.msra.mxu0 %v143
  %173 = vmatprep.subr.bf16.mxu0 0
  %174 = vmatpush1.bf16.msra.mxu0 0
  %175 = vmatprep.subr.bf16.mxu0 0
  %176 = vmatpush1.bf16.msra.mxu0 0
  %177 = vmatprep.mubr.bf16.mxu0 %v139
  %178 = vmatmul.mubr.bf16.gmra.mrb[0].mxu0 %v53
  %v179 = vpop.f32.mrb[0].mxu0
  %v180 = vadd.f32 0.0, %v179
  %v181 = vpop.f32.mrb[0].mxu0
  %v182 = vpop.f32.mrb[0].mxu0
  %v183 = vadd.f32 0.0, %v182
  %v184 = vpop.f32.mrb[0].mxu0
  %185 = vdwg.mxu0
  %v186 = vld [vmem:[%s2] sm:$0xff]
  %v187 = vld [vmem:[%s2 + $0x8] sm:$0xff]
  %189 = vset.pattern.permute.xlu0 0
  %190 = vperm.xlu0 %189, %v186
  %v191 = vpop.permute.xlu0 %190
  %194 = vset.pattern.permute.xlu0 0
  %195 = vperm.xlu0 %194, %v187
  %v196 = vpop.permute.xlu0 %195
  %v198 = vmul.f32 %v180, %v191
  %v199 = vmul.f32 %v183, %v196
  %v200 = vld [vmem:[%s3] sm:$0xff]
  %v201 = vld [vmem:[%s3 + $0x8] sm:$0xff]
  %203 = vset.pattern.permute.xlu0 0
  %204 = vperm.xlu0 %203, %v200
  %v205 = vpop.permute.xlu0 %204
  %208 = vset.pattern.permute.xlu0 0
  %209 = vperm.xlu0 %208, %v201
  %v210 = vpop.permute.xlu0 %209
  %v212 = vadd.f32 %v198, %v205
  %v213 = vadd.f32 %v199, %v210
  %v214 = vmax.f32 %v212, 0.0
  %v215 = vmax.f32 %v213, 0.0
  %v216 = vpack.c.bf16 %v215, %v214
  %v218 = vunpack.c.l.b16 %v216
  %v219 = vunpack.c.h.b16 %v216
  %v220 = vpack.c.b16 %v218, %v218
  %v221 = vpack.c.b16 %v219, %v219
  %vm224 = vcmask 125952
  %225 = vst.msk [vmem:[%s4] sm:$0xf] %vm224, %v220
  %226 = vst.msk [vmem:[%s4 + $0x4] sm:$0xf] %vm224, %v221
  // Predicated region
  $region18: #{heterogeneous_resnet_forward.15} parent=0 // pred_check
    _
  $region19: #{heterogeneous_resnet_forward.15} parent=0 // pred_check_branch
    %228 = sbr.rel (0) target = $region21
  $region20: #{heterogeneous_resnet_forward.15} parent=0 // pred_region
    _
  $region21: #{heterogeneous_resnet_forward.15} parent=0 // pred_fallthru
    _
  // Predicated region
  $region22: #{heterogeneous_resnet_forward.15} parent=0 // pred_check
    _
  $region23: #{heterogeneous_resnet_forward.15} parent=0 // pred_check_branch
    %230 = sbr.rel (0) target = $region25
  $region24: #{heterogeneous_resnet_forward.15} parent=0 // pred_region
    _
  $region25: #{heterogeneous_resnet_forward.15} parent=0 // pred_fallthru
    _

// kernel: heterogeneous_resnet_forward.16
$region0: #{heterogeneous_resnet_forward.16}
  #allocation0 [shape = 'u32[]', space=smem, size = 0x4, offset = 0x4, fixed_abs, tag = 'smem constant byte address 0x4 - core index']
  #allocation1 [shape = 'u32[144,128]{1,0:T(1,128)}', space=vmem, size = 0x12000, scoped, tag = 'internal scratch']
  %s0 = inlined_call_operand.vmem [shape: bf16[432,16], index: 0, kind: input, shape index: {}]
  %s1 = inlined_call_operand.vmem [shape: bf16[16,432], index: 1, kind: input, shape index: {}]
  %s2 = inlined_call_operand.vmem [shape: f32[16,1], index: 2, kind: input, shape index: {}]
  %s3 = inlined_call_operand.vmem [shape: f32[16,1], index: 3, kind: input, shape index: {}]
  %s4 = inlined_call_operand.vmem [shape: bf16[8,16], index: 4, kind: input, shape index: {}]
  %s5 = inlined_call_operand.vmem [shape: bf16[16,8], index: 5, kind: input, shape index: {}]
  %s6 = inlined_call_operand.vmem [shape: f32[16,1], index: 6, kind: input, shape index: {}]
  %s7 = inlined_call_operand.vmem [shape: f32[16,1], index: 7, kind: input, shape index: {}]
  %s8 = inlined_call_operand.vmem [shape: f32[16,16], index: 8, kind: output, shape index: {}]
  %s9 = sld [smem:[#allocation0]]
  $region42: #{heterogeneous_resnet_forward.16} parent=0
    _
  %s11 = ssub.s32 1, %s9
  %s12 = scalar_select 0, %s11, %s9
  // Predicated region
  $region2: #{heterogeneous_resnet_forward.16} parent=0 // pred_check
    _
  $region3: #{heterogeneous_resnet_forward.16} parent=0 // pred_check_branch
    %14 = sbr.rel (0) target = $region5
  $region4: #{heterogeneous_resnet_forward.16} parent=0 // pred_region
    _
  $region5: #{heterogeneous_resnet_forward.16} parent=0 // pred_fallthru
    _
  // Predicated region
  $region6: #{heterogeneous_resnet_forward.16} parent=0 // pred_check
    _
  $region7: #{heterogeneous_resnet_forward.16} parent=0 // pred_check_branch
    %16 = sbr.rel (0) target = $region9
  $region8: #{heterogeneous_resnet_forward.16} parent=0 // pred_region
    _
  $region9: #{heterogeneous_resnet_forward.16} parent=0 // pred_fallthru
    _
  // Predicated region
  $region10: #{heterogeneous_resnet_forward.16} parent=0 // pred_check
    _
  $region11: #{heterogeneous_resnet_forward.16} parent=0 // pred_check_branch
    %18 = sbr.rel (0) target = $region13
  $region12: #{heterogeneous_resnet_forward.16} parent=0 // pred_region
    _
  $region13: #{heterogeneous_resnet_forward.16} parent=0 // pred_fallthru
    _
  // Predicated region
  $region14: #{heterogeneous_resnet_forward.16} parent=0 // pred_check
    _
  $region15: #{heterogeneous_resnet_forward.16} parent=0 // pred_check_branch
    %20 = sbr.rel (0) target = $region17
  $region16: #{heterogeneous_resnet_forward.16} parent=0 // pred_region
    _
  $region17: #{heterogeneous_resnet_forward.16} parent=0 // pred_fallthru
    _
  // Predicated region
  $region18: #{heterogeneous_resnet_forward.16} parent=0 // pred_check
    _
  $region19: #{heterogeneous_resnet_forward.16} parent=0 // pred_check_branch
    %22 = sbr.rel (0) target = $region21
  $region20: #{heterogeneous_resnet_forward.16} parent=0 // pred_region
    _
  $region21: #{heterogeneous_resnet_forward.16} parent=0 // pred_fallthru
    _
  // Predicated region
  $region22: #{heterogeneous_resnet_forward.16} parent=0 // pred_check
    _
  $region23: #{heterogeneous_resnet_forward.16} parent=0 // pred_check_branch
    %24 = sbr.rel (0) target = $region25
  $region24: #{heterogeneous_resnet_forward.16} parent=0 // pred_region
    _
  $region25: #{heterogeneous_resnet_forward.16} parent=0 // pred_fallthru
    _
  // Predicated region
  $region26: #{heterogeneous_resnet_forward.16} parent=0 // pred_check
    _
  $region27: #{heterogeneous_resnet_forward.16} parent=0 // pred_check_branch
    %26 = sbr.rel (0) target = $region29
  $region28: #{heterogeneous_resnet_forward.16} parent=0 // pred_region
    _
  $region29: #{heterogeneous_resnet_forward.16} parent=0 // pred_fallthru
    _
  // Predicated region
  $region30: #{heterogeneous_resnet_forward.16} parent=0 // pred_check
    _
  $region31: #{heterogeneous_resnet_forward.16} parent=0 // pred_check_branch
    %28 = sbr.rel (0) target = $region33
  $region32: #{heterogeneous_resnet_forward.16} parent=0 // pred_region
    _
  $region33: #{heterogeneous_resnet_forward.16} parent=0 // pred_fallthru
    _
  %v30 = vld [vmem:[%s1] sm:$0xff]
  %v31 = vld [vmem:[%s1 + $0x8] sm:$0xff]
  %v32 = vld [vmem:[%s1 + $0x10] sm:$0xff]
  %v33 = vld [vmem:[%s1 + $0x18] sm:$0xff]
  %v34 = vld [vmem:[%s0] sm:$0xf]
  %v35 = vld [vmem:[%s0 + $0x4] sm:$0xf]
  %v36 = vld [vmem:[%s0 + $0x8] sm:$0xf]
  %v37 = vld [vmem:[%s0 + $0xc] sm:$0xf]
  %v38 = vld [vmem:[%s0 + $0x10] sm:$0xf]
  %v39 = vld [vmem:[%s0 + $0x14] sm:$0xf]
  %v40 = vld [vmem:[%s0 + $0x18] sm:$0xf]
  %v41 = vld [vmem:[%s0 + $0x1c] sm:$0xf]
  %v42 = vld [vmem:[%s0 + $0x20] sm:$0xf]
  %v43 = vld [vmem:[%s0 + $0x24] sm:$0xf]
  %v44 = vld [vmem:[%s0 + $0x28] sm:$0xf]
  %v45 = vld [vmem:[%s0 + $0x2c] sm:$0xf]
  %v46 = vld [vmem:[%s0 + $0x30] sm:$0xf]
  %v47 = vld [vmem:[%s0 + $0x34] sm:$0xf]
  %v48 = vld [vmem:[%s0 + $0x38] sm:$0xf]
  %v49 = vld [vmem:[%s0 + $0x3c] sm:$0xf]
  %v50 = vld [vmem:[%s0 + $0x40] sm:$0xf]
  %v51 = vld [vmem:[%s0 + $0x44] sm:$0xf]
  %v52 = vld [vmem:[%s0 + $0x48] sm:$0xf]
  %v53 = vld [vmem:[%s0 + $0x4c] sm:$0xf]
  %v54 = vld [vmem:[%s0 + $0x50] sm:$0xf]
  %v55 = vld [vmem:[%s0 + $0x54] sm:$0xf]
  %v56 = vld [vmem:[%s0 + $0x58] sm:$0xf]
  %v57 = vld [vmem:[%s0 + $0x5c] sm:$0xf]
  %v58 = vld [vmem:[%s0 + $0x60] sm:$0xf]
  %v59 = vld [vmem:[%s0 + $0x64] sm:$0xf]
  %v60 = vld [vmem:[%s0 + $0x68] sm:$0xf]
  %v61 = vld [vmem:[%s0 + $0x6c] sm:$0xf]
  %v62 = vld [vmem:[%s0 + $0x70] sm:$0xf]
  %v63 = vld [vmem:[%s0 + $0x74] sm:$0xf]
  %v64 = vld [vmem:[%s0 + $0x78] sm:$0xf]
  %v65 = vld [vmem:[%s0 + $0x7c] sm:$0xf]
  %v66 = vld [vmem:[%s0 + $0x80] sm:$0xf]
  %v67 = vld [vmem:[%s0 + $0x84] sm:$0xf]
  %v68 = vld [vmem:[%s0 + $0x88] sm:$0xf]
  %v69 = vld [vmem:[%s0 + $0x8c] sm:$0xf]
  %v70 = vld [vmem:[%s0 + $0x90] sm:$0xf]
  %v71 = vld [vmem:[%s0 + $0x94] sm:$0xf]
  %v72 = vld [vmem:[%s0 + $0x98] sm:$0xf]
  %v73 = vld [vmem:[%s0 + $0x9c] sm:$0xf]
  %v74 = vld [vmem:[%s0 + $0xa0] sm:$0xf]
  %v75 = vld [vmem:[%s0 + $0xa4] sm:$0xf]
  %v76 = vld [vmem:[%s0 + $0xa8] sm:$0xf]
  %v77 = vld [vmem:[%s0 + $0xac] sm:$0xf]
  %v78 = vld [vmem:[%s0 + $0xb0] sm:$0xf]
  %v79 = vld [vmem:[%s0 + $0xb4] sm:$0xf]
  %v80 = vld [vmem:[%s0 + $0xb8] sm:$0xf]
  %v81 = vld [vmem:[%s0 + $0xbc] sm:$0xf]
  %v82 = vld [vmem:[%s0 + $0xc0] sm:$0xf]
  %v83 = vld [vmem:[%s0 + $0xc4] sm:$0xf]
  %v84 = vld [vmem:[%s0 + $0xc8] sm:$0xf]
  %v85 = vld [vmem:[%s0 + $0xcc] sm:$0xf]
  %v86 = vld [vmem:[%s0 + $0xd0] sm:$0xf]
  %v87 = vld [vmem:[%s0 + $0xd4] sm:$0xf]
  %v92 = vunpack.c.l.b16 %v30
  %v93 = vunpack.c.h.b16 %v30
  %v94 = vunpack.c.l.b16 %v31
  %v95 = vunpack.c.h.b16 %v31
  %v96 = vunpack.c.l.b16 %v32
  %v97 = vunpack.c.h.b16 %v32
  %v98 = vunpack.c.l.b16 %v33
  %v99 = vunpack.c.h.b16 %v33
  %v100 = vpack.c.b16 %v96, %v92
  %v101 = vpack.c.b16 %v97, %v93
  %v102 = vpack.c.b16 %v98, %v94
  %v103 = vpack.c.b16 %v99, %v95
  %v161 = vunpack.c.l.b16 %v34
  %v162 = vunpack.c.l.b16 %v35
  %v163 = vunpack.c.l.b16 %v36
  %v164 = vunpack.c.l.b16 %v37
  %v165 = vunpack.c.l.b16 %v38
  %v166 = vunpack.c.l.b16 %v39
  %v167 = vunpack.c.l.b16 %v40
  %v168 = vunpack.c.l.b16 %v41
  %v169 = vunpack.c.l.b16 %v42
  %v170 = vunpack.c.l.b16 %v43
  %v171 = vunpack.c.l.b16 %v44
  %v172 = vunpack.c.l.b16 %v45
  %v173 = vunpack.c.l.b16 %v46
  %v174 = vunpack.c.l.b16 %v47
  %v175 = vunpack.c.l.b16 %v48
  %v176 = vunpack.c.l.b16 %v49
  %v177 = vunpack.c.l.b16 %v50
  %v178 = vunpack.c.l.b16 %v51
  %v179 = vunpack.c.l.b16 %v52
  %v180 = vunpack.c.l.b16 %v53
  %v181 = vunpack.c.l.b16 %v54
  %v182 = vunpack.c.l.b16 %v55
  %v183 = vunpack.c.l.b16 %v56
  %v184 = vunpack.c.l.b16 %v57
  %v185 = vunpack.c.l.b16 %v58
  %v186 = vunpack.c.l.b16 %v59
  %v187 = vunpack.c.l.b16 %v60
  %v188 = vunpack.c.l.b16 %v61
  %v189 = vunpack.c.l.b16 %v62
  %v190 = vunpack.c.l.b16 %v63
  %v191 = vunpack.c.l.b16 %v64
  %v192 = vunpack.c.l.b16 %v65
  %v193 = vunpack.c.l.b16 %v66
  %v194 = vunpack.c.l.b16 %v67
  %v195 = vunpack.c.l.b16 %v68
  %v196 = vunpack.c.l.b16 %v69
  %v197 = vunpack.c.l.b16 %v70
  %v198 = vunpack.c.l.b16 %v71
  %v199 = vunpack.c.l.b16 %v72
  %v200 = vunpack.c.l.b16 %v73
  %v201 = vunpack.c.l.b16 %v74
  %v202 = vunpack.c.l.b16 %v75
  %v203 = vunpack.c.l.b16 %v76
  %v204 = vunpack.c.l.b16 %v77
  %v205 = vunpack.c.l.b16 %v78
  %v206 = vunpack.c.l.b16 %v79
  %v207 = vunpack.c.l.b16 %v80
  %v208 = vunpack.c.l.b16 %v81
  %v209 = vunpack.c.l.b16 %v82
  %v210 = vunpack.c.l.b16 %v83
  %v211 = vunpack.c.l.b16 %v84
  %v212 = vunpack.c.l.b16 %v85
  %v213 = vunpack.c.l.b16 %v86
  %v214 = vunpack.c.l.b16 %v87
  %v215 = vpack.c.b16 %v162, %v161
  %v216 = vpack.c.b16 %v164, %v163
  %v217 = vpack.c.b16 %v166, %v165
  %v218 = vpack.c.b16 %v168, %v167
  %v219 = vpack.c.b16 %v170, %v169
  %v220 = vpack.c.b16 %v172, %v171
  %v221 = vpack.c.b16 %v174, %v173
  %v222 = vpack.c.b16 %v176, %v175
  %v223 = vpack.c.b16 %v178, %v177
  %v224 = vpack.c.b16 %v180, %v179
  %v225 = vpack.c.b16 %v182, %v181
  %v226 = vpack.c.b16 %v184, %v183
  %v227 = vpack.c.b16 %v186, %v185
  %v228 = vpack.c.b16 %v188, %v187
  %v229 = vpack.c.b16 %v190, %v189
  %v230 = vpack.c.b16 %v192, %v191
  %v231 = vpack.c.b16 %v194, %v193
  %v232 = vpack.c.b16 %v196, %v195
  %v233 = vpack.c.b16 %v198, %v197
  %v234 = vpack.c.b16 %v200, %v199
  %v235 = vpack.c.b16 %v202, %v201
  %v236 = vpack.c.b16 %v204, %v203
  %v237 = vpack.c.b16 %v206, %v205
  %v238 = vpack.c.b16 %v208, %v207
  %v239 = vpack.c.b16 %v210, %v209
  %v240 = vpack.c.b16 %v212, %v211
  %v241 = vpack.c.b16 %v214, %v213
  %vm269 = vcmask 392192
  %v271 = vsel %vm269, %v103, 0
  %273 = vmatprep.subr.bf16.mxu0 0
  %274 = vmatpush1.bf16.msra.mxu0 %v215
  %275 = vmatprep.subr.bf16.mxu0 0
  %276 = vmatpush1.bf16.msra.mxu0 %v216
  %277 = vmatprep.subr.bf16.mxu0 0
  %278 = vmatpush1.bf16.msra.mxu0 %v217
  %279 = vmatprep.subr.bf16.mxu0 0
  %280 = vmatpush1.bf16.msra.mxu0 %v218
  %281 = vmatprep.subr.bf16.mxu0 0
  %282 = vmatpush1.bf16.msra.mxu0 %v219
  %283 = vmatprep.subr.bf16.mxu0 0
  %284 = vmatpush1.bf16.msra.mxu0 %v220
  %285 = vmatprep.subr.bf16.mxu0 0
  %286 = vmatpush1.bf16.msra.mxu0 %v221
  %287 = vmatprep.subr.bf16.mxu0 0
  %288 = vmatpush1.bf16.msra.mxu0 %v222
  %289 = vmatprep.subr.bf16.mxu0 0
  %290 = vmatpush1.bf16.msra.mxu0 %v223
  %291 = vmatprep.subr.bf16.mxu0 0
  %292 = vmatpush1.bf16.msra.mxu0 %v224
  %293 = vmatprep.subr.bf16.mxu0 0
  %294 = vmatpush1.bf16.msra.mxu0 %v225
  %295 = vmatprep.subr.bf16.mxu0 0
  %296 = vmatpush1.bf16.msra.mxu0 %v226
  %297 = vmatprep.subr.bf16.mxu0 0
  %298 = vmatpush1.bf16.msra.mxu0 %v227
  %299 = vmatprep.subr.bf16.mxu0 0
  %300 = vmatpush1.bf16.msra.mxu0 %v228
  %301 = vmatprep.subr.bf16.mxu0 0
  %302 = vmatpush1.bf16.msra.mxu0 %v229
  %303 = vmatprep.subr.bf16.mxu0 0
  %304 = vmatpush1.bf16.msra.mxu0 %v230
  %305 = vmatprep.mubr.bf16.mxu0 %v101
  %306 = vmatmul.mubr.bf16.gmra.mrb[0].mxu0 %v100
  %v307 = vpop.f32.mrb[0].mxu0
  %v308 = vadd.f32 0.0, %v307
  %v309 = vpop.f32.mrb[0].mxu0
  %v310 = vpop.f32.mrb[0].mxu0
  %v311 = vadd.f32 0.0, %v310
  %v312 = vpop.f32.mrb[0].mxu0
  %313 = vdwg.mxu0
  %314 = vmatprep.subr.bf16.mxu0 0
  %315 = vmatpush1.bf16.msra.mxu0 %v231
  %316 = vmatprep.subr.bf16.mxu0 0
  %317 = vmatpush1.bf16.msra.mxu0 %v232
  %318 = vmatprep.subr.bf16.mxu0 0
  %319 = vmatpush1.bf16.msra.mxu0 %v233
  %320 = vmatprep.subr.bf16.mxu0 0
  %321 = vmatpush1.bf16.msra.mxu0 %v234
  %322 = vmatprep.subr.bf16.mxu0 0
  %323 = vmatpush1.bf16.msra.mxu0 %v235
  %324 = vmatprep.subr.bf16.mxu0 0
  %325 = vmatpush1.bf16.msra.mxu0 %v236
  %326 = vmatprep.subr.bf16.mxu0 0
  %327 = vmatpush1.bf16.msra.mxu0 %v237
  %328 = vmatprep.subr.bf16.mxu0 0
  %329 = vmatpush1.bf16.msra.mxu0 %v238
  %330 = vmatprep.subr.bf16.mxu0 0
  %331 = vmatpush1.bf16.msra.mxu0 %v239
  %332 = vmatprep.subr.bf16.mxu0 0
  %333 = vmatpush1.bf16.msra.mxu0 %v240
  %334 = vmatprep.subr.bf16.mxu0 0
  %335 = vmatpush1.bf16.msra.mxu0 %v241
  %336 = vmatprep.subr.bf16.mxu0 0
  %337 = vmatpush1.bf16.msra.mxu0 0
  %338 = vmatprep.subr.bf16.mxu0 0
  %339 = vmatpush1.bf16.msra.mxu0 0
  %340 = vmatprep.subr.bf16.mxu0 0
  %341 = vmatpush1.bf16.msra.mxu0 0
  %342 = vmatprep.subr.bf16.mxu0 0
  %343 = vmatpush1.bf16.msra.mxu0 0
  %344 = vmatprep.subr.bf16.mxu0 0
  %345 = vmatpush1.bf16.msra.mxu0 0
  %346 = vmatprep.mubr.bf16.mxu0 %v271
  %347 = vmatmul.mubr.bf16.gmra.mrb[0].mxu0 %v102
  %v348 = vpop.f32.mrb[0].mxu0
  %v349 = vadd.f32 %v308, %v348
  %v350 = vpop.f32.mrb[0].mxu0
  %v351 = vpop.f32.mrb[0].mxu0
  %v352 = vadd.f32 %v311, %v351
  %v353 = vpop.f32.mrb[0].mxu0
  %354 = vdwg.mxu0
  %v355 = vld [vmem:[%s2] sm:$0xff]
  %v356 = vld [vmem:[%s2 + $0x8] sm:$0xff]
  %358 = vset.pattern.permute.xlu0 0
  %359 = vperm.xlu0 %358, %v355
  %v360 = vpop.permute.xlu0 %359
  %363 = vset.pattern.permute.xlu0 0
  %364 = vperm.xlu0 %363, %v356
  %v365 = vpop.permute.xlu0 %364
  %v367 = vmul.f32 %v349, %v360
  %v368 = vmul.f32 %v352, %v365
  %v369 = vld [vmem:[%s3] sm:$0xff]
  %v370 = vld [vmem:[%s3 + $0x8] sm:$0xff]
  %372 = vset.pattern.permute.xlu0 0
  %373 = vperm.xlu0 %372, %v369
  %v374 = vpop.permute.xlu0 %373
  %377 = vset.pattern.permute.xlu0 0
  %378 = vperm.xlu0 %377, %v370
  %v379 = vpop.permute.xlu0 %378
  %v381 = vadd.f32 %v367, %v374
  %v382 = vadd.f32 %v368, %v379
  %v383 = vld [vmem:[%s5] sm:$0xf]
  %v384 = vld [vmem:[%s5 + $0x4] sm:$0xf]
  %v385 = vld [vmem:[%s4] sm:$0xf]
  %v388 = vunpack.c.l.b16 %v383
  %v389 = vunpack.c.l.b16 %v384
  %v390 = vpack.c.b16 %v389, %v388
  %vm391 = vcmask 64512
  %v393 = vsel %vm391, %v390, 0
  %vm395 = vcmask 1043456
  %v397 = vsel %vm395, %v385, 0
  %399 = vmatprep.subr.bf16.mxu0 0
  %400 = vmatpush1.bf16.msra.mxu0 %v397
  %401 = vmatprep.subr.bf16.mxu0 0
  %402 = vmatpush1.bf16.msra.mxu0 0
  %403 = vmatprep.subr.bf16.mxu0 0
  %404 = vmatpush1.bf16.msra.mxu0 0
  %405 = vmatprep.subr.bf16.mxu0 0
  %406 = vmatpush1.bf16.msra.mxu0 0
  %407 = vmatprep.subr.bf16.mxu0 0
  %408 = vmatpush1.bf16.msra.mxu0 0
  %409 = vmatprep.subr.bf16.mxu0 0
  %410 = vmatpush1.bf16.msra.mxu0 0
  %411 = vmatprep.subr.bf16.mxu0 0
  %412 = vmatpush1.bf16.msra.mxu0 0
  %413 = vmatprep.subr.bf16.mxu0 0
  %414 = vmatpush1.bf16.msra.mxu0 0
  %415 = vmatprep.subr.bf16.mxu0 0
  %416 = vmatpush1.bf16.msra.mxu0 0
  %417 = vmatprep.subr.bf16.mxu0 0
  %418 = vmatpush1.bf16.msra.mxu0 0
  %419 = vmatprep.subr.bf16.mxu0 0
  %420 = vmatpush1.bf16.msra.mxu0 0
  %421 = vmatprep.subr.bf16.mxu0 0
  %422 = vmatpush1.bf16.msra.mxu0 0
  %423 = vmatprep.subr.bf16.mxu0 0
  %424 = vmatpush1.bf16.msra.mxu0 0
  %425 = vmatprep.subr.bf16.mxu0 0
  %426 = vmatpush1.bf16.msra.mxu0 0
  %427 = vmatprep.subr.bf16.mxu0 0
  %428 = vmatpush1.bf16.msra.mxu0 0
  %429 = vmatprep.subr.bf16.mxu0 0
  %430 = vmatpush1.bf16.msra.mxu0 0
  %431 = vmatprep.mubr.bf16.mxu0 0
  %432 = vmatmul.mubr.bf16.gmra.mrb[0].mxu0 %v393
  %v433 = vpop.f32.mrb[0].mxu0
  %v434 = vadd.f32 0.0, %v433
  %v435 = vpop.f32.mrb[0].mxu0
  %v436 = vpop.f32.mrb[0].mxu0
  %v437 = vadd.f32 0.0, %v436
  %v438 = vpop.f32.mrb[0].mxu0
  %439 = vdwg.mxu0
  %v440 = vld [vmem:[%s6] sm:$0xff]
  %v441 = vld [vmem:[%s6 + $0x8] sm:$0xff]
  %443 = vset.pattern.permute.xlu0 0
  %444 = vperm.xlu0 %443, %v440
  %v445 = vpop.permute.xlu0 %444
  %448 = vset.pattern.permute.xlu0 0
  %449 = vperm.xlu0 %448, %v441
  %v450 = vpop.permute.xlu0 %449
  %v452 = vmul.f32 %v434, %v445
  %v453 = vmul.f32 %v437, %v450
  %v454 = vld [vmem:[%s7] sm:$0xff]
  %v455 = vld [vmem:[%s7 + $0x8] sm:$0xff]
  %457 = vset.pattern.permute.xlu0 0
  %458 = vperm.xlu0 %457, %v454
  %v459 = vpop.permute.xlu0 %458
  %462 = vset.pattern.permute.xlu0 0
  %463 = vperm.xlu0 %462, %v455
  %v464 = vpop.permute.xlu0 %463
  %v466 = vadd.f32 %v452, %v459
  %v467 = vadd.f32 %v453, %v464
  %v468 = vadd.f32 %v381, %v466
  %v469 = vadd.f32 %v382, %v467
  %v470 = vmax.f32 %v468, 0.0
  %v471 = vmax.f32 %v469, 0.0
  %vm472 = vcmask 130048
  %473 = vst.msk [vmem:[%s8] sm:$0xff] %vm472, %v470
  %474 = vst.msk [vmem:[%s8 + $0x8] sm:$0xff] %vm472, %v471
  // Predicated region
  $region34: #{heterogeneous_resnet_forward.16} parent=0 // pred_check
    _
  $region35: #{heterogeneous_resnet_forward.16} parent=0 // pred_check_branch
    %476 = sbr.rel (0) target = $region37
  $region36: #{heterogeneous_resnet_forward.16} parent=0 // pred_region
    _
  $region37: #{heterogeneous_resnet_forward.16} parent=0 // pred_fallthru
    _
  // Predicated region
  $region38: #{heterogeneous_resnet_forward.16} parent=0 // pred_check
    _
  $region39: #{heterogeneous_resnet_forward.16} parent=0 // pred_check_branch
    %478 = sbr.rel (0) target = $region41
  $region40: #{heterogeneous_resnet_forward.16} parent=0 // pred_region
    _
  $region41: #{heterogeneous_resnet_forward.16} parent=0 // pred_fallthru
    _

// kernel: heterogeneous_resnet_forward.17
$region0: #{heterogeneous_resnet_forward.17}
  #allocation0 [shape = 'u32[]', space=smem, size = 0x4, offset = 0x4, fixed_abs, tag = 'smem constant byte address 0x4 - core index']
  #allocation1 [shape = 'u32[144,128]{1,0:T(1,128)}', space=vmem, size = 0x12000, scoped, tag = 'internal scratch']
  %s0 = inlined_call_operand.vmem [shape: bf16[432,2], index: 0, kind: input, shape index: {}]
  %s1 = inlined_call_operand.vmem [shape: bf16[32,432], index: 1, kind: input, shape index: {}]
  %s2 = inlined_call_operand.vmem [shape: f32[32,1], index: 2, kind: input, shape index: {}]
  %s3 = inlined_call_operand.vmem [shape: f32[32,1], index: 3, kind: input, shape index: {}]
  %s4 = inlined_call_operand.vmem [shape: bf16[32,2], index: 4, kind: output, shape index: {}]
  %s5 = sld [smem:[#allocation0]]
  $region26: #{heterogeneous_resnet_forward.17} parent=0
    _
  %s7 = ssub.s32 1, %s5
  %s8 = scalar_select 0, %s7, %s5
  // Predicated region
  $region2: #{heterogeneous_resnet_forward.17} parent=0 // pred_check
    _
  $region3: #{heterogeneous_resnet_forward.17} parent=0 // pred_check_branch
    %10 = sbr.rel (0) target = $region5
  $region4: #{heterogeneous_resnet_forward.17} parent=0 // pred_region
    _
  $region5: #{heterogeneous_resnet_forward.17} parent=0 // pred_fallthru
    _
  // Predicated region
  $region6: #{heterogeneous_resnet_forward.17} parent=0 // pred_check
    _
  $region7: #{heterogeneous_resnet_forward.17} parent=0 // pred_check_branch
    %12 = sbr.rel (0) target = $region9
  $region8: #{heterogeneous_resnet_forward.17} parent=0 // pred_region
    _
  $region9: #{heterogeneous_resnet_forward.17} parent=0 // pred_fallthru
    _
  // Predicated region
  $region10: #{heterogeneous_resnet_forward.17} parent=0 // pred_check
    _
  $region11: #{heterogeneous_resnet_forward.17} parent=0 // pred_check_branch
    %14 = sbr.rel (0) target = $region13
  $region12: #{heterogeneous_resnet_forward.17} parent=0 // pred_region
    _
  $region13: #{heterogeneous_resnet_forward.17} parent=0 // pred_fallthru
    _
  // Predicated region
  $region14: #{heterogeneous_resnet_forward.17} parent=0 // pred_check
    _
  $region15: #{heterogeneous_resnet_forward.17} parent=0 // pred_check_branch
    %16 = sbr.rel (0) target = $region17
  $region16: #{heterogeneous_resnet_forward.17} parent=0 // pred_region
    _
  $region17: #{heterogeneous_resnet_forward.17} parent=0 // pred_fallthru
    _
  %v18 = vld [vmem:[%s1] sm:$0xff]
  %v19 = vld [vmem:[%s1 + $0x8] sm:$0xff]
  %v20 = vld [vmem:[%s1 + $0x10] sm:$0xff]
  %v21 = vld [vmem:[%s1 + $0x18] sm:$0xff]
  %v22 = vld [vmem:[%s1 + $0x20] sm:$0xff]
  %v23 = vld [vmem:[%s1 + $0x28] sm:$0xff]
  %v24 = vld [vmem:[%s1 + $0x30] sm:$0xff]
  %v25 = vld [vmem:[%s1 + $0x38] sm:$0xff]
  %v26 = vld [vmem:[%s0] sm:$0xf]
  %v27 = vld [vmem:[%s0 + $0x4] sm:$0xf]
  %v28 = vld [vmem:[%s0 + $0x8] sm:$0xf]
  %v29 = vld [vmem:[%s0 + $0xc] sm:$0xf]
  %v30 = vld [vmem:[%s0 + $0x10] sm:$0xf]
  %v31 = vld [vmem:[%s0 + $0x14] sm:$0xf]
  %v32 = vld [vmem:[%s0 + $0x18] sm:$0xf]
  %v33 = vld [vmem:[%s0 + $0x1c] sm:$0xf]
  %v34 = vld [vmem:[%s0 + $0x20] sm:$0xf]
  %v35 = vld [vmem:[%s0 + $0x24] sm:$0xf]
  %v36 = vld [vmem:[%s0 + $0x28] sm:$0xf]
  %v37 = vld [vmem:[%s0 + $0x2c] sm:$0xf]
  %v38 = vld [vmem:[%s0 + $0x30] sm:$0xf]
  %v39 = vld [vmem:[%s0 + $0x34] sm:$0xf]
  %v40 = vld [vmem:[%s0 + $0x38] sm:$0xf]
  %v41 = vld [vmem:[%s0 + $0x3c] sm:$0xf]
  %v42 = vld [vmem:[%s0 + $0x40] sm:$0xf]
  %v43 = vld [vmem:[%s0 + $0x44] sm:$0xf]
  %v44 = vld [vmem:[%s0 + $0x48] sm:$0xf]
  %v45 = vld [vmem:[%s0 + $0x4c] sm:$0xf]
  %v46 = vld [vmem:[%s0 + $0x50] sm:$0xf]
  %v47 = vld [vmem:[%s0 + $0x54] sm:$0xf]
  %v48 = vld [vmem:[%s0 + $0x58] sm:$0xf]
  %v49 = vld [vmem:[%s0 + $0x5c] sm:$0xf]
  %v50 = vld [vmem:[%s0 + $0x60] sm:$0xf]
  %v51 = vld [vmem:[%s0 + $0x64] sm:$0xf]
  %v52 = vld [vmem:[%s0 + $0x68] sm:$0xf]
  %v53 = vld [vmem:[%s0 + $0x6c] sm:$0xf]
  %v54 = vld [vmem:[%s0 + $0x70] sm:$0xf]
  %v55 = vld [vmem:[%s0 + $0x74] sm:$0xf]
  %v56 = vld [vmem:[%s0 + $0x78] sm:$0xf]
  %v57 = vld [vmem:[%s0 + $0x7c] sm:$0xf]
  %v58 = vld [vmem:[%s0 + $0x80] sm:$0xf]
  %v59 = vld [vmem:[%s0 + $0x84] sm:$0xf]
  %v60 = vld [vmem:[%s0 + $0x88] sm:$0xf]
  %v61 = vld [vmem:[%s0 + $0x8c] sm:$0xf]
  %v62 = vld [vmem:[%s0 + $0x90] sm:$0xf]
  %v63 = vld [vmem:[%s0 + $0x94] sm:$0xf]
  %v64 = vld [vmem:[%s0 + $0x98] sm:$0xf]
  %v65 = vld [vmem:[%s0 + $0x9c] sm:$0xf]
  %v66 = vld [vmem:[%s0 + $0xa0] sm:$0xf]
  %v67 = vld [vmem:[%s0 + $0xa4] sm:$0xf]
  %v68 = vld [vmem:[%s0 + $0xa8] sm:$0xf]
  %v69 = vld [vmem:[%s0 + $0xac] sm:$0xf]
  %v70 = vld [vmem:[%s0 + $0xb0] sm:$0xf]
  %v71 = vld [vmem:[%s0 + $0xb4] sm:$0xf]
  %v72 = vld [vmem:[%s0 + $0xb8] sm:$0xf]
  %v73 = vld [vmem:[%s0 + $0xbc] sm:$0xf]
  %v74 = vld [vmem:[%s0 + $0xc0] sm:$0xf]
  %v75 = vld [vmem:[%s0 + $0xc4] sm:$0xf]
  %v76 = vld [vmem:[%s0 + $0xc8] sm:$0xf]
  %v77 = vld [vmem:[%s0 + $0xcc] sm:$0xf]
  %v78 = vld [vmem:[%s0 + $0xd0] sm:$0xf]
  %v79 = vld [vmem:[%s0 + $0xd4] sm:$0xf]
  %v88 = vunpack.c.l.b16 %v18
  %v89 = vunpack.c.h.b16 %v18
  %v90 = vunpack.c.l.b16 %v19
  %v91 = vunpack.c.h.b16 %v19
  %v92 = vunpack.c.l.b16 %v20
  %v93 = vunpack.c.h.b16 %v20
  %v94 = vunpack.c.l.b16 %v21
  %v95 = vunpack.c.h.b16 %v21
  %v96 = vunpack.c.l.b16 %v22
  %v97 = vunpack.c.h.b16 %v22
  %v98 = vunpack.c.l.b16 %v23
  %v99 = vunpack.c.h.b16 %v23
  %v100 = vunpack.c.l.b16 %v24
  %v101 = vunpack.c.h.b16 %v24
  %v102 = vunpack.c.l.b16 %v25
  %v103 = vunpack.c.h.b16 %v25
  %v104 = vpack.c.b16 %v92, %v88
  %v105 = vpack.c.b16 %v93, %v89
  %v106 = vpack.c.b16 %v94, %v90
  %v107 = vpack.c.b16 %v95, %v91
  %v108 = vpack.c.b16 %v100, %v96
  %v109 = vpack.c.b16 %v101, %v97
  %v110 = vpack.c.b16 %v102, %v98
  %v111 = vpack.c.b16 %v103, %v99
  %v172 = vunpack.c.l.b16 %v26
  %v173 = vunpack.c.l.b16 %v27
  %v174 = vunpack.c.l.b16 %v28
  %v175 = vunpack.c.l.b16 %v29
  %v176 = vunpack.c.l.b16 %v30
  %v177 = vunpack.c.l.b16 %v31
  %v178 = vunpack.c.l.b16 %v32
  %v179 = vunpack.c.l.b16 %v33
  %v180 = vunpack.c.l.b16 %v34
  %v181 = vunpack.c.l.b16 %v35
  %v182 = vunpack.c.l.b16 %v36
  %v183 = vunpack.c.l.b16 %v37
  %v184 = vunpack.c.l.b16 %v38
  %v185 = vunpack.c.l.b16 %v39
  %v186 = vunpack.c.l.b16 %v40
  %v187 = vunpack.c.l.b16 %v41
  %v188 = vunpack.c.l.b16 %v42
  %v189 = vunpack.c.l.b16 %v43
  %v190 = vunpack.c.l.b16 %v44
  %v191 = vunpack.c.l.b16 %v45
  %v192 = vunpack.c.l.b16 %v46
  %v193 = vunpack.c.l.b16 %v47
  %v194 = vunpack.c.l.b16 %v48
  %v195 = vunpack.c.l.b16 %v49
  %v196 = vunpack.c.l.b16 %v50
  %v197 = vunpack.c.l.b16 %v51
  %v198 = vunpack.c.l.b16 %v52
  %v199 = vunpack.c.l.b16 %v53
  %v200 = vunpack.c.l.b16 %v54
  %v201 = vunpack.c.l.b16 %v55
  %v202 = vunpack.c.l.b16 %v56
  %v203 = vunpack.c.l.b16 %v57
  %v204 = vunpack.c.l.b16 %v58
  %v205 = vunpack.c.l.b16 %v59
  %v206 = vunpack.c.l.b16 %v60
  %v207 = vunpack.c.l.b16 %v61
  %v208 = vunpack.c.l.b16 %v62
  %v209 = vunpack.c.l.b16 %v63
  %v210 = vunpack.c.l.b16 %v64
  %v211 = vunpack.c.l.b16 %v65
  %v212 = vunpack.c.l.b16 %v66
  %v213 = vunpack.c.l.b16 %v67
  %v214 = vunpack.c.l.b16 %v68
  %v215 = vunpack.c.l.b16 %v69
  %v216 = vunpack.c.l.b16 %v70
  %v217 = vunpack.c.l.b16 %v71
  %v218 = vunpack.c.l.b16 %v72
  %v219 = vunpack.c.l.b16 %v73
  %v220 = vunpack.c.l.b16 %v74
  %v221 = vunpack.c.l.b16 %v75
  %v222 = vunpack.c.l.b16 %v76
  %v223 = vunpack.c.l.b16 %v77
  %v224 = vunpack.c.l.b16 %v78
  %v225 = vunpack.c.l.b16 %v79
  %v226 = vpack.c.b16 %v173, %v172
  %v227 = vpack.c.b16 %v175, %v174
  %v228 = vpack.c.b16 %v177, %v176
  %v229 = vpack.c.b16 %v179, %v178
  %v230 = vpack.c.b16 %v181, %v180
  %v231 = vpack.c.b16 %v183, %v182
  %v232 = vpack.c.b16 %v185, %v184
  %v233 = vpack.c.b16 %v187, %v186
  %v234 = vpack.c.b16 %v189, %v188
  %v235 = vpack.c.b16 %v191, %v190
  %v236 = vpack.c.b16 %v193, %v192
  %v237 = vpack.c.b16 %v195, %v194
  %v238 = vpack.c.b16 %v197, %v196
  %v239 = vpack.c.b16 %v199, %v198
  %v240 = vpack.c.b16 %v201, %v200
  %v241 = vpack.c.b16 %v203, %v202
  %v242 = vpack.c.b16 %v205, %v204
  %v243 = vpack.c.b16 %v207, %v206
  %v244 = vpack.c.b16 %v209, %v208
  %v245 = vpack.c.b16 %v211, %v210
  %v246 = vpack.c.b16 %v213, %v212
  %v247 = vpack.c.b16 %v215, %v214
  %v248 = vpack.c.b16 %v217, %v216
  %v249 = vpack.c.b16 %v219, %v218
  %v250 = vpack.c.b16 %v221, %v220
  %v251 = vpack.c.b16 %v223, %v222
  %v252 = vpack.c.b16 %v225, %v224
  %vm280 = vcmask 392192
  %v282 = vsel %vm280, %v107, 0
  %v285 = vsel %vm280, %v111, 0
  %287 = vmatprep.subr.bf16.mxu0 0
  %288 = vmatpush1.bf16.msra.mxu0 %v226
  %289 = vmatprep.subr.bf16.mxu0 0
  %290 = vmatpush1.bf16.msra.mxu0 %v227
  %291 = vmatprep.subr.bf16.mxu0 0
  %292 = vmatpush1.bf16.msra.mxu0 %v228
  %293 = vmatprep.subr.bf16.mxu0 0
  %294 = vmatpush1.bf16.msra.mxu0 %v229
  %295 = vmatprep.subr.bf16.mxu0 0
  %296 = vmatpush1.bf16.msra.mxu0 %v230
  %297 = vmatprep.subr.bf16.mxu0 0
  %298 = vmatpush1.bf16.msra.mxu0 %v231
  %299 = vmatprep.subr.bf16.mxu0 0
  %300 = vmatpush1.bf16.msra.mxu0 %v232
  %301 = vmatprep.subr.bf16.mxu0 0
  %302 = vmatpush1.bf16.msra.mxu0 %v233
  %303 = vmatprep.subr.bf16.mxu0 0
  %304 = vmatpush1.bf16.msra.mxu0 %v234
  %305 = vmatprep.subr.bf16.mxu0 0
  %306 = vmatpush1.bf16.msra.mxu0 %v235
  %307 = vmatprep.subr.bf16.mxu0 0
  %308 = vmatpush1.bf16.msra.mxu0 %v236
  %309 = vmatprep.subr.bf16.mxu0 0
  %310 = vmatpush1.bf16.msra.mxu0 %v237
  %311 = vmatprep.subr.bf16.mxu0 0
  %312 = vmatpush1.bf16.msra.mxu0 %v238
  %313 = vmatprep.subr.bf16.mxu0 0
  %314 = vmatpush1.bf16.msra.mxu0 %v239
  %315 = vmatprep.subr.bf16.mxu0 0
  %316 = vmatpush1.bf16.msra.mxu0 %v240
  %317 = vmatprep.subr.bf16.mxu0 0
  %318 = vmatpush1.bf16.msra.mxu0 %v241
  %319 = vmatprep.mubr.bf16.mxu0 %v105
  %320 = vmatmul.mubr.bf16.gmra.mrb[0].mxu0 %v104
  %v321 = vpop.f32.mrb[0].mxu0
  %v322 = vadd.f32 0.0, %v321
  %v323 = vpop.f32.mrb[0].mxu0
  %v324 = vpop.f32.mrb[0].mxu0
  %v325 = vadd.f32 0.0, %v324
  %v326 = vpop.f32.mrb[0].mxu0
  %327 = vmatprep.mubr.bf16.mxu0 %v109
  %328 = vmatmul.mubr.bf16.gmra.mrb[0].mxu0 %v108
  %v329 = vpop.f32.mrb[0].mxu0
  %v330 = vadd.f32 0.0, %v329
  %v331 = vpop.f32.mrb[0].mxu0
  %v332 = vpop.f32.mrb[0].mxu0
  %v333 = vadd.f32 0.0, %v332
  %v334 = vpop.f32.mrb[0].mxu0
  %335 = vdwg.mxu0
  %336 = vmatprep.subr.bf16.mxu0 0
  %337 = vmatpush1.bf16.msra.mxu0 %v242
  %338 = vmatprep.subr.bf16.mxu0 0
  %339 = vmatpush1.bf16.msra.mxu0 %v243
  %340 = vmatprep.subr.bf16.mxu0 0
  %341 = vmatpush1.bf16.msra.mxu0 %v244
  %342 = vmatprep.subr.bf16.mxu0 0
  %343 = vmatpush1.bf16.msra.mxu0 %v245
  %344 = vmatprep.subr.bf16.mxu0 0
  %345 = vmatpush1.bf16.msra.mxu0 %v246
  %346 = vmatprep.subr.bf16.mxu0 0
  %347 = vmatpush1.bf16.msra.mxu0 %v247
  %348 = vmatprep.subr.bf16.mxu0 0
  %349 = vmatpush1.bf16.msra.mxu0 %v248
  %350 = vmatprep.subr.bf16.mxu0 0
  %351 = vmatpush1.bf16.msra.mxu0 %v249
  %352 = vmatprep.subr.bf16.mxu0 0
  %353 = vmatpush1.bf16.msra.mxu0 %v250
  %354 = vmatprep.subr.bf16.mxu0 0
  %355 = vmatpush1.bf16.msra.mxu0 %v251
  %356 = vmatprep.subr.bf16.mxu0 0
  %357 = vmatpush1.bf16.msra.mxu0 %v252
  %358 = vmatprep.subr.bf16.mxu0 0
  %359 = vmatpush1.bf16.msra.mxu0 0
  %360 = vmatprep.subr.bf16.mxu0 0
  %361 = vmatpush1.bf16.msra.mxu0 0
  %362 = vmatprep.subr.bf16.mxu0 0
  %363 = vmatpush1.bf16.msra.mxu0 0
  %364 = vmatprep.subr.bf16.mxu0 0
  %365 = vmatpush1.bf16.msra.mxu0 0
  %366 = vmatprep.subr.bf16.mxu0 0
  %367 = vmatpush1.bf16.msra.mxu0 0
  %368 = vmatprep.mubr.bf16.mxu0 %v282
  %369 = vmatmul.mubr.bf16.gmra.mrb[0].mxu0 %v106
  %v370 = vpop.f32.mrb[0].mxu0
  %v371 = vadd.f32 %v322, %v370
  %v372 = vpop.f32.mrb[0].mxu0
  %v373 = vpop.f32.mrb[0].mxu0
  %v374 = vadd.f32 %v325, %v373
  %v375 = vpop.f32.mrb[0].mxu0
  %376 = vmatprep.mubr.bf16.mxu0 %v285
  %377 = vmatmul.mubr.bf16.gmra.mrb[0].mxu0 %v110
  %v378 = vpop.f32.mrb[0].mxu0
  %v379 = vadd.f32 %v330, %v378
  %v380 = vpop.f32.mrb[0].mxu0
  %v381 = vpop.f32.mrb[0].mxu0
  %v382 = vadd.f32 %v333, %v381
  %v383 = vpop.f32.mrb[0].mxu0
  %384 = vdwg.mxu0
  %v385 = vld [vmem:[%s2] sm:$0xff]
  %v386 = vld [vmem:[%s2 + $0x8] sm:$0xff]
  %v387 = vld [vmem:[%s2 + $0x10] sm:$0xff]
  %v388 = vld [vmem:[%s2 + $0x18] sm:$0xff]
  %390 = vset.pattern.permute.xlu0 0
  %391 = vperm.xlu0 %390, %v385
  %v392 = vpop.permute.xlu0 %391
  %395 = vset.pattern.permute.xlu0 0
  %396 = vperm.xlu0 %395, %v386
  %v397 = vpop.permute.xlu0 %396
  %400 = vset.pattern.permute.xlu0 0
  %401 = vperm.xlu0 %400, %v387
  %v402 = vpop.permute.xlu0 %401
  %405 = vset.pattern.permute.xlu0 0
  %406 = vperm.xlu0 %405, %v388
  %v407 = vpop.permute.xlu0 %406
  %v409 = vmul.f32 %v371, %v392
  %v410 = vmul.f32 %v374, %v397
  %v411 = vmul.f32 %v379, %v402
  %v412 = vmul.f32 %v382, %v407
  %v413 = vld [vmem:[%s3] sm:$0xff]
  %v414 = vld [vmem:[%s3 + $0x8] sm:$0xff]
  %v415 = vld [vmem:[%s3 + $0x10] sm:$0xff]
  %v416 = vld [vmem:[%s3 + $0x18] sm:$0xff]
  %418 = vset.pattern.permute.xlu0 0
  %419 = vperm.xlu0 %418, %v413
  %v420 = vpop.permute.xlu0 %419
  %423 = vset.pattern.permute.xlu0 0
  %424 = vperm.xlu0 %423, %v414
  %v425 = vpop.permute.xlu0 %424
  %428 = vset.pattern.permute.xlu0 0
  %429 = vperm.xlu0 %428, %v415
  %v430 = vpop.permute.xlu0 %429
  %433 = vset.pattern.permute.xlu0 0
  %434 = vperm.xlu0 %433, %v416
  %v435 = vpop.permute.xlu0 %434
  %v437 = vadd.f32 %v409, %v420
  %v438 = vadd.f32 %v410, %v425
  %v439 = vadd.f32 %v411, %v430
  %v440 = vadd.f32 %v412, %v435
  %v441 = vmax.f32 %v437, 0.0
  %v442 = vmax.f32 %v438, 0.0
  %v443 = vmax.f32 %v439, 0.0
  %v444 = vmax.f32 %v440, 0.0
  %v445 = vpack.c.bf16 %v442, %v441
  %v446 = vpack.c.bf16 %v444, %v443
  %v449 = vunpack.c.l.b16 %v445
  %v450 = vunpack.c.h.b16 %v445
  %v451 = vunpack.c.l.b16 %v446
  %v452 = vunpack.c.h.b16 %v446
  %v453 = vpack.c.b16 %v449, %v449
  %v454 = vpack.c.b16 %v450, %v450
  %v455 = vpack.c.b16 %v451, %v451
  %v456 = vpack.c.b16 %v452, %v452
  %vm461 = vcmask 11264
  %462 = vst.msk [vmem:[%s4] sm:$0xf] %vm461, %v453
  %463 = vst.msk [vmem:[%s4 + $0x4] sm:$0xf] %vm461, %v454
  %464 = vst.msk [vmem:[%s4 + $0x8] sm:$0xf] %vm461, %v455
  %465 = vst.msk [vmem:[%s4 + $0xc] sm:$0xf] %vm461, %v456
  // Predicated region
  $region18: #{heterogeneous_resnet_forward.17} parent=0 // pred_check
    _
  $region19: #{heterogeneous_resnet_forward.17} parent=0 // pred_check_branch
    %467 = sbr.rel (0) target = $region21
  $region20: #{heterogeneous_resnet_forward.17} parent=0 // pred_region
    _
  $region21: #{heterogeneous_resnet_forward.17} parent=0 // pred_fallthru
    _
  // Predicated region
  $region22: #{heterogeneous_resnet_forward.17} parent=0 // pred_check
    _
  $region23: #{heterogeneous_resnet_forward.17} parent=0 // pred_check_branch
    %469 = sbr.rel (0) target = $region25
  $region24: #{heterogeneous_resnet_forward.17} parent=0 // pred_region
    _
  $region25: #{heterogeneous_resnet_forward.17} parent=0 // pred_fallthru
    _

// kernel: heterogeneous_resnet_forward.18
$region0: #{heterogeneous_resnet_forward.18}
  #allocation0 [shape = 'u32[]', space=smem, size = 0x4, offset = 0x4, fixed_abs, tag = 'smem constant byte address 0x4 - core index']
  #allocation1 [shape = 'u32[144,128]{1,0:T(1,128)}', space=vmem, size = 0x12000, scoped, tag = 'internal scratch']
  %s0 = inlined_call_operand.vmem [shape: bf16[864,2], index: 0, kind: input, shape index: {}]
  %s1 = inlined_call_operand.vmem [shape: bf16[32,864], index: 1, kind: input, shape index: {}]
  %s2 = inlined_call_operand.vmem [shape: f32[32,1], index: 2, kind: input, shape index: {}]
  %s3 = inlined_call_operand.vmem [shape: f32[32,1], index: 3, kind: input, shape index: {}]
  %s4 = inlined_call_operand.vmem [shape: bf16[16,2], index: 4, kind: input, shape index: {}]
  %s5 = inlined_call_operand.vmem [shape: bf16[32,16], index: 5, kind: input, shape index: {}]
  %s6 = inlined_call_operand.vmem [shape: f32[32,1], index: 6, kind: input, shape index: {}]
  %s7 = inlined_call_operand.vmem [shape: f32[32,1], index: 7, kind: input, shape index: {}]
  %s8 = inlined_call_operand.vmem [shape: f32[32,2], index: 8, kind: output, shape index: {}]
  %s9 = sld [smem:[#allocation0]]
  $region42: #{heterogeneous_resnet_forward.18} parent=0
    _
  %s11 = ssub.s32 1, %s9
  %s12 = scalar_select 0, %s11, %s9
  // Predicated region
  $region2: #{heterogeneous_resnet_forward.18} parent=0 // pred_check
    _
  $region3: #{heterogeneous_resnet_forward.18} parent=0 // pred_check_branch
    %14 = sbr.rel (0) target = $region5
  $region4: #{heterogeneous_resnet_forward.18} parent=0 // pred_region
    _
  $region5: #{heterogeneous_resnet_forward.18} parent=0 // pred_fallthru
    _
  // Predicated region
  $region6: #{heterogeneous_resnet_forward.18} parent=0 // pred_check
    _
  $region7: #{heterogeneous_resnet_forward.18} parent=0 // pred_check_branch
    %16 = sbr.rel (0) target = $region9
  $region8: #{heterogeneous_resnet_forward.18} parent=0 // pred_region
    _
  $region9: #{heterogeneous_resnet_forward.18} parent=0 // pred_fallthru
    _
  // Predicated region
  $region10: #{heterogeneous_resnet_forward.18} parent=0 // pred_check
    _
  $region11: #{heterogeneous_resnet_forward.18} parent=0 // pred_check_branch
    %18 = sbr.rel (0) target = $region13
  $region12: #{heterogeneous_resnet_forward.18} parent=0 // pred_region
    _
  $region13: #{heterogeneous_resnet_forward.18} parent=0 // pred_fallthru
    _
  // Predicated region
  $region14: #{heterogeneous_resnet_forward.18} parent=0 // pred_check
    _
  $region15: #{heterogeneous_resnet_forward.18} parent=0 // pred_check_branch
    %20 = sbr.rel (0) target = $region17
  $region16: #{heterogeneous_resnet_forward.18} parent=0 // pred_region
    _
  $region17: #{heterogeneous_resnet_forward.18} parent=0 // pred_fallthru
    _
  // Predicated region
  $region18: #{heterogeneous_resnet_forward.18} parent=0 // pred_check
    _
  $region19: #{heterogeneous_resnet_forward.18} parent=0 // pred_check_branch
    %22 = sbr.rel (0) target = $region21
  $region20: #{heterogeneous_resnet_forward.18} parent=0 // pred_region
    _
  $region21: #{heterogeneous_resnet_forward.18} parent=0 // pred_fallthru
    _
  // Predicated region
  $region22: #{heterogeneous_resnet_forward.18} parent=0 // pred_check
    _
  $region23: #{heterogeneous_resnet_forward.18} parent=0 // pred_check_branch
    %24 = sbr.rel (0) target = $region25
  $region24: #{heterogeneous_resnet_forward.18} parent=0 // pred_region
    _
  $region25: #{heterogeneous_resnet_forward.18} parent=0 // pred_fallthru
    _
  // Predicated region
  $region26: #{heterogeneous_resnet_forward.18} parent=0 // pred_check
    _
  $region27: #{heterogeneous_resnet_forward.18} parent=0 // pred_check_branch
    %26 = sbr.rel (0) target = $region29
  $region28: #{heterogeneous_resnet_forward.18} parent=0 // pred_region
    _
  $region29: #{heterogeneous_resnet_forward.18} parent=0 // pred_fallthru
    _
  // Predicated region
  $region30: #{heterogeneous_resnet_forward.18} parent=0 // pred_check
    _
  $region31: #{heterogeneous_resnet_forward.18} parent=0 // pred_check_branch
    %28 = sbr.rel (0) target = $region33
  $region32: #{heterogeneous_resnet_forward.18} parent=0 // pred_region
    _
  $region33: #{heterogeneous_resnet_forward.18} parent=0 // pred_fallthru
    _
  %v30 = vld [vmem:[%s1] sm:$0xff]
  %v31 = vld [vmem:[%s1 + $0x8] sm:$0xff]
  %v32 = vld [vmem:[%s1 + $0x10] sm:$0xff]
  %v33 = vld [vmem:[%s1 + $0x18] sm:$0xf]
  %v34 = vld [vmem:[%s1 + $0x1c] sm:$0xff]
  %v35 = vld [vmem:[%s1 + $0x24] sm:$0xff]
  %v36 = vld [vmem:[%s1 + $0x2c] sm:$0xff]
  %v37 = vld [vmem:[%s1 + $0x34] sm:$0xf]
  %v38 = vld [vmem:[%s1 + $0x38] sm:$0xff]
  %v39 = vld [vmem:[%s1 + $0x40] sm:$0xff]
  %v40 = vld [vmem:[%s1 + $0x48] sm:$0xff]
  %v41 = vld [vmem:[%s1 + $0x50] sm:$0xf]
  %v42 = vld [vmem:[%s1 + $0x54] sm:$0xff]
  %v43 = vld [vmem:[%s1 + $0x5c] sm:$0xff]
  %v44 = vld [vmem:[%s1 + $0x64] sm:$0xff]
  %v45 = vld [vmem:[%s1 + $0x6c] sm:$0xf]
  %v46 = vld [vmem:[%s0] sm:$0xf]
  %v47 = vld [vmem:[%s0 + $0x4] sm:$0xf]
  %v48 = vld [vmem:[%s0 + $0x8] sm:$0xf]
  %v49 = vld [vmem:[%s0 + $0xc] sm:$0xf]
  %v50 = vld [vmem:[%s0 + $0x10] sm:$0xf]
  %v51 = vld [vmem:[%s0 + $0x14] sm:$0xf]
  %v52 = vld [vmem:[%s0 + $0x18] sm:$0xf]
  %v53 = vld [vmem:[%s0 + $0x1c] sm:$0xf]
  %v54 = vld [vmem:[%s0 + $0x20] sm:$0xf]
  %v55 = vld [vmem:[%s0 + $0x24] sm:$0xf]
  %v56 = vld [vmem:[%s0 + $0x28] sm:$0xf]
  %v57 = vld [vmem:[%s0 + $0x2c] sm:$0xf]
  %v58 = vld [vmem:[%s0 + $0x30] sm:$0xf]
  %v59 = vld [vmem:[%s0 + $0x34] sm:$0xf]
  %v60 = vld [vmem:[%s0 + $0x38] sm:$0xf]
  %v61 = vld [vmem:[%s0 + $0x3c] sm:$0xf]
  %v62 = vld [vmem:[%s0 + $0x40] sm:$0xf]
  %v63 = vld [vmem:[%s0 + $0x44] sm:$0xf]
  %v64 = vld [vmem:[%s0 + $0x48] sm:$0xf]
  %v65 = vld [vmem:[%s0 + $0x4c] sm:$0xf]
  %v66 = vld [vmem:[%s0 + $0x50] sm:$0xf]
  %v67 = vld [vmem:[%s0 + $0x54] sm:$0xf]
  %v68 = vld [vmem:[%s0 + $0x58] sm:$0xf]
  %v69 = vld [vmem:[%s0 + $0x5c] sm:$0xf]
  %v70 = vld [vmem:[%s0 + $0x60] sm:$0xf]
  %v71 = vld [vmem:[%s0 + $0x64] sm:$0xf]
  %v72 = vld [vmem:[%s0 + $0x68] sm:$0xf]
  %v73 = vld [vmem:[%s0 + $0x6c] sm:$0xf]
  %v74 = vld [vmem:[%s0 + $0x70] sm:$0xf]
  %v75 = vld [vmem:[%s0 + $0x74] sm:$0xf]
  %v76 = vld [vmem:[%s0 + $0x78] sm:$0xf]
  %v77 = vld [vmem:[%s0 + $0x7c] sm:$0xf]
  %v78 = vld [vmem:[%s0 + $0x80] sm:$0xf]
  %v79 = vld [vmem:[%s0 + $0x84] sm:$0xf]
  %v80 = vld [vmem:[%s0 + $0x88] sm:$0xf]
  %v81 = vld [vmem:[%s0 + $0x8c] sm:$0xf]
  %v82 = vld [vmem:[%s0 + $0x90] sm:$0xf]
  %v83 = vld [vmem:[%s0 + $0x94] sm:$0xf]
  %v84 = vld [vmem:[%s0 + $0x98] sm:$0xf]
  %v85 = vld [vmem:[%s0 + $0x9c] sm:$0xf]
  %v86 = vld [vmem:[%s0 + $0xa0] sm:$0xf]
  %v87 = vld [vmem:[%s0 + $0xa4] sm:$0xf]
  %v88 = vld [vmem:[%s0 + $0xa8] sm:$0xf]
  %v89 = vld [vmem:[%s0 + $0xac] sm:$0xf]
  %v90 = vld [vmem:[%s0 + $0xb0] sm:$0xf]
  %v91 = vld [vmem:[%s0 + $0xb4] sm:$0xf]
  %v92 = vld [vmem:[%s0 + $0xb8] sm:$0xf]
  %v93 = vld [vmem:[%s0 + $0xbc] sm:$0xf]
  %v94 = vld [vmem:[%s0 + $0xc0] sm:$0xf]
  %v95 = vld [vmem:[%s0 + $0xc4] sm:$0xf]
  %v96 = vld [vmem:[%s0 + $0xc8] sm:$0xf]
  %v97 = vld [vmem:[%s0 + $0xcc] sm:$0xf]
  %v98 = vld [vmem:[%s0 + $0xd0] sm:$0xf]
  %v99 = vld [vmem:[%s0 + $0xd4] sm:$0xf]
  %v100 = vld [vmem:[%s0 + $0xd8] sm:$0xf]
  %v101 = vld [vmem:[%s0 + $0xdc] sm:$0xf]
  %v102 = vld [vmem:[%s0 + $0xe0] sm:$0xf]
  %v103 = vld [vmem:[%s0 + $0xe4] sm:$0xf]
  %v104 = vld [vmem:[%s0 + $0xe8] sm:$0xf]
  %v105 = vld [vmem:[%s0 + $0xec] sm:$0xf]
  %v106 = vld [vmem:[%s0 + $0xf0] sm:$0xf]
  %v107 = vld [vmem:[%s0 + $0xf4] sm:$0xf]
  %v108 = vld [vmem:[%s0 + $0xf8] sm:$0xf]
  %v109 = vld [vmem:[%s0 + $0xfc] sm:$0xf]
  %v110 = vld [vmem:[%s0 + $0x100] sm:$0xf]
  %v111 = vld [vmem:[%s0 + $0x104] sm:$0xf]
  %v112 = vld [vmem:[%s0 + $0x108] sm:$0xf]
  %v113 = vld [vmem:[%s0 + $0x10c] sm:$0xf]
  %v114 = vld [vmem:[%s0 + $0x110] sm:$0xf]
  %v115 = vld [vmem:[%s0 + $0x114] sm:$0xf]
  %v116 = vld [vmem:[%s0 + $0x118] sm:$0xf]
  %v117 = vld [vmem:[%s0 + $0x11c] sm:$0xf]
  %v118 = vld [vmem:[%s0 + $0x120] sm:$0xf]
  %v119 = vld [vmem:[%s0 + $0x124] sm:$0xf]
  %v120 = vld [vmem:[%s0 + $0x128] sm:$0xf]
  %v121 = vld [vmem:[%s0 + $0x12c] sm:$0xf]
  %v122 = vld [vmem:[%s0 + $0x130] sm:$0xf]
  %v123 = vld [vmem:[%s0 + $0x134] sm:$0xf]
  %v124 = vld [vmem:[%s0 + $0x138] sm:$0xf]
  %v125 = vld [vmem:[%s0 + $0x13c] sm:$0xf]
  %v126 = vld [vmem:[%s0 + $0x140] sm:$0xf]
  %v127 = vld [vmem:[%s0 + $0x144] sm:$0xf]
  %v128 = vld [vmem:[%s0 + $0x148] sm:$0xf]
  %v129 = vld [vmem:[%s0 + $0x14c] sm:$0xf]
  %v130 = vld [vmem:[%s0 + $0x150] sm:$0xf]
  %v131 = vld [vmem:[%s0 + $0x154] sm:$0xf]
  %v132 = vld [vmem:[%s0 + $0x158] sm:$0xf]
  %v133 = vld [vmem:[%s0 + $0x15c] sm:$0xf]
  %v134 = vld [vmem:[%s0 + $0x160] sm:$0xf]
  %v135 = vld [vmem:[%s0 + $0x164] sm:$0xf]
  %v136 = vld [vmem:[%s0 + $0x168] sm:$0xf]
  %v137 = vld [vmem:[%s0 + $0x16c] sm:$0xf]
  %v138 = vld [vmem:[%s0 + $0x170] sm:$0xf]
  %v139 = vld [vmem:[%s0 + $0x174] sm:$0xf]
  %v140 = vld [vmem:[%s0 + $0x178] sm:$0xf]
  %v141 = vld [vmem:[%s0 + $0x17c] sm:$0xf]
  %v142 = vld [vmem:[%s0 + $0x180] sm:$0xf]
  %v143 = vld [vmem:[%s0 + $0x184] sm:$0xf]
  %v144 = vld [vmem:[%s0 + $0x188] sm:$0xf]
  %v145 = vld [vmem:[%s0 + $0x18c] sm:$0xf]
  %v146 = vld [vmem:[%s0 + $0x190] sm:$0xf]
  %v147 = vld [vmem:[%s0 + $0x194] sm:$0xf]
  %v148 = vld [vmem:[%s0 + $0x198] sm:$0xf]
  %v149 = vld [vmem:[%s0 + $0x19c] sm:$0xf]
  %v150 = vld [vmem:[%s0 + $0x1a0] sm:$0xf]
  %v151 = vld [vmem:[%s0 + $0x1a4] sm:$0xf]
  %v152 = vld [vmem:[%s0 + $0x1a8] sm:$0xf]
  %v153 = vld [vmem:[%s0 + $0x1ac] sm:$0xf]
  %v170 = vunpack.c.l.b16 %v30
  %v171 = vunpack.c.h.b16 %v30
  %v172 = vunpack.c.l.b16 %v31
  %v173 = vunpack.c.h.b16 %v31
  %v174 = vunpack.c.l.b16 %v32
  %v175 = vunpack.c.h.b16 %v32
  %v176 = vunpack.c.l.b16 %v33
  %v177 = vunpack.c.l.b16 %v34
  %v178 = vunpack.c.h.b16 %v34
  %v179 = vunpack.c.l.b16 %v35
  %v180 = vunpack.c.h.b16 %v35
  %v181 = vunpack.c.l.b16 %v36
  %v182 = vunpack.c.h.b16 %v36
  %v183 = vunpack.c.l.b16 %v37
  %v184 = vunpack.c.l.b16 %v38
  %v185 = vunpack.c.h.b16 %v38
  %v186 = vunpack.c.l.b16 %v39
  %v187 = vunpack.c.h.b16 %v39
  %v188 = vunpack.c.l.b16 %v40
  %v189 = vunpack.c.h.b16 %v40
  %v190 = vunpack.c.l.b16 %v41
  %v191 = vunpack.c.l.b16 %v42
  %v192 = vunpack.c.h.b16 %v42
  %v193 = vunpack.c.l.b16 %v43
  %v194 = vunpack.c.h.b16 %v43
  %v195 = vunpack.c.l.b16 %v44
  %v196 = vunpack.c.h.b16 %v44
  %v197 = vunpack.c.l.b16 %v45
  %v198 = vpack.c.b16 %v177, %v170
  %v199 = vpack.c.b16 %v178, %v171
  %v200 = vpack.c.b16 %v179, %v172
  %v201 = vpack.c.b16 %v180, %v173
  %v202 = vpack.c.b16 %v181, %v174
  %v203 = vpack.c.b16 %v182, %v175
  %v204 = vpack.c.b16 %v183, %v176
  %v205 = vpack.c.b16 %v191, %v184
  %v206 = vpack.c.b16 %v192, %v185
  %v207 = vpack.c.b16 %v193, %v186
  %v208 = vpack.c.b16 %v194, %v187
  %v209 = vpack.c.b16 %v195, %v188
  %v210 = vpack.c.b16 %v196, %v189
  %v211 = vpack.c.b16 %v197, %v190
  %v332 = vunpack.c.l.b16 %v46
  %v333 = vunpack.c.l.b16 %v47
  %v334 = vunpack.c.l.b16 %v48
  %v335 = vunpack.c.l.b16 %v49
  %v336 = vunpack.c.l.b16 %v50
  %v337 = vunpack.c.l.b16 %v51
  %v338 = vunpack.c.l.b16 %v52
  %v339 = vunpack.c.l.b16 %v53
  %v340 = vunpack.c.l.b16 %v54
  %v341 = vunpack.c.l.b16 %v55
  %v342 = vunpack.c.l.b16 %v56
  %v343 = vunpack.c.l.b16 %v57
  %v344 = vunpack.c.l.b16 %v58
  %v345 = vunpack.c.l.b16 %v59
  %v346 = vunpack.c.l.b16 %v60
  %v347 = vunpack.c.l.b16 %v61
  %v348 = vunpack.c.l.b16 %v62
  %v349 = vunpack.c.l.b16 %v63
  %v350 = vunpack.c.l.b16 %v64
  %v351 = vunpack.c.l.b16 %v65
  %v352 = vunpack.c.l.b16 %v66
  %v353 = vunpack.c.l.b16 %v67
  %v354 = vunpack.c.l.b16 %v68
  %v355 = vunpack.c.l.b16 %v69
  %v356 = vunpack.c.l.b16 %v70
  %v357 = vunpack.c.l.b16 %v71
  %v358 = vunpack.c.l.b16 %v72
  %v359 = vunpack.c.l.b16 %v73
  %v360 = vunpack.c.l.b16 %v74
  %v361 = vunpack.c.l.b16 %v75
  %v362 = vunpack.c.l.b16 %v76
  %v363 = vunpack.c.l.b16 %v77
  %v364 = vunpack.c.l.b16 %v78
  %v365 = vunpack.c.l.b16 %v79
  %v366 = vunpack.c.l.b16 %v80
  %v367 = vunpack.c.l.b16 %v81
  %v368 = vunpack.c.l.b16 %v82
  %v369 = vunpack.c.l.b16 %v83
  %v370 = vunpack.c.l.b16 %v84
  %v371 = vunpack.c.l.b16 %v85
  %v372 = vunpack.c.l.b16 %v86
  %v373 = vunpack.c.l.b16 %v87
  %v374 = vunpack.c.l.b16 %v88
  %v375 = vunpack.c.l.b16 %v89
  %v376 = vunpack.c.l.b16 %v90
  %v377 = vunpack.c.l.b16 %v91
  %v378 = vunpack.c.l.b16 %v92
  %v379 = vunpack.c.l.b16 %v93
  %v380 = vunpack.c.l.b16 %v94
  %v381 = vunpack.c.l.b16 %v95
  %v382 = vunpack.c.l.b16 %v96
  %v383 = vunpack.c.l.b16 %v97
  %v384 = vunpack.c.l.b16 %v98
  %v385 = vunpack.c.l.b16 %v99
  %v386 = vunpack.c.l.b16 %v100
  %v387 = vunpack.c.l.b16 %v101
  %v388 = vunpack.c.l.b16 %v102
  %v389 = vunpack.c.l.b16 %v103
  %v390 = vunpack.c.l.b16 %v104
  %v391 = vunpack.c.l.b16 %v105
  %v392 = vunpack.c.l.b16 %v106
  %v393 = vunpack.c.l.b16 %v107
  %v394 = vunpack.c.l.b16 %v108
  %v395 = vunpack.c.l.b16 %v109
  %v396 = vunpack.c.l.b16 %v110
  %v397 = vunpack.c.l.b16 %v111
  %v398 = vunpack.c.l.b16 %v112
  %v399 = vunpack.c.l.b16 %v113
  %v400 = vunpack.c.l.b16 %v114
  %v401 = vunpack.c.l.b16 %v115
  %v402 = vunpack.c.l.b16 %v116
  %v403 = vunpack.c.l.b16 %v117
  %v404 = vunpack.c.l.b16 %v118
  %v405 = vunpack.c.l.b16 %v119
  %v406 = vunpack.c.l.b16 %v120
  %v407 = vunpack.c.l.b16 %v121
  %v408 = vunpack.c.l.b16 %v122
  %v409 = vunpack.c.l.b16 %v123
  %v410 = vunpack.c.l.b16 %v124
  %v411 = vunpack.c.l.b16 %v125
  %v412 = vunpack.c.l.b16 %v126
  %v413 = vunpack.c.l.b16 %v127
  %v414 = vunpack.c.l.b16 %v128
  %v415 = vunpack.c.l.b16 %v129
  %v416 = vunpack.c.l.b16 %v130
  %v417 = vunpack.c.l.b16 %v131
  %v418 = vunpack.c.l.b16 %v132
  %v419 = vunpack.c.l.b16 %v133
  %v420 = vunpack.c.l.b16 %v134
  %v421 = vunpack.c.l.b16 %v135
  %v422 = vunpack.c.l.b16 %v136
  %v423 = vunpack.c.l.b16 %v137
  %v424 = vunpack.c.l.b16 %v138
  %v425 = vunpack.c.l.b16 %v139
  %v426 = vunpack.c.l.b16 %v140
  %v427 = vunpack.c.l.b16 %v141
  %v428 = vunpack.c.l.b16 %v142
  %v429 = vunpack.c.l.b16 %v143
  %v430 = vunpack.c.l.b16 %v144
  %v431 = vunpack.c.l.b16 %v145
  %v432 = vunpack.c.l.b16 %v146
  %v433 = vunpack.c.l.b16 %v147
  %v434 = vunpack.c.l.b16 %v148
  %v435 = vunpack.c.l.b16 %v149
  %v436 = vunpack.c.l.b16 %v150
  %v437 = vunpack.c.l.b16 %v151
  %v438 = vunpack.c.l.b16 %v152
  %v439 = vunpack.c.l.b16 %v153
  %v440 = vpack.c.b16 %v333, %v332
  %v441 = vpack.c.b16 %v335, %v334
  %v442 = vpack.c.b16 %v337, %v336
  %v443 = vpack.c.b16 %v339, %v338
  %v444 = vpack.c.b16 %v341, %v340
  %v445 = vpack.c.b16 %v343, %v342
  %v446 = vpack.c.b16 %v345, %v344
  %v447 = vpack.c.b16 %v347, %v346
  %v448 = vpack.c.b16 %v349, %v348
  %v449 = vpack.c.b16 %v351, %v350
  %v450 = vpack.c.b16 %v353, %v352
  %v451 = vpack.c.b16 %v355, %v354
  %v452 = vpack.c.b16 %v357, %v356
  %v453 = vpack.c.b16 %v359, %v358
  %v454 = vpack.c.b16 %v361, %v360
  %v455 = vpack.c.b16 %v363, %v362
  %v456 = vpack.c.b16 %v365, %v364
  %v457 = vpack.c.b16 %v367, %v366
  %v458 = vpack.c.b16 %v369, %v368
  %v459 = vpack.c.b16 %v371, %v370
  %v460 = vpack.c.b16 %v373, %v372
  %v461 = vpack.c.b16 %v375, %v374
  %v462 = vpack.c.b16 %v377, %v376
  %v463 = vpack.c.b16 %v379, %v378
  %v464 = vpack.c.b16 %v381, %v380
  %v465 = vpack.c.b16 %v383, %v382
  %v466 = vpack.c.b16 %v385, %v384
  %v467 = vpack.c.b16 %v387, %v386
  %v468 = vpack.c.b16 %v389, %v388
  %v469 = vpack.c.b16 %v391, %v390
  %v470 = vpack.c.b16 %v393, %v392
  %v471 = vpack.c.b16 %v395, %v394
  %v472 = vpack.c.b16 %v397, %v396
  %v473 = vpack.c.b16 %v399, %v398
  %v474 = vpack.c.b16 %v401, %v400
  %v475 = vpack.c.b16 %v403, %v402
  %v476 = vpack.c.b16 %v405, %v404
  %v477 = vpack.c.b16 %v407, %v406
  %v478 = vpack.c.b16 %v409, %v408
  %v479 = vpack.c.b16 %v411, %v410
  %v480 = vpack.c.b16 %v413, %v412
  %v481 = vpack.c.b16 %v415, %v414
  %v482 = vpack.c.b16 %v417, %v416
  %v483 = vpack.c.b16 %v419, %v418
  %v484 = vpack.c.b16 %v421, %v420
  %v485 = vpack.c.b16 %v423, %v422
  %v486 = vpack.c.b16 %v425, %v424
  %v487 = vpack.c.b16 %v427, %v426
  %v488 = vpack.c.b16 %v429, %v428
  %v489 = vpack.c.b16 %v431, %v430
  %v490 = vpack.c.b16 %v433, %v432
  %v491 = vpack.c.b16 %v435, %v434
  %v492 = vpack.c.b16 %v437, %v436
  %v493 = vpack.c.b16 %v439, %v438
  %vm548 = vcmask 785408
  %v550 = vsel %vm548, %v204, 0
  %v553 = vsel %vm548, %v211, 0
  %555 = vmatprep.subr.bf16.mxu0 0
  %556 = vmatpush1.bf16.msra.mxu0 %v440
  %557 = vmatprep.subr.bf16.mxu0 0
  %558 = vmatpush1.bf16.msra.mxu0 %v441
  %559 = vmatprep.subr.bf16.mxu0 0
  %560 = vmatpush1.bf16.msra.mxu0 %v442
  %561 = vmatprep.subr.bf16.mxu0 0
  %562 = vmatpush1.bf16.msra.mxu0 %v443
  %563 = vmatprep.subr.bf16.mxu0 0
  %564 = vmatpush1.bf16.msra.mxu0 %v444
  %565 = vmatprep.subr.bf16.mxu0 0
  %566 = vmatpush1.bf16.msra.mxu0 %v445
  %567 = vmatprep.subr.bf16.mxu0 0
  %568 = vmatpush1.bf16.msra.mxu0 %v446
  %569 = vmatprep.subr.bf16.mxu0 0
  %570 = vmatpush1.bf16.msra.mxu0 %v447
  %571 = vmatprep.subr.bf16.mxu0 0
  %572 = vmatpush1.bf16.msra.mxu0 %v448
  %573 = vmatprep.subr.bf16.mxu0 0
  %574 = vmatpush1.bf16.msra.mxu0 %v449
  %575 = vmatprep.subr.bf16.mxu0 0
  %576 = vmatpush1.bf16.msra.mxu0 %v450
  %577 = vmatprep.subr.bf16.mxu0 0
  %578 = vmatpush1.bf16.msra.mxu0 %v451
  %579 = vmatprep.subr.bf16.mxu0 0
  %580 = vmatpush1.bf16.msra.mxu0 %v452
  %581 = vmatprep.subr.bf16.mxu0 0
  %582 = vmatpush1.bf16.msra.mxu0 %v453
  %583 = vmatprep.subr.bf16.mxu0 0
  %584 = vmatpush1.bf16.msra.mxu0 %v454
  %585 = vmatprep.subr.bf16.mxu0 0
  %586 = vmatpush1.bf16.msra.mxu0 %v455
  %587 = vmatprep.mubr.bf16.mxu0 %v199
  %588 = vmatmul.mubr.bf16.gmra.mrb[0].mxu0 %v198
  %v589 = vpop.f32.mrb[0].mxu0
  %v590 = vadd.f32 0.0, %v589
  %v591 = vpop.f32.mrb[0].mxu0
  %v592 = vpop.f32.mrb[0].mxu0
  %v593 = vadd.f32 0.0, %v592
  %v594 = vpop.f32.mrb[0].mxu0
  %595 = vmatprep.mubr.bf16.mxu0 %v206
  %596 = vmatmul.mubr.bf16.gmra.mrb[0].mxu0 %v205
  %v597 = vpop.f32.mrb[0].mxu0
  %v598 = vadd.f32 0.0, %v597
  %v599 = vpop.f32.mrb[0].mxu0
  %v600 = vpop.f32.mrb[0].mxu0
  %v601 = vadd.f32 0.0, %v600
  %v602 = vpop.f32.mrb[0].mxu0
  %603 = vdwg.mxu0
  %604 = vmatprep.subr.bf16.mxu0 0
  %605 = vmatpush1.bf16.msra.mxu0 %v456
  %606 = vmatprep.subr.bf16.mxu0 0
  %607 = vmatpush1.bf16.msra.mxu0 %v457
  %608 = vmatprep.subr.bf16.mxu0 0
  %609 = vmatpush1.bf16.msra.mxu0 %v458
  %610 = vmatprep.subr.bf16.mxu0 0
  %611 = vmatpush1.bf16.msra.mxu0 %v459
  %612 = vmatprep.subr.bf16.mxu0 0
  %613 = vmatpush1.bf16.msra.mxu0 %v460
  %614 = vmatprep.subr.bf16.mxu0 0
  %615 = vmatpush1.bf16.msra.mxu0 %v461
  %616 = vmatprep.subr.bf16.mxu0 0
  %617 = vmatpush1.bf16.msra.mxu0 %v462
  %618 = vmatprep.subr.bf16.mxu0 0
  %619 = vmatpush1.bf16.msra.mxu0 %v463
  %620 = vmatprep.subr.bf16.mxu0 0
  %621 = vmatpush1.bf16.msra.mxu0 %v464
  %622 = vmatprep.subr.bf16.mxu0 0
  %623 = vmatpush1.bf16.msra.mxu0 %v465
  %624 = vmatprep.subr.bf16.mxu0 0
  %625 = vmatpush1.bf16.msra.mxu0 %v466
  %626 = vmatprep.subr.bf16.mxu0 0
  %627 = vmatpush1.bf16.msra.mxu0 %v467
  %628 = vmatprep.subr.bf16.mxu0 0
  %629 = vmatpush1.bf16.msra.mxu0 %v468
  %630 = vmatprep.subr.bf16.mxu0 0
  %631 = vmatpush1.bf16.msra.mxu0 %v469
  %632 = vmatprep.subr.bf16.mxu0 0
  %633 = vmatpush1.bf16.msra.mxu0 %v470
  %634 = vmatprep.subr.bf16.mxu0 0
  %635 = vmatpush1.bf16.msra.mxu0 %v471
  %636 = vmatprep.mubr.bf16.mxu0 %v201
  %637 = vmatmul.mubr.bf16.gmra.mrb[0].mxu0 %v200
  %v638 = vpop.f32.mrb[0].mxu0
  %v639 = vadd.f32 %v590, %v638
  %v640 = vpop.f32.mrb[0].mxu0
  %v641 = vpop.f32.mrb[0].mxu0
  %v642 = vadd.f32 %v593, %v641
  %v643 = vpop.f32.mrb[0].mxu0
  %644 = vmatprep.mubr.bf16.mxu0 %v208
  %645 = vmatmul.mubr.bf16.gmra.mrb[0].mxu0 %v207
  %v646 = vpop.f32.mrb[0].mxu0
  %v647 = vadd.f32 %v598, %v646
  %v648 = vpop.f32.mrb[0].mxu0
  %v649 = vpop.f32.mrb[0].mxu0
  %v650 = vadd.f32 %v601, %v649
  %v651 = vpop.f32.mrb[0].mxu0
  %652 = vdwg.mxu0
  %653 = vmatprep.subr.bf16.mxu0 0
  %654 = vmatpush1.bf16.msra.mxu0 %v472
  %655 = vmatprep.subr.bf16.mxu0 0
  %656 = vmatpush1.bf16.msra.mxu0 %v473
  %657 = vmatprep.subr.bf16.mxu0 0
  %658 = vmatpush1.bf16.msra.mxu0 %v474
  %659 = vmatprep.subr.bf16.mxu0 0
  %660 = vmatpush1.bf16.msra.mxu0 %v475
  %661 = vmatprep.subr.bf16.mxu0 0
  %662 = vmatpush1.bf16.msra.mxu0 %v476
  %663 = vmatprep.subr.bf16.mxu0 0
  %664 = vmatpush1.bf16.msra.mxu0 %v477
  %665 = vmatprep.subr.bf16.mxu0 0
  %666 = vmatpush1.bf16.msra.mxu0 %v478
  %667 = vmatprep.subr.bf16.mxu0 0
  %668 = vmatpush1.bf16.msra.mxu0 %v479
  %669 = vmatprep.subr.bf16.mxu0 0
  %670 = vmatpush1.bf16.msra.mxu0 %v480
  %671 = vmatprep.subr.bf16.mxu0 0
  %672 = vmatpush1.bf16.msra.mxu0 %v481
  %673 = vmatprep.subr.bf16.mxu0 0
  %674 = vmatpush1.bf16.msra.mxu0 %v482
  %675 = vmatprep.subr.bf16.mxu0 0
  %676 = vmatpush1.bf16.msra.mxu0 %v483
  %677 = vmatprep.subr.bf16.mxu0 0
  %678 = vmatpush1.bf16.msra.mxu0 %v484
  %679 = vmatprep.subr.bf16.mxu0 0
  %680 = vmatpush1.bf16.msra.mxu0 %v485
  %681 = vmatprep.subr.bf16.mxu0 0
  %682 = vmatpush1.bf16.msra.mxu0 %v486
  %683 = vmatprep.subr.bf16.mxu0 0
  %684 = vmatpush1.bf16.msra.mxu0 %v487
  %685 = vmatprep.mubr.bf16.mxu0 %v203
  %686 = vmatmul.mubr.bf16.gmra.mrb[0].mxu0 %v202
  %v687 = vpop.f32.mrb[0].mxu0
  %v688 = vadd.f32 %v639, %v687
  %v689 = vpop.f32.mrb[0].mxu0
  %v690 = vpop.f32.mrb[0].mxu0
  %v691 = vadd.f32 %v642, %v690
  %v692 = vpop.f32.mrb[0].mxu0
  %693 = vmatprep.mubr.bf16.mxu0 %v210
  %694 = vmatmul.mubr.bf16.gmra.mrb[0].mxu0 %v209
  %v695 = vpop.f32.mrb[0].mxu0
  %v696 = vadd.f32 %v647, %v695
  %v697 = vpop.f32.mrb[0].mxu0
  %v698 = vpop.f32.mrb[0].mxu0
  %v699 = vadd.f32 %v650, %v698
  %v700 = vpop.f32.mrb[0].mxu0
  %701 = vdwg.mxu0
  %702 = vmatprep.subr.bf16.mxu0 0
  %703 = vmatpush1.bf16.msra.mxu0 %v488
  %704 = vmatprep.subr.bf16.mxu0 0
  %705 = vmatpush1.bf16.msra.mxu0 %v489
  %706 = vmatprep.subr.bf16.mxu0 0
  %707 = vmatpush1.bf16.msra.mxu0 %v490
  %708 = vmatprep.subr.bf16.mxu0 0
  %709 = vmatpush1.bf16.msra.mxu0 %v491
  %710 = vmatprep.subr.bf16.mxu0 0
  %711 = vmatpush1.bf16.msra.mxu0 %v492
  %712 = vmatprep.subr.bf16.mxu0 0
  %713 = vmatpush1.bf16.msra.mxu0 %v493
  %714 = vmatprep.subr.bf16.mxu0 0
  %715 = vmatpush1.bf16.msra.mxu0 0
  %716 = vmatprep.subr.bf16.mxu0 0
  %717 = vmatpush1.bf16.msra.mxu0 0
  %718 = vmatprep.subr.bf16.mxu0 0
  %719 = vmatpush1.bf16.msra.mxu0 0
  %720 = vmatprep.subr.bf16.mxu0 0
  %721 = vmatpush1.bf16.msra.mxu0 0
  %722 = vmatprep.subr.bf16.mxu0 0
  %723 = vmatpush1.bf16.msra.mxu0 0
  %724 = vmatprep.subr.bf16.mxu0 0
  %725 = vmatpush1.bf16.msra.mxu0 0
  %726 = vmatprep.subr.bf16.mxu0 0
  %727 = vmatpush1.bf16.msra.mxu0 0
  %728 = vmatprep.subr.bf16.mxu0 0
  %729 = vmatpush1.bf16.msra.mxu0 0
  %730 = vmatprep.subr.bf16.mxu0 0
  %731 = vmatpush1.bf16.msra.mxu0 0
  %732 = vmatprep.subr.bf16.mxu0 0
  %733 = vmatpush1.bf16.msra.mxu0 0
  %734 = vmatprep.mubr.bf16.mxu0 0
  %735 = vmatmul.mubr.bf16.gmra.mrb[0].mxu0 %v550
  %v736 = vpop.f32.mrb[0].mxu0
  %v737 = vadd.f32 %v688, %v736
  %v738 = vpop.f32.mrb[0].mxu0
  %v739 = vpop.f32.mrb[0].mxu0
  %v740 = vadd.f32 %v691, %v739
  %v741 = vpop.f32.mrb[0].mxu0
  %742 = vmatprep.mubr.bf16.mxu0 0
  %743 = vmatmul.mubr.bf16.gmra.mrb[0].mxu0 %v553
  %v744 = vpop.f32.mrb[0].mxu0
  %v745 = vadd.f32 %v696, %v744
  %v746 = vpop.f32.mrb[0].mxu0
  %v747 = vpop.f32.mrb[0].mxu0
  %v748 = vadd.f32 %v699, %v747
  %v749 = vpop.f32.mrb[0].mxu0
  %750 = vdwg.mxu0
  %v751 = vld [vmem:[%s2] sm:$0xff]
  %v752 = vld [vmem:[%s2 + $0x8] sm:$0xff]
  %v753 = vld [vmem:[%s2 + $0x10] sm:$0xff]
  %v754 = vld [vmem:[%s2 + $0x18] sm:$0xff]
  %756 = vset.pattern.permute.xlu0 0
  %757 = vperm.xlu0 %756, %v751
  %v758 = vpop.permute.xlu0 %757
  %761 = vset.pattern.permute.xlu0 0
  %762 = vperm.xlu0 %761, %v752
  %v763 = vpop.permute.xlu0 %762
  %766 = vset.pattern.permute.xlu0 0
  %767 = vperm.xlu0 %766, %v753
  %v768 = vpop.permute.xlu0 %767
  %771 = vset.pattern.permute.xlu0 0
  %772 = vperm.xlu0 %771, %v754
  %v773 = vpop.permute.xlu0 %772
  %v775 = vmul.f32 %v737, %v758
  %v776 = vmul.f32 %v740, %v763
  %v777 = vmul.f32 %v745, %v768
  %v778 = vmul.f32 %v748, %v773
  %v779 = vld [vmem:[%s3] sm:$0xff]
  %v780 = vld [vmem:[%s3 + $0x8] sm:$0xff]
  %v781 = vld [vmem:[%s3 + $0x10] sm:$0xff]
  %v782 = vld [vmem:[%s3 + $0x18] sm:$0xff]
  %784 = vset.pattern.permute.xlu0 0
  %785 = vperm.xlu0 %784, %v779
  %v786 = vpop.permute.xlu0 %785
  %789 = vset.pattern.permute.xlu0 0
  %790 = vperm.xlu0 %789, %v780
  %v791 = vpop.permute.xlu0 %790
  %794 = vset.pattern.permute.xlu0 0
  %795 = vperm.xlu0 %794, %v781
  %v796 = vpop.permute.xlu0 %795
  %799 = vset.pattern.permute.xlu0 0
  %800 = vperm.xlu0 %799, %v782
  %v801 = vpop.permute.xlu0 %800
  %v803 = vadd.f32 %v775, %v786
  %v804 = vadd.f32 %v776, %v791
  %v805 = vadd.f32 %v777, %v796
  %v806 = vadd.f32 %v778, %v801
  %v807 = vld [vmem:[%s5] sm:$0xf]
  %v808 = vld [vmem:[%s5 + $0x4] sm:$0xf]
  %v809 = vld [vmem:[%s5 + $0x8] sm:$0xf]
  %v810 = vld [vmem:[%s5 + $0xc] sm:$0xf]
  %v811 = vld [vmem:[%s4] sm:$0xf]
  %v812 = vld [vmem:[%s4 + $0x4] sm:$0xf]
  %v817 = vunpack.c.l.b16 %v807
  %v818 = vunpack.c.l.b16 %v808
  %v819 = vunpack.c.l.b16 %v809
  %v820 = vunpack.c.l.b16 %v810
  %v821 = vpack.c.b16 %v818, %v817
  %v822 = vpack.c.b16 %v820, %v819
  %v825 = vunpack.c.l.b16 %v811
  %v826 = vunpack.c.l.b16 %v812
  %v827 = vpack.c.b16 %v826, %v825
  %vm829 = vcmask 130048
  %v831 = vsel %vm829, %v821, 0
  %v834 = vsel %vm829, %v822, 0
  %836 = vmatprep.subr.bf16.mxu0 0
  %837 = vmatpush1.bf16.msra.mxu0 %v827
  %838 = vmatprep.subr.bf16.mxu0 0
  %839 = vmatpush1.bf16.msra.mxu0 0
  %840 = vmatprep.subr.bf16.mxu0 0
  %841 = vmatpush1.bf16.msra.mxu0 0
  %842 = vmatprep.subr.bf16.mxu0 0
  %843 = vmatpush1.bf16.msra.mxu0 0
  %844 = vmatprep.subr.bf16.mxu0 0
  %845 = vmatpush1.bf16.msra.mxu0 0
  %846 = vmatprep.subr.bf16.mxu0 0
  %847 = vmatpush1.bf16.msra.mxu0 0
  %848 = vmatprep.subr.bf16.mxu0 0
  %849 = vmatpush1.bf16.msra.mxu0 0
  %850 = vmatprep.subr.bf16.mxu0 0
  %851 = vmatpush1.bf16.msra.mxu0 0
  %852 = vmatprep.subr.bf16.mxu0 0
  %853 = vmatpush1.bf16.msra.mxu0 0
  %854 = vmatprep.subr.bf16.mxu0 0
  %855 = vmatpush1.bf16.msra.mxu0 0
  %856 = vmatprep.subr.bf16.mxu0 0
  %857 = vmatpush1.bf16.msra.mxu0 0
  %858 = vmatprep.subr.bf16.mxu0 0
  %859 = vmatpush1.bf16.msra.mxu0 0
  %860 = vmatprep.subr.bf16.mxu0 0
  %861 = vmatpush1.bf16.msra.mxu0 0
  %862 = vmatprep.subr.bf16.mxu0 0
  %863 = vmatpush1.bf16.msra.mxu0 0
  %864 = vmatprep.subr.bf16.mxu0 0
  %865 = vmatpush1.bf16.msra.mxu0 0
  %866 = vmatprep.subr.bf16.mxu0 0
  %867 = vmatpush1.bf16.msra.mxu0 0
  %868 = vmatprep.mubr.bf16.mxu0 0
  %869 = vmatmul.mubr.bf16.gmra.mrb[0].mxu0 %v831
  %v870 = vpop.f32.mrb[0].mxu0
  %v871 = vadd.f32 0.0, %v870
  %v872 = vpop.f32.mrb[0].mxu0
  %v873 = vpop.f32.mrb[0].mxu0
  %v874 = vadd.f32 0.0, %v873
  %v875 = vpop.f32.mrb[0].mxu0
  %876 = vmatprep.mubr.bf16.mxu0 0
  %877 = vmatmul.mubr.bf16.gmra.mrb[0].mxu0 %v834
  %v878 = vpop.f32.mrb[0].mxu0
  %v879 = vadd.f32 0.0, %v878
  %v880 = vpop.f32.mrb[0].mxu0
  %v881 = vpop.f32.mrb[0].mxu0
  %v882 = vadd.f32 0.0, %v881
  %v883 = vpop.f32.mrb[0].mxu0
  %884 = vdwg.mxu0
  %v885 = vld [vmem:[%s6] sm:$0xff]
  %v886 = vld [vmem:[%s6 + $0x8] sm:$0xff]
  %v887 = vld [vmem:[%s6 + $0x10] sm:$0xff]
  %v888 = vld [vmem:[%s6 + $0x18] sm:$0xff]
  %890 = vset.pattern.permute.xlu0 0
  %891 = vperm.xlu0 %890, %v885
  %v892 = vpop.permute.xlu0 %891
  %895 = vset.pattern.permute.xlu0 0
  %896 = vperm.xlu0 %895, %v886
  %v897 = vpop.permute.xlu0 %896
  %900 = vset.pattern.permute.xlu0 0
  %901 = vperm.xlu0 %900, %v887
  %v902 = vpop.permute.xlu0 %901
  %905 = vset.pattern.permute.xlu0 0
  %906 = vperm.xlu0 %905, %v888
  %v907 = vpop.permute.xlu0 %906
  %v909 = vmul.f32 %v871, %v892
  %v910 = vmul.f32 %v874, %v897
  %v911 = vmul.f32 %v879, %v902
  %v912 = vmul.f32 %v882, %v907
  %v913 = vld [vmem:[%s7] sm:$0xff]
  %v914 = vld [vmem:[%s7 + $0x8] sm:$0xff]
  %v915 = vld [vmem:[%s7 + $0x10] sm:$0xff]
  %v916 = vld [vmem:[%s7 + $0x18] sm:$0xff]
  %918 = vset.pattern.permute.xlu0 0
  %919 = vperm.xlu0 %918, %v913
  %v920 = vpop.permute.xlu0 %919
  %923 = vset.pattern.permute.xlu0 0
  %924 = vperm.xlu0 %923, %v914
  %v925 = vpop.permute.xlu0 %924
  %928 = vset.pattern.permute.xlu0 0
  %929 = vperm.xlu0 %928, %v915
  %v930 = vpop.permute.xlu0 %929
  %933 = vset.pattern.permute.xlu0 0
  %934 = vperm.xlu0 %933, %v916
  %v935 = vpop.permute.xlu0 %934
  %v937 = vadd.f32 %v909, %v920
  %v938 = vadd.f32 %v910, %v925
  %v939 = vadd.f32 %v911, %v930
  %v940 = vadd.f32 %v912, %v935
  %v941 = vadd.f32 %v803, %v937
  %v942 = vadd.f32 %v804, %v938
  %v943 = vadd.f32 %v805, %v939
  %v944 = vadd.f32 %v806, %v940
  %v945 = vmax.f32 %v941, 0.0
  %v946 = vmax.f32 %v942, 0.0
  %v947 = vmax.f32 %v943, 0.0
  %v948 = vmax.f32 %v944, 0.0
  %vm949 = vcmask 15360
  %950 = vst.msk [vmem:[%s8] sm:$0xff] %vm949, %v945
  %951 = vst.msk [vmem:[%s8 + $0x8] sm:$0xff] %vm949, %v946
  %952 = vst.msk [vmem:[%s8 + $0x10] sm:$0xff] %vm949, %v947
  %953 = vst.msk [vmem:[%s8 + $0x18] sm:$0xff] %vm949, %v948
  // Predicated region
  $region34: #{heterogeneous_resnet_forward.18} parent=0 // pred_check
    _
  $region35: #{heterogeneous_resnet_forward.18} parent=0 // pred_check_branch
    %955 = sbr.rel (0) target = $region37
  $region36: #{heterogeneous_resnet_forward.18} parent=0 // pred_region
    _
  $region37: #{heterogeneous_resnet_forward.18} parent=0 // pred_fallthru
    _
  // Predicated region
  $region38: #{heterogeneous_resnet_forward.18} parent=0 // pred_check
    _
  $region39: #{heterogeneous_resnet_forward.18} parent=0 // pred_check_branch
    %957 = sbr.rel (0) target = $region41
  $region40: #{heterogeneous_resnet_forward.18} parent=0 // pred_region
    _
  $region41: #{heterogeneous_resnet_forward.18} parent=0 // pred_fallthru
    _

// kernel: heterogeneous_resnet_forward.19
$region0: #{heterogeneous_resnet_forward.19}
  #allocation0 [shape = 'u32[]', space=smem, size = 0x4, offset = 0x4, fixed_abs, tag = 'smem constant byte address 0x4 - core index']
  #allocation1 [shape = 'u32[144,128]{1,0:T(1,128)}', space=vmem, size = 0x12000, scoped, tag = 'internal scratch']
  %s0 = inlined_call_operand.vmem [shape: f32[32,2,1], index: 0, kind: input, shape index: {}]
  %s1 = inlined_call_operand.vmem [shape: f32[3,32], index: 1, kind: input, shape index: {}]
  %s2 = inlined_call_operand.vmem [shape: f32[3,1], index: 2, kind: input, shape index: {}]
  %s3 = inlined_call_operand.vmem [shape: f32[3,2], index: 3, kind: output, shape index: {}]
  %s4 = sld [smem:[#allocation0]]
  $region22: #{heterogeneous_resnet_forward.19} parent=0
    _
  %s6 = ssub.s32 1, %s4
  %s7 = scalar_select 0, %s6, %s4
  // Predicated region
  $region2: #{heterogeneous_resnet_forward.19} parent=0 // pred_check
    _
  $region3: #{heterogeneous_resnet_forward.19} parent=0 // pred_check_branch
    %9 = sbr.rel (0) target = $region5
  $region4: #{heterogeneous_resnet_forward.19} parent=0 // pred_region
    _
  $region5: #{heterogeneous_resnet_forward.19} parent=0 // pred_fallthru
    _
  // Predicated region
  $region6: #{heterogeneous_resnet_forward.19} parent=0 // pred_check
    _
  $region7: #{heterogeneous_resnet_forward.19} parent=0 // pred_check_branch
    %11 = sbr.rel (0) target = $region9
  $region8: #{heterogeneous_resnet_forward.19} parent=0 // pred_region
    _
  $region9: #{heterogeneous_resnet_forward.19} parent=0 // pred_fallthru
    _
  // Predicated region
  $region10: #{heterogeneous_resnet_forward.19} parent=0 // pred_check
    _
  $region11: #{heterogeneous_resnet_forward.19} parent=0 // pred_check_branch
    %13 = sbr.rel (0) target = $region13
  $region12: #{heterogeneous_resnet_forward.19} parent=0 // pred_region
    _
  $region13: #{heterogeneous_resnet_forward.19} parent=0 // pred_fallthru
    _
  %v14 = vld [vmem:[%s0] sm:$0x3]
  %v15 = vld [vmem:[%s0 + $0x2] sm:$0x3]
  %v16 = vld [vmem:[%s0 + $0x4] sm:$0x3]
  %v17 = vld [vmem:[%s0 + $0x6] sm:$0x3]
  %v18 = vld [vmem:[%s0 + $0x8] sm:$0x3]
  %v19 = vld [vmem:[%s0 + $0xa] sm:$0x3]
  %v20 = vld [vmem:[%s0 + $0xc] sm:$0x3]
  %v21 = vld [vmem:[%s0 + $0xe] sm:$0x3]
  %v22 = vld [vmem:[%s0 + $0x10] sm:$0x3]
  %v23 = vld [vmem:[%s0 + $0x12] sm:$0x3]
  %v24 = vld [vmem:[%s0 + $0x14] sm:$0x3]
  %v25 = vld [vmem:[%s0 + $0x16] sm:$0x3]
  %v26 = vld [vmem:[%s0 + $0x18] sm:$0x3]
  %v27 = vld [vmem:[%s0 + $0x1a] sm:$0x3]
  %v28 = vld [vmem:[%s0 + $0x1c] sm:$0x3]
  %v29 = vld [vmem:[%s0 + $0x1e] sm:$0x3]
  %v30 = vld [vmem:[%s0 + $0x20] sm:$0x3]
  %v31 = vld [vmem:[%s0 + $0x22] sm:$0x3]
  %v32 = vld [vmem:[%s0 + $0x24] sm:$0x3]
  %v33 = vld [vmem:[%s0 + $0x26] sm:$0x3]
  %v34 = vld [vmem:[%s0 + $0x28] sm:$0x3]
  %v35 = vld [vmem:[%s0 + $0x2a] sm:$0x3]
  %v36 = vld [vmem:[%s0 + $0x2c] sm:$0x3]
  %v37 = vld [vmem:[%s0 + $0x2e] sm:$0x3]
  %v38 = vld [vmem:[%s0 + $0x30] sm:$0x3]
  %v39 = vld [vmem:[%s0 + $0x32] sm:$0x3]
  %v40 = vld [vmem:[%s0 + $0x34] sm:$0x3]
  %v41 = vld [vmem:[%s0 + $0x36] sm:$0x3]
  %v42 = vld [vmem:[%s0 + $0x38] sm:$0x3]
  %v43 = vld [vmem:[%s0 + $0x3a] sm:$0x3]
  %v44 = vld [vmem:[%s0 + $0x3c] sm:$0x3]
  %v45 = vld [vmem:[%s0 + $0x3e] sm:$0x3]
  %v46 = vadd.f32 %v14, 0.0
  %v47 = vadd.f32 %v15, 0.0
  %v48 = vadd.f32 %v16, 0.0
  %v49 = vadd.f32 %v17, 0.0
  %v50 = vadd.f32 %v18, 0.0
  %v51 = vadd.f32 %v19, 0.0
  %v52 = vadd.f32 %v20, 0.0
  %v53 = vadd.f32 %v21, 0.0
  %v54 = vadd.f32 %v22, 0.0
  %v55 = vadd.f32 %v23, 0.0
  %v56 = vadd.f32 %v24, 0.0
  %v57 = vadd.f32 %v25, 0.0
  %v58 = vadd.f32 %v26, 0.0
  %v59 = vadd.f32 %v27, 0.0
  %v60 = vadd.f32 %v28, 0.0
  %v61 = vadd.f32 %v29, 0.0
  %v62 = vadd.f32 %v30, 0.0
  %v63 = vadd.f32 %v31, 0.0
  %v64 = vadd.f32 %v32, 0.0
  %v65 = vadd.f32 %v33, 0.0
  %v66 = vadd.f32 %v34, 0.0
  %v67 = vadd.f32 %v35, 0.0
  %v68 = vadd.f32 %v36, 0.0
  %v69 = vadd.f32 %v37, 0.0
  %v70 = vadd.f32 %v38, 0.0
  %v71 = vadd.f32 %v39, 0.0
  %v72 = vadd.f32 %v40, 0.0
  %v73 = vadd.f32 %v41, 0.0
  %v74 = vadd.f32 %v42, 0.0
  %v75 = vadd.f32 %v43, 0.0
  %v76 = vadd.f32 %v44, 0.0
  %v77 = vadd.f32 %v45, 0.0
  %v78 = vld [vmem:[%s1] sm:$0x7]
  %v79 = vld [vmem:[%s2] sm:$0x7]
  %81 = vset.pattern.permute.xlu0 0
  %82 = vperm.xlu0 %81, %v79
  %v83 = vpop.permute.xlu0 %82
  %117 = vset.pattern.permute.xlu0 0
  %118 = vperm.xlu0 %117, %v46
  %v119 = vpop.permute.xlu0 %118
  %120 = vset.pattern.permute.xlu0 0
  %121 = vperm.xlu0 %120, %v47
  %v122 = vpop.permute.xlu0 %121
  %123 = vset.pattern.permute.xlu0 0
  %124 = vperm.xlu0 %123, %v48
  %v125 = vpop.permute.xlu0 %124
  %126 = vset.pattern.permute.xlu0 0
  %127 = vperm.xlu0 %126, %v49
  %v128 = vpop.permute.xlu0 %127
  %129 = vset.pattern.permute.xlu0 0
  %130 = vperm.xlu0 %129, %v50
  %v131 = vpop.permute.xlu0 %130
  %132 = vset.pattern.permute.xlu0 0
  %133 = vperm.xlu0 %132, %v51
  %v134 = vpop.permute.xlu0 %133
  %135 = vset.pattern.permute.xlu0 0
  %136 = vperm.xlu0 %135, %v52
  %v137 = vpop.permute.xlu0 %136
  %138 = vset.pattern.permute.xlu0 0
  %139 = vperm.xlu0 %138, %v53
  %v140 = vpop.permute.xlu0 %139
  %141 = vset.pattern.permute.xlu0 0
  %142 = vperm.xlu0 %141, %v54
  %v143 = vpop.permute.xlu0 %142
  %144 = vset.pattern.permute.xlu0 0
  %145 = vperm.xlu0 %144, %v55
  %v146 = vpop.permute.xlu0 %145
  %147 = vset.pattern.permute.xlu0 0
  %148 = vperm.xlu0 %147, %v56
  %v149 = vpop.permute.xlu0 %148
  %150 = vset.pattern.permute.xlu0 0
  %151 = vperm.xlu0 %150, %v57
  %v152 = vpop.permute.xlu0 %151
  %153 = vset.pattern.permute.xlu0 0
  %154 = vperm.xlu0 %153, %v58
  %v155 = vpop.permute.xlu0 %154
  %156 = vset.pattern.permute.xlu0 0
  %157 = vperm.xlu0 %156, %v59
  %v158 = vpop.permute.xlu0 %157
  %159 = vset.pattern.permute.xlu0 0
  %160 = vperm.xlu0 %159, %v60
  %v161 = vpop.permute.xlu0 %160
  %162 = vset.pattern.permute.xlu0 0
  %163 = vperm.xlu0 %162, %v61
  %v164 = vpop.permute.xlu0 %163
  %165 = vset.pattern.permute.xlu0 0
  %166 = vperm.xlu0 %165, %v62
  %v167 = vpop.permute.xlu0 %166
  %168 = vset.pattern.permute.xlu0 0
  %169 = vperm.xlu0 %168, %v63
  %v170 = vpop.permute.xlu0 %169
  %171 = vset.pattern.permute.xlu0 0
  %172 = vperm.xlu0 %171, %v64
  %v173 = vpop.permute.xlu0 %172
  %174 = vset.pattern.permute.xlu0 0
  %175 = vperm.xlu0 %174, %v65
  %v176 = vpop.permute.xlu0 %175
  %177 = vset.pattern.permute.xlu0 0
  %178 = vperm.xlu0 %177, %v66
  %v179 = vpop.permute.xlu0 %178
  %180 = vset.pattern.permute.xlu0 0
  %181 = vperm.xlu0 %180, %v67
  %v182 = vpop.permute.xlu0 %181
  %183 = vset.pattern.permute.xlu0 0
  %184 = vperm.xlu0 %183, %v68
  %v185 = vpop.permute.xlu0 %184
  %186 = vset.pattern.permute.xlu0 0
  %187 = vperm.xlu0 %186, %v69
  %v188 = vpop.permute.xlu0 %187
  %189 = vset.pattern.permute.xlu0 0
  %190 = vperm.xlu0 %189, %v70
  %v191 = vpop.permute.xlu0 %190
  %192 = vset.pattern.permute.xlu0 0
  %193 = vperm.xlu0 %192, %v71
  %v194 = vpop.permute.xlu0 %193
  %195 = vset.pattern.permute.xlu0 0
  %196 = vperm.xlu0 %195, %v72
  %v197 = vpop.permute.xlu0 %196
  %198 = vset.pattern.permute.xlu0 0
  %199 = vperm.xlu0 %198, %v73
  %v200 = vpop.permute.xlu0 %199
  %201 = vset.pattern.permute.xlu0 0
  %202 = vperm.xlu0 %201, %v74
  %v203 = vpop.permute.xlu0 %202
  %204 = vset.pattern.permute.xlu0 0
  %205 = vperm.xlu0 %204, %v75
  %v206 = vpop.permute.xlu0 %205
  %207 = vset.pattern.permute.xlu0 0
  %208 = vperm.xlu0 %207, %v76
  %v209 = vpop.permute.xlu0 %208
  %210 = vset.pattern.permute.xlu0 0
  %211 = vperm.xlu0 %210, %v77
  %v212 = vpop.permute.xlu0 %211
  %v213 = vlaneseq
  %v214 = vand.u32 %v213, 127
  %v215 = vlaneseq
  %v216 = vshrl.u32 %v215, 7
  %v217 = vsub.s32 %v214, %v216
  %v218 = vrot.slane %v119, %v217
  %v219 = vlaneseq
  %v220 = vshrl.u32 %v219, 7
  %v221 = vsub.s32 %v214, %v220
  %v222 = vrot.slane %v122, %v221
  %v223 = vlaneseq
  %v224 = vshrl.u32 %v223, 7
  %v225 = vsub.s32 %v214, %v224
  %v226 = vrot.slane %v125, %v225
  %v227 = vlaneseq
  %v228 = vshrl.u32 %v227, 7
  %v229 = vsub.s32 %v214, %v228
  %v230 = vrot.slane %v128, %v229
  %v231 = vlaneseq
  %v232 = vshrl.u32 %v231, 7
  %v233 = vsub.s32 %v214, %v232
  %v234 = vrot.slane %v131, %v233
  %v235 = vlaneseq
  %v236 = vshrl.u32 %v235, 7
  %v237 = vsub.s32 %v214, %v236
  %v238 = vrot.slane %v134, %v237
  %v239 = vlaneseq
  %v240 = vshrl.u32 %v239, 7
  %v241 = vsub.s32 %v214, %v240
  %v242 = vrot.slane %v137, %v241
  %v243 = vlaneseq
  %v244 = vshrl.u32 %v243, 7
  %v245 = vsub.s32 %v214, %v244
  %v246 = vrot.slane %v140, %v245
  %v247 = vlaneseq
  %v248 = vshrl.u32 %v247, 7
  %v249 = vsub.s32 %v214, %v248
  %v250 = vrot.slane %v143, %v249
  %v251 = vlaneseq
  %v252 = vshrl.u32 %v251, 7
  %v253 = vsub.s32 %v214, %v252
  %v254 = vrot.slane %v146, %v253
  %v255 = vlaneseq
  %v256 = vshrl.u32 %v255, 7
  %v257 = vsub.s32 %v214, %v256
  %v258 = vrot.slane %v149, %v257
  %v259 = vlaneseq
  %v260 = vshrl.u32 %v259, 7
  %v261 = vsub.s32 %v214, %v260
  %v262 = vrot.slane %v152, %v261
  %v263 = vlaneseq
  %v264 = vshrl.u32 %v263, 7
  %v265 = vsub.s32 %v214, %v264
  %v266 = vrot.slane %v155, %v265
  %v267 = vlaneseq
  %v268 = vshrl.u32 %v267, 7
  %v269 = vsub.s32 %v214, %v268
  %v270 = vrot.slane %v158, %v269
  %v271 = vlaneseq
  %v272 = vshrl.u32 %v271, 7
  %v273 = vsub.s32 %v214, %v272
  %v274 = vrot.slane %v161, %v273
  %v275 = vlaneseq
  %v276 = vshrl.u32 %v275, 7
  %v277 = vsub.s32 %v214, %v276
  %v278 = vrot.slane %v164, %v277
  %v279 = vlaneseq
  %v280 = vshrl.u32 %v279, 7
  %v281 = vsub.s32 %v214, %v280
  %v282 = vrot.slane %v167, %v281
  %v283 = vlaneseq
  %v284 = vshrl.u32 %v283, 7
  %v285 = vsub.s32 %v214, %v284
  %v286 = vrot.slane %v170, %v285
  %v287 = vlaneseq
  %v288 = vshrl.u32 %v287, 7
  %v289 = vsub.s32 %v214, %v288
  %v290 = vrot.slane %v173, %v289
  %v291 = vlaneseq
  %v292 = vshrl.u32 %v291, 7
  %v293 = vsub.s32 %v214, %v292
  %v294 = vrot.slane %v176, %v293
  %v295 = vlaneseq
  %v296 = vshrl.u32 %v295, 7
  %v297 = vsub.s32 %v214, %v296
  %v298 = vrot.slane %v179, %v297
  %v299 = vlaneseq
  %v300 = vshrl.u32 %v299, 7
  %v301 = vsub.s32 %v214, %v300
  %v302 = vrot.slane %v182, %v301
  %v303 = vlaneseq
  %v304 = vshrl.u32 %v303, 7
  %v305 = vsub.s32 %v214, %v304
  %v306 = vrot.slane %v185, %v305
  %v307 = vlaneseq
  %v308 = vshrl.u32 %v307, 7
  %v309 = vsub.s32 %v214, %v308
  %v310 = vrot.slane %v188, %v309
  %v311 = vlaneseq
  %v312 = vshrl.u32 %v311, 7
  %v313 = vsub.s32 %v214, %v312
  %v314 = vrot.slane %v191, %v313
  %v315 = vlaneseq
  %v316 = vshrl.u32 %v315, 7
  %v317 = vsub.s32 %v214, %v316
  %v318 = vrot.slane %v194, %v317
  %v319 = vlaneseq
  %v320 = vshrl.u32 %v319, 7
  %v321 = vsub.s32 %v214, %v320
  %v322 = vrot.slane %v197, %v321
  %v323 = vlaneseq
  %v324 = vshrl.u32 %v323, 7
  %v325 = vsub.s32 %v214, %v324
  %v326 = vrot.slane %v200, %v325
  %v327 = vlaneseq
  %v328 = vshrl.u32 %v327, 7
  %v329 = vsub.s32 %v214, %v328
  %v330 = vrot.slane %v203, %v329
  %v331 = vlaneseq
  %v332 = vshrl.u32 %v331, 7
  %v333 = vsub.s32 %v214, %v332
  %v334 = vrot.slane %v206, %v333
  %v335 = vlaneseq
  %v336 = vshrl.u32 %v335, 7
  %v337 = vsub.s32 %v214, %v336
  %v338 = vrot.slane %v209, %v337
  %v339 = vlaneseq
  %v340 = vshrl.u32 %v339, 7
  %v341 = vsub.s32 %v214, %v340
  %v342 = vrot.slane %v212, %v341
  %vm343 = vcmask 1041409
  %v344 = vsel %vm343, %v222, %v218
  %vm345 = vcmask 1042434
  %v346 = vsel %vm345, %v226, %v344
  %vm347 = vcmask 1043459
  %v348 = vsel %vm347, %v230, %v346
  %vm349 = vcmask 1044484
  %v350 = vsel %vm349, %v234, %v348
  %vm351 = vcmask 1045509
  %v352 = vsel %vm351, %v238, %v350
  %vm353 = vcmask 1046534
  %v354 = vsel %vm353, %v242, %v352
  %vm355 = vcmask 1047559
  %v356 = vsel %vm355, %v246, %v354
  %v357 = vsel %vm343, %v254, %v250
  %v358 = vsel %vm345, %v258, %v357
  %v359 = vsel %vm347, %v262, %v358
  %v360 = vsel %vm349, %v266, %v359
  %v361 = vsel %vm351, %v270, %v360
  %v362 = vsel %vm353, %v274, %v361
  %v363 = vsel %vm355, %v278, %v362
  %v364 = vsel %vm343, %v286, %v282
  %v365 = vsel %vm345, %v290, %v364
  %v366 = vsel %vm347, %v294, %v365
  %v367 = vsel %vm349, %v298, %v366
  %v368 = vsel %vm351, %v302, %v367
  %v369 = vsel %vm353, %v306, %v368
  %v370 = vsel %vm355, %v310, %v369
  %v371 = vsel %vm343, %v318, %v314
  %v372 = vsel %vm345, %v322, %v371
  %v373 = vsel %vm347, %v326, %v372
  %v374 = vsel %vm349, %v330, %v373
  %v375 = vsel %vm351, %v334, %v374
  %v376 = vsel %vm353, %v338, %v375
  %v377 = vsel %vm355, %v342, %v376
  %vm382 = vcmask 261120
  %v384 = vsel %vm382, %v78, 0
  %386 = vmatprep.subr.mxu0 0.0
  %387 = vmatpush1.msra.mxu0 %v356
  %388 = vmatprep.subr.mxu0 0.0
  %389 = vmatpush1.msra.mxu0 %v363
  %390 = vmatprep.subr.mxu0 0.0
  %391 = vmatpush1.msra.mxu0 %v370
  %392 = vmatprep.subr.mxu0 0.0
  %393 = vmatpush1.msra.mxu0 %v377
  %394 = vmatprep.subr.mxu0 0.0
  %395 = vmatpush1.msra.mxu0 0.0
  %396 = vmatprep.subr.mxu0 0.0
  %397 = vmatpush1.msra.mxu0 0.0
  %398 = vmatprep.subr.mxu0 0.0
  %399 = vmatpush1.msra.mxu0 0.0
  %400 = vmatprep.subr.mxu0 0.0
  %401 = vmatpush1.msra.mxu0 0.0
  %402 = vmatprep.subr.mxu0 0.0
  %403 = vmatpush1.msra.mxu0 0.0
  %404 = vmatprep.subr.mxu0 0.0
  %405 = vmatpush1.msra.mxu0 0.0
  %406 = vmatprep.subr.mxu0 0.0
  %407 = vmatpush1.msra.mxu0 0.0
  %408 = vmatprep.subr.mxu0 0.0
  %409 = vmatpush1.msra.mxu0 0.0
  %410 = vmatprep.subr.mxu0 0.0
  %411 = vmatpush1.msra.mxu0 0.0
  %412 = vmatprep.subr.mxu0 0.0
  %413 = vmatpush1.msra.mxu0 0.0
  %414 = vmatprep.subr.mxu0 0.0
  %415 = vmatpush1.msra.mxu0 0.0
  %416 = vmatprep.subr.mxu0 0.0
  %417 = vmatpush1.msra.mxu0 0.0
  %418 = vmatprep.subr.mxu0 0.0
  %419 = vmatpush1.msra.mxu0 0.0
  %420 = vmatprep.subr.mxu0 0.0
  %421 = vmatpush1.msra.mxu0 0.0
  %422 = vmatprep.subr.mxu0 0.0
  %423 = vmatpush1.msra.mxu0 0.0
  %424 = vmatprep.subr.mxu0 0.0
  %425 = vmatpush1.msra.mxu0 0.0
  %426 = vmatprep.subr.mxu0 0.0
  %427 = vmatpush1.msra.mxu0 0.0
  %428 = vmatprep.subr.mxu0 0.0
  %429 = vmatpush1.msra.mxu0 0.0
  %430 = vmatprep.subr.mxu0 0.0
  %431 = vmatpush1.msra.mxu0 0.0
  %432 = vmatprep.subr.mxu0 0.0
  %433 = vmatpush1.msra.mxu0 0.0
  %434 = vmatprep.subr.mxu0 0.0
  %435 = vmatpush1.msra.mxu0 0.0
  %436 = vmatprep.subr.mxu0 0.0
  %437 = vmatpush1.msra.mxu0 0.0
  %438 = vmatprep.subr.mxu0 0.0
  %439 = vmatpush1.msra.mxu0 0.0
  %440 = vmatprep.subr.mxu0 0.0
  %441 = vmatpush1.msra.mxu0 0.0
  %442 = vmatprep.subr.mxu0 0.0
  %443 = vmatpush1.msra.mxu0 0.0
  %444 = vmatprep.subr.mxu0 0.0
  %445 = vmatpush1.msra.mxu0 0.0
  %446 = vmatprep.subr.mxu0 0.0
  %447 = vmatpush1.msra.mxu0 0.0
  %448 = vmatprep.subr.mxu0 0.0
  %449 = vmatpush1.msra.mxu0 0.0
  %450 = vmatprep.mubr.f32.mxu0 0.0
  %451 = vmatmul.mubr.f32.gmra.mrb[0].mxu0 %v384
  %v452 = vpop.f32.mrb[0].mxu0
  %v453 = vadd.f32 %v83, %v452
  %v454 = vpop.f32.mrb[0].mxu0
  %455 = vdwg.mxu0
  %vm456 = vcmask 10240
  %457 = vst.msk [vmem:[%s3] sm:$0x7] %vm456, %v453
  // Predicated region
  $region14: #{heterogeneous_resnet_forward.19} parent=0 // pred_check
    _
  $region15: #{heterogeneous_resnet_forward.19} parent=0 // pred_check_branch
    %459 = sbr.rel (0) target = $region17
  $region16: #{heterogeneous_resnet_forward.19} parent=0 // pred_region
    _
  $region17: #{heterogeneous_resnet_forward.19} parent=0 // pred_fallthru
    _
  // Predicated region
  $region18: #{heterogeneous_resnet_forward.19} parent=0 // pred_check
    _
  $region19: #{heterogeneous_resnet_forward.19} parent=0 // pred_check_branch
    %461 = sbr.rel (0) target = $region21
  $region20: #{heterogeneous_resnet_forward.19} parent=0 // pred_region
    _
  $region21: #{heterogeneous_resnet_forward.19} parent=0 // pred_fallthru
    _

</llo_original>
